<compile_context>
chip_gen: v7x
topology: tpu7x:2x2x1
jax: 0.10.0
libtpu: 0.0.40
codegen_flags: <defaults>
</compile_context>

<pallas_src>
import functools

import jax
import jax.numpy as jnp
from jax.experimental import pallas as pl
from jax.experimental.pallas import tpu as pltpu

BN_EPS = 1e-5
LANE = 128
VMEM_LIMIT = 48 * 1024 * 1024  # <= v7x 64 MiB physical; >> v5e/v6e scoped defaults


def _round_up(x, m):
    return (x + m - 1) // m * m


def _fold_bn(bn):
    gamma, beta, mean, var = bn
    scale = gamma / jnp.sqrt(var + BN_EPS)
    bias = beta - mean * scale
    return scale, bias


def _tap_weights(w_oihw, scale, cp):
    """[Cout, Cin, 3, 3] -> [9, Cin, cp] bf16 (kh-major taps, BN scale folded, Cout padded)."""
    cout, cin = w_oihw.shape[0], w_oihw.shape[1]
    w = jnp.transpose(w_oihw, (2, 3, 1, 0)).reshape(9, cin, cout) * scale[None, None, :]
    return jnp.pad(w, ((0, 0), (0, 0), (0, cp - cout))).astype(jnp.bfloat16)


def _tap_source(x_nhwc, stride, ksize=3, pad=1):
    """Zero-pad + parity-decompose so every 3x3 tap window is a *contiguous* slice.

    Returns xt [N*stride^2, Hs, Ws, C] and taps [(parity, dh, dw)] such that the input window
    of tap (kh, kw) for image n is xt[n*stride^2 + parity, dh:dh+Ho, dw:dw+Wo, :].
    Costs ~1x activation bytes (vs ~9x for a materialized im2col patch tensor).
    """
    n, h, w, c = x_nhwc.shape
    xp = jnp.pad(x_nhwc, ((0, 0), (pad, pad), (pad, pad), (0, 0)))
    hp, wp = h + 2 * pad, w + 2 * pad
    ho = (hp - ksize) // stride + 1
    wo = (wp - ksize) // stride + 1
    hs, ws = -(-hp // stride), -(-wp // stride)
    subs = []
    for p in range(stride):
        for q in range(stride):
            sub = xp[:, p::stride, q::stride, :]
            sub = jnp.pad(sub, ((0, 0), (0, hs - sub.shape[1]),
                                (0, ws - sub.shape[2]), (0, 0)))
            subs.append(sub)
    xt = jnp.stack(subs, axis=1).reshape(n * stride * stride, hs, ws, c)
    taps = [((kh % stride) * stride + (kw % stride), kh // stride, kw // stride)
            for kh in range(ksize) for kw in range(ksize)]
    return xt, taps, (ho, wo)


# ---------------------------------------------------------------------------
# Kernel 1: conv3x3(stride) + folded-BN bias + ReLU, in-kernel im2col.
#   One batch image per grid step.  Output block is written already zero-padded by one pixel
#   on each spatial side so the next conv reads it directly (no wrapper pad pass).
# ---------------------------------------------------------------------------
def _conv_bn_relu_kernel(x_ref, w_ref, b_ref, o_ref, acc_ref, *, taps, ho, wo):
    acc_ref[...] = jnp.zeros(acc_ref.shape, acc_ref.dtype)
    for t, (parity, dh, dw) in enumerate(taps):
        win = x_ref[parity, dh:dh + ho, dw:dw + wo, :]            # (ho, wo, cin) f32
        a = win.reshape(ho * wo, win.shape[-1]).astype(jnp.bfloat16)
        acc_ref[...] += jnp.dot(a, w_ref[t], preferred_element_type=jnp.float32)
    out = jnp.maximum(acc_ref[...] + b_ref[...], 0.0)
    o_ref[...] = jnp.zeros(o_ref.shape, o_ref.dtype)              # 1-px zero border
    o_ref[0, 1:1 + ho, 1:1 + wo, :] = out.reshape(ho, wo, out.shape[-1]).astype(o_ref.dtype)


# ---------------------------------------------------------------------------
# Kernel 2: conv3x3(stride 1) + folded-BN bias + fused shortcut + ReLU.
#   Shortcut is either a fused 1x1-conv+BN ("proj": one extra dot into the accumulator) or a
#   fused identity add (bf16 stream).  One batch image per grid step.
# ---------------------------------------------------------------------------
def _conv_bn_add_relu_kernel(*refs, taps, ho, wo, proj):
    if proj:
        y_ref, w_ref, b_ref, xs_ref, ws_ref, bs_ref, o_ref, acc_ref = refs
        xs = xs_ref[0]                                            # (ho, wo, cin) bf16
        xs = xs.astype(jnp.float32).reshape(ho * wo, xs.shape[-1]).astype(jnp.bfloat16)
        acc_ref[...] = (jnp.dot(xs, ws_ref[...], preferred_element_type=jnp.float32)
                        + bs_ref[...])
    else:
        y_ref, w_ref, b_ref, xid_ref, o_ref, acc_ref = refs
        xid = xid_ref[0]                                          # (ho, wo, cp) bf16
        acc_ref[...] = xid.astype(jnp.float32).reshape(ho * wo, xid.shape[-1])

    for t, (dh, dw) in enumerate(taps):
        win = y_ref[0, dh:dh + ho, dw:dw + wo, :]                 # (ho, wo, cp) f32
        a = win.reshape(ho * wo, win.shape[-1]).astype(jnp.bfloat16)
        acc_ref[...] += jnp.dot(a, w_ref[t], preferred_element_type=jnp.float32)

    out = jnp.maximum(acc_ref[...] + b_ref[...], 0.0)
    o_ref[...] = out.reshape(1, ho, wo, out.shape[-1]).astype(o_ref.dtype)


# ---------------------------------------------------------------------------
# Wrappers
# ---------------------------------------------------------------------------
def conv3x3_bn_relu(x_nhwc, w_oihw, bn, stride):
    """conv1 + bn1 + relu.  Returns [N, Ho+2, Wo+2, Cp] f32 (spatially + channel padded)."""
    n = x_nhwc.shape[0]
    cin = x_nhwc.shape[-1]
    planes = w_oihw.shape[0]
    cp = _round_up(planes, LANE)   # lane-dense output channels (inflates thin test layers; fine)

    scale, bias = _fold_bn(bn)
    wt = _tap_weights(w_oihw, scale, cp)                               # [9, cin, cp] bf16
    b2d = jnp.pad(bias, (0, cp - planes)).reshape(1, cp).astype(jnp.float32)

    xt, taps, (ho, wo) = _tap_source(x_nhwc.astype(jnp.float32), stride)
    npar, hs, ws = stride * stride, xt.shape[1], xt.shape[2]

    out = pl.pallas_call(
        functools.partial(_conv_bn_relu_kernel, taps=taps, ho=ho, wo=wo),
        out_shape=jax.ShapeDtypeStruct((n, ho + 2, wo + 2, cp), jnp.float32),
        grid=(n,),
        in_specs=[
            pl.BlockSpec((npar, hs, ws, cin), lambda i: (i, 0, 0, 0)),  # activation (per image)
            pl.BlockSpec((9, cin, cp), lambda i: (0, 0, 0)),            # weights: VMEM-resident
            pl.BlockSpec((1, cp), lambda i: (0, 0)),                    # folded BN bias
        ],
        out_specs=pl.BlockSpec((1, ho + 2, wo + 2, cp), lambda i: (i, 0, 0, 0)),
        scratch_shapes=[pltpu.VMEM((ho * wo, cp), jnp.float32)],
        compiler_params=pltpu.CompilerParams(
            dimension_semantics=("parallel",), vmem_limit_bytes=VMEM_LIMIT),
    )(xt, wt, b2d)
    return out, (ho, wo)


def conv3x3_bn_add_relu(y_pad, w_oihw, bn, shortcut, ho, wo, out_dtype=jnp.float32):
    """conv2 + bn2 + (fused shortcut) + relu.  y_pad: [N, ho+2, wo+2, cp] f32."""
    n, hp2, wp2, cp = y_pad.shape
    planes = w_oihw.shape[0]
    scale, bias = _fold_bn(bn)
    wt = jnp.pad(_tap_weights(w_oihw, scale, cp), ((0, 0), (0, cp - planes), (0, 0)))  # [9,cp,cp]
    b2d = jnp.pad(bias, (0, cp - planes)).reshape(1, cp).astype(jnp.float32)
    taps = [(kh, kw) for kh in range(3) for kw in range(3)]

    proj = shortcut[0] == "proj"
    in_specs = [
        pl.BlockSpec((1, hp2, wp2, cp), lambda i: (i, 0, 0, 0)),
        pl.BlockSpec((9, cp, cp), lambda i: (0, 0, 0)),
        pl.BlockSpec((1, cp), lambda i: (0, 0)),
    ]
    args = [y_pad, wt, b2d]
    if proj:
        _, xs, ws_mat, bs2d = shortcut
        in_specs += [
            pl.BlockSpec((1, ho, wo, xs.shape[-1]), lambda i: (i, 0, 0, 0)),
            pl.BlockSpec(ws_mat.shape, lambda i: (0, 0)),
            pl.BlockSpec((1, cp), lambda i: (0, 0)),
        ]
        args += [xs, ws_mat, bs2d]
    else:
        _, xid = shortcut
        in_specs += [pl.BlockSpec((1, ho, wo, cp), lambda i: (i, 0, 0, 0))]
        args += [xid]

    return pl.pallas_call(
        functools.partial(_conv_bn_add_relu_kernel, taps=taps, ho=ho, wo=wo, proj=proj),
        out_shape=jax.ShapeDtypeStruct((n, ho, wo, cp), out_dtype),
        grid=(n,),
        in_specs=in_specs,
        out_specs=pl.BlockSpec((1, ho, wo, cp), lambda i: (i, 0, 0, 0)),
        scratch_shapes=[pltpu.VMEM((ho * wo, cp), jnp.float32)],
        compiler_params=pltpu.CompilerParams(
            dimension_semantics=("parallel",), vmem_limit_bytes=VMEM_LIMIT),
    )(*args)


def basic_block_forward(x_nchw, params, stride, out_dtype=jnp.float32):
    # Layout change happens exactly once at block entry and once at exit.
    x_nhwc = jnp.transpose(x_nchw, (0, 2, 3, 1))
    cin = x_nhwc.shape[-1]
    planes = params["w1"].shape[0]
    cp = _round_up(planes, LANE)

    # conv1 + bn1 + relu (output already padded for conv2)
    y_pad, (ho, wo) = conv3x3_bn_relu(x_nhwc, params["w1"], params["bn1"], stride)

    # shortcut operands (bf16 streams; the 1x1 projection is fused into the conv2 kernel)
    x_bf16 = x_nhwc.astype(jnp.bfloat16)
    if stride != 1 or cin != planes:
        xs = x_bf16[:, ::stride, ::stride, :]                     # 1x1-conv input, ~1/s^2 bytes
        ss, bs = _fold_bn(params["bns"])
        ws_mat = jnp.transpose(params["ws"][:, :, 0, 0], (1, 0)) * ss[None, :]
        ws_mat = jnp.pad(ws_mat, ((0, 0), (0, cp - planes))).astype(jnp.bfloat16)
        bs2d = jnp.pad(bs, (0, cp - planes)).reshape(1, cp).astype(jnp.float32)
        shortcut = ("proj", xs, ws_mat, bs2d)
    else:
        xid = jnp.pad(x_bf16, ((0, 0), (0, 0), (0, 0), (0, cp - planes)))
        shortcut = ("id", xid)

    out = conv3x3_bn_add_relu(y_pad, params["w2"], params["bn2"], shortcut, ho, wo)

    # drop channel padding + back to NCHW in a single pass
    return jnp.transpose(out[..., :planes], (0, 3, 1, 2)).astype(out_dtype)


# ---------------------------------------------------------------------------
# Pure-JAX reference + parameter construction
# ---------------------------------------------------------------------------
def _ref_bn(x, bn):
    g, b, m, v = bn
    inv = g / jnp.sqrt(v + BN_EPS)
    return x * inv[None, :, None, None] + (b - m * inv)[None, :, None, None]


def _ref_conv(x, w, stride, pad):
    return jax.lax.conv_general_dilated(
        x, w, (stride, stride), ((pad, pad), (pad, pad)),
        dimension_numbers=("NCHW", "OIHW", "NCHW"))


def ref_forward(x, params, stride):
    out = jax.nn.relu(_ref_bn(_ref_conv(x, params["w1"], stride, 1), params["bn1"]))
    out = _ref_bn(_ref_conv(out, params["w2"], 1, 1), params["bn2"])
    cin, planes = params["w1"].shape[1], params["w1"].shape[0]
    if stride != 1 or cin != planes:
        sc = _ref_bn(_ref_conv(x, params["ws"], stride, 0), params["bns"])
    else:
        sc = x
    return jax.nn.relu(out + sc)


def make_params(key, in_planes, planes, stride):
    ks = jax.random.split(key, 6)

    def bn_params(k, c):
        k1, k2, k3, k4 = jax.random.split(k, 4)
        gamma = 1.0 + 0.1 * jax.random.normal(k1, (c,), jnp.float32)
        beta = 0.1 * jax.random.normal(k2, (c,), jnp.float32)
        mean = 0.1 * jax.random.normal(k3, (c,), jnp.float32)
        var = jnp.abs(jax.random.normal(k4, (c,), jnp.float32)) + 0.5
        return (gamma, beta, mean, var)

    params = {
        "w1": 0.2 * jax.random.normal(ks[0], (planes, in_planes, 3, 3), jnp.float32),
        "bn1": bn_params(ks[1], planes),
        "w2": 0.2 * jax.random.normal(ks[2], (planes, planes, 3, 3), jnp.float32),
        "bn2": bn_params(ks[3], planes),
    }
    if stride != 1 or in_planes != planes:
        params["ws"] = 0.2 * jax.random.normal(ks[4], (planes, in_planes, 1, 1), jnp.float32)
        params["bns"] = bn_params(ks[5], planes)
    return params


if __name__ == "__main__":
    key = jax.random.PRNGKey(0)
    k1, k2, k3, k4 = jax.random.split(key, 4)

    fwd = jax.jit(basic_block_forward, static_argnums=(2,))

    # Config A: downsampling block (stride 2, projection shortcut), like ResNet layer2..4.
    x_a = jax.random.normal(k1, (2, 4, 16, 16), jnp.float32)          # NCHW like PyTorch
    p_a = make_params(k2, 4, 8, 2)
    out_a = jax.block_until_ready(fwd(x_a, p_a, 2))
    ref_a = ref_forward(x_a, p_a, 2)
    assert out_a.shape == ref_a.shape == (2, 8, 8, 8)
    # bf16 matmul operands (f32 accumulation) vs a pure-f32 reference -> modest tolerance.
    assert jnp.allclose(out_a, ref_a, atol=1e-1, rtol=1e-2), "mismatch (downsample block)"

    # Config B: identity block (stride 1, in_planes == planes), like ResNet layer1.
    x_b = jax.random.normal(k3, (2, 8, 16, 16), jnp.float32)
    p_b = make_params(k4, 8, 8, 1)
    out_b = jax.block_until_ready(fwd(x_b, p_b, 1))
    ref_b = ref_forward(x_b, p_b, 1)
    assert out_b.shape == ref_b.shape == (2, 8, 16, 16)
    assert jnp.allclose(out_b, ref_b, atol=1e-1, rtol=1e-2), "mismatch (identity block)"

    print("KERNEL_OK")
</pallas_src>

<mosaic_0001>
module attributes {stable_mosaic.version = 11 : i64} {
  func.func @_conv_bn_relu_kernel(%arg0: i32, %arg1: memref<4x9x9x4xf32, #tpu.memory_space<vmem>>, %arg2: memref<9x4x128xbf16, #tpu.memory_space<vmem>>, %arg3: memref<1x128xf32, #tpu.memory_space<vmem>>, %arg4: memref<1x10x10x128xf32, #tpu.memory_space<vmem>>, %arg5: memref<64x128xf32, #tpu.memory_space<vmem>>) attributes {dimension_semantics = [#tpu.dimension_semantics<parallel>], iteration_bounds = array<i64: 2>, scalar_prefetch = 0 : i64, scratch_operands = 1 : i64, tpu.core_type = #tpu.core_type<tc>, window_params = [{transform_indices = @transform_0, window_bounds = array<i64: 4, 9, 9, 4>}, {pipeline_mode = #tpu.pipeline_mode<synchronous>, transform_indices = @transform_1, window_bounds = array<i64: 9, 4, 128>}, {pipeline_mode = #tpu.pipeline_mode<synchronous>, transform_indices = @transform_2, window_bounds = array<i64: 1, 128>}, {transform_indices = @transform_3, window_bounds = array<i64: 1, 10, 10, 128>}]} {
    %cst = arith.constant 0.000000e+00 : f32
    %0 = vector.broadcast %cst : f32 to vector<64x128xf32>
    %c0 = arith.constant 0 : index
    %c0_0 = arith.constant 0 : index
    %1 = vector.load %arg5[%c0, %c0_0] : memref<64x128xf32, #tpu.memory_space<vmem>>, vector<64x128xf32>
    tpu.vector_store %arg5[%c0, %c0_0], %0 {strides = array<i32>} : memref<64x128xf32, #tpu.memory_space<vmem>>, vector<64x128xf32>,
    %c0_1 = arith.constant 0 : index
    %c0_2 = arith.constant 0 : index
    %c0_3 = arith.constant 0 : index
    %c0_4 = arith.constant 0 : index
    %2 = vector.load %arg1[%c0_1, %c0_2, %c0_3, %c0_4] : memref<4x9x9x4xf32, #tpu.memory_space<vmem>>, vector<1x8x8x4xf32>
    %3 = vector.shape_cast %2 : vector<1x8x8x4xf32> to vector<8x8x4xf32>
    %4 = vector.shape_cast %3 : vector<8x8x4xf32> to vector<64x4xf32>
    %5 = arith.truncf %4 : vector<64x4xf32> to vector<64x4xbf16>
    %c0_5 = arith.constant 0 : index
    %c0_6 = arith.constant 0 : index
    %6 = vector.load %arg5[%c0_5, %c0_6] : memref<64x128xf32, #tpu.memory_space<vmem>>, vector<64x128xf32>
    %c0_7 = arith.constant 0 : index
    %c0_8 = arith.constant 0 : index
    %c0_9 = arith.constant 0 : index
    %7 = vector.load %arg2[%c0_7, %c0_8, %c0_9] : memref<9x4x128xbf16, #tpu.memory_space<vmem>>, vector<1x4x128xbf16>
    %8 = vector.shape_cast %7 : vector<1x4x128xbf16> to vector<4x128xbf16>
    %cst_10 = arith.constant dense<0.000000e+00> : vector<64x128xf32>
    %9 = tpu.matmul %5, %8, %cst_10 {dimension_numbers = #tpu.dot_dimension_numbers<[1], [0], [0], [1], [0, 0, 1, 1], [], []>} : vector<64x4xbf16>, vector<4x128xbf16>, vector<64x128xf32> -> vector<64x128xf32>
    %10 = arith.addf %6, %9 : vector<64x128xf32>
    %c0_11 = arith.constant 0 : index
    %c0_12 = arith.constant 0 : index
    %11 = vector.load %arg5[%c0_11, %c0_12] : memref<64x128xf32, #tpu.memory_space<vmem>>, vector<64x128xf32>
    tpu.vector_store %arg5[%c0_11, %c0_12], %10 {strides = array<i32>} : memref<64x128xf32, #tpu.memory_space<vmem>>, vector<64x128xf32>,
    %c1 = arith.constant 1 : index
    %c0_13 = arith.constant 0 : index
    %c0_14 = arith.constant 0 : index
    %c0_15 = arith.constant 0 : index
    %12 = vector.load %arg1[%c1, %c0_13, %c0_14, %c0_15] : memref<4x9x9x4xf32, #tpu.memory_space<vmem>>, vector<1x8x8x4xf32>
    %13 = vector.shape_cast %12 : vector<1x8x8x4xf32> to vector<8x8x4xf32>
    %14 = vector.shape_cast %13 : vector<8x8x4xf32> to vector<64x4xf32>
    %15 = arith.truncf %14 : vector<64x4xf32> to vector<64x4xbf16>
    %c0_16 = arith.constant 0 : index
    %c0_17 = arith.constant 0 : index
    %16 = vector.load %arg5[%c0_16, %c0_17] : memref<64x128xf32, #tpu.memory_space<vmem>>, vector<64x128xf32>
    %c1_18 = arith.constant 1 : index
    %c0_19 = arith.constant 0 : index
    %c0_20 = arith.constant 0 : index
    %17 = vector.load %arg2[%c1_18, %c0_19, %c0_20] : memref<9x4x128xbf16, #tpu.memory_space<vmem>>, vector<1x4x128xbf16>
    %18 = vector.shape_cast %17 : vector<1x4x128xbf16> to vector<4x128xbf16>
    %cst_21 = arith.constant dense<0.000000e+00> : vector<64x128xf32>
    %19 = tpu.matmul %15, %18, %cst_21 {dimension_numbers = #tpu.dot_dimension_numbers<[1], [0], [0], [1], [0, 0, 1, 1], [], []>} : vector<64x4xbf16>, vector<4x128xbf16>, vector<64x128xf32> -> vector<64x128xf32>
    %20 = arith.addf %16, %19 : vector<64x128xf32>
    %c0_22 = arith.constant 0 : index
    %c0_23 = arith.constant 0 : index
    %21 = vector.load %arg5[%c0_22, %c0_23] : memref<64x128xf32, #tpu.memory_space<vmem>>, vector<64x128xf32>
    tpu.vector_store %arg5[%c0_22, %c0_23], %20 {strides = array<i32>} : memref<64x128xf32, #tpu.memory_space<vmem>>, vector<64x128xf32>,
    %c0_24 = arith.constant 0 : index
    %c0_25 = arith.constant 0 : index
    %c1_26 = arith.constant 1 : index
    %c0_27 = arith.constant 0 : index
    %22 = vector.load %arg1[%c0_24, %c0_25, %c1_26, %c0_27] : memref<4x9x9x4xf32, #tpu.memory_space<vmem>>, vector<1x8x8x4xf32>
    %23 = vector.shape_cast %22 : vector<1x8x8x4xf32> to vector<8x8x4xf32>
    %24 = vector.shape_cast %23 : vector<8x8x4xf32> to vector<64x4xf32>
    %25 = arith.truncf %24 : vector<64x4xf32> to vector<64x4xbf16>
    %c0_28 = arith.constant 0 : index
    %c0_29 = arith.constant 0 : index
    %26 = vector.load %arg5[%c0_28, %c0_29] : memref<64x128xf32, #tpu.memory_space<vmem>>, vector<64x128xf32>
    %c2 = arith.constant 2 : index
    %c0_30 = arith.constant 0 : index
    %c0_31 = arith.constant 0 : index
    %27 = vector.load %arg2[%c2, %c0_30, %c0_31] : memref<9x4x128xbf16, #tpu.memory_space<vmem>>, vector<1x4x128xbf16>
    %28 = vector.shape_cast %27 : vector<1x4x128xbf16> to vector<4x128xbf16>
    %cst_32 = arith.constant dense<0.000000e+00> : vector<64x128xf32>
    %29 = tpu.matmul %25, %28, %cst_32 {dimension_numbers = #tpu.dot_dimension_numbers<[1], [0], [0], [1], [0, 0, 1, 1], [], []>} : vector<64x4xbf16>, vector<4x128xbf16>, vector<64x128xf32> -> vector<64x128xf32>
    %30 = arith.addf %26, %29 : vector<64x128xf32>
    %c0_33 = arith.constant 0 : index
    %c0_34 = arith.constant 0 : index
    %31 = vector.load %arg5[%c0_33, %c0_34] : memref<64x128xf32, #tpu.memory_space<vmem>>, vector<64x128xf32>
    tpu.vector_store %arg5[%c0_33, %c0_34], %30 {strides = array<i32>} : memref<64x128xf32, #tpu.memory_space<vmem>>, vector<64x128xf32>,
    %c2_35 = arith.constant 2 : index
    %c0_36 = arith.constant 0 : index
    %c0_37 = arith.constant 0 : index
    %c0_38 = arith.constant 0 : index
    %32 = vector.load %arg1[%c2_35, %c0_36, %c0_37, %c0_38] : memref<4x9x9x4xf32, #tpu.memory_space<vmem>>, vector<1x8x8x4xf32>
    %33 = vector.shape_cast %32 : vector<1x8x8x4xf32> to vector<8x8x4xf32>
    %34 = vector.shape_cast %33 : vector<8x8x4xf32> to vector<64x4xf32>
    %35 = arith.truncf %34 : vector<64x4xf32> to vector<64x4xbf16>
    %c0_39 = arith.constant 0 : index
    %c0_40 = arith.constant 0 : index
    %36 = vector.load %arg5[%c0_39, %c0_40] : memref<64x128xf32, #tpu.memory_space<vmem>>, vector<64x128xf32>
    %c3 = arith.constant 3 : index
    %c0_41 = arith.constant 0 : index
    %c0_42 = arith.constant 0 : index
    %37 = vector.load %arg2[%c3, %c0_41, %c0_42] : memref<9x4x128xbf16, #tpu.memory_space<vmem>>, vector<1x4x128xbf16>
    %38 = vector.shape_cast %37 : vector<1x4x128xbf16> to vector<4x128xbf16>
    %cst_43 = arith.constant dense<0.000000e+00> : vector<64x128xf32>
    %39 = tpu.matmul %35, %38, %cst_43 {dimension_numbers = #tpu.dot_dimension_numbers<[1], [0], [0], [1], [0, 0, 1, 1], [], []>} : vector<64x4xbf16>, vector<4x128xbf16>, vector<64x128xf32> -> vector<64x128xf32>
    %40 = arith.addf %36, %39 : vector<64x128xf32>
    %c0_44 = arith.constant 0 : index
    %c0_45 = arith.constant 0 : index
    %41 = vector.load %arg5[%c0_44, %c0_45] : memref<64x128xf32, #tpu.memory_space<vmem>>, vector<64x128xf32>
    tpu.vector_store %arg5[%c0_44, %c0_45], %40 {strides = array<i32>} : memref<64x128xf32, #tpu.memory_space<vmem>>, vector<64x128xf32>,
    %c3_46 = arith.constant 3 : index
    %c0_47 = arith.constant 0 : index
    %c0_48 = arith.constant 0 : index
    %c0_49 = arith.constant 0 : index
    %42 = vector.load %arg1[%c3_46, %c0_47, %c0_48, %c0_49] : memref<4x9x9x4xf32, #tpu.memory_space<vmem>>, vector<1x8x8x4xf32>
    %43 = vector.shape_cast %42 : vector<1x8x8x4xf32> to vector<8x8x4xf32>
    %44 = vector.shape_cast %43 : vector<8x8x4xf32> to vector<64x4xf32>
    %45 = arith.truncf %44 : vector<64x4xf32> to vector<64x4xbf16>
    %c0_50 = arith.constant 0 : index
    %c0_51 = arith.constant 0 : index
    %46 = vector.load %arg5[%c0_50, %c0_51] : memref<64x128xf32, #tpu.memory_space<vmem>>, vector<64x128xf32>
    %c4 = arith.constant 4 : index
    %c0_52 = arith.constant 0 : index
    %c0_53 = arith.constant 0 : index
    %47 = vector.load %arg2[%c4, %c0_52, %c0_53] : memref<9x4x128xbf16, #tpu.memory_space<vmem>>, vector<1x4x128xbf16>
    %48 = vector.shape_cast %47 : vector<1x4x128xbf16> to vector<4x128xbf16>
    %cst_54 = arith.constant dense<0.000000e+00> : vector<64x128xf32>
    %49 = tpu.matmul %45, %48, %cst_54 {dimension_numbers = #tpu.dot_dimension_numbers<[1], [0], [0], [1], [0, 0, 1, 1], [], []>} : vector<64x4xbf16>, vector<4x128xbf16>, vector<64x128xf32> -> vector<64x128xf32>
    %50 = arith.addf %46, %49 : vector<64x128xf32>
    %c0_55 = arith.constant 0 : index
    %c0_56 = arith.constant 0 : index
    %51 = vector.load %arg5[%c0_55, %c0_56] : memref<64x128xf32, #tpu.memory_space<vmem>>, vector<64x128xf32>
    tpu.vector_store %arg5[%c0_55, %c0_56], %50 {strides = array<i32>} : memref<64x128xf32, #tpu.memory_space<vmem>>, vector<64x128xf32>,
    %c2_57 = arith.constant 2 : index
    %c0_58 = arith.constant 0 : index
    %c1_59 = arith.constant 1 : index
    %c0_60 = arith.constant 0 : index
    %52 = vector.load %arg1[%c2_57, %c0_58, %c1_59, %c0_60] : memref<4x9x9x4xf32, #tpu.memory_space<vmem>>, vector<1x8x8x4xf32>
    %53 = vector.shape_cast %52 : vector<1x8x8x4xf32> to vector<8x8x4xf32>
    %54 = vector.shape_cast %53 : vector<8x8x4xf32> to vector<64x4xf32>
    %55 = arith.truncf %54 : vector<64x4xf32> to vector<64x4xbf16>
    %c0_61 = arith.constant 0 : index
    %c0_62 = arith.constant 0 : index
    %56 = vector.load %arg5[%c0_61, %c0_62] : memref<64x128xf32, #tpu.memory_space<vmem>>, vector<64x128xf32>
    %c5 = arith.constant 5 : index
    %c0_63 = arith.constant 0 : index
    %c0_64 = arith.constant 0 : index
    %57 = vector.load %arg2[%c5, %c0_63, %c0_64] : memref<9x4x128xbf16, #tpu.memory_space<vmem>>, vector<1x4x128xbf16>
    %58 = vector.shape_cast %57 : vector<1x4x128xbf16> to vector<4x128xbf16>
    %cst_65 = arith.constant dense<0.000000e+00> : vector<64x128xf32>
    %59 = tpu.matmul %55, %58, %cst_65 {dimension_numbers = #tpu.dot_dimension_numbers<[1], [0], [0], [1], [0, 0, 1, 1], [], []>} : vector<64x4xbf16>, vector<4x128xbf16>, vector<64x128xf32> -> vector<64x128xf32>
    %60 = arith.addf %56, %59 : vector<64x128xf32>
    %c0_66 = arith.constant 0 : index
    %c0_67 = arith.constant 0 : index
    %61 = vector.load %arg5[%c0_66, %c0_67] : memref<64x128xf32, #tpu.memory_space<vmem>>, vector<64x128xf32>
    tpu.vector_store %arg5[%c0_66, %c0_67], %60 {strides = array<i32>} : memref<64x128xf32, #tpu.memory_space<vmem>>, vector<64x128xf32>,
    %c0_68 = arith.constant 0 : index
    %c1_69 = arith.constant 1 : index
    %c0_70 = arith.constant 0 : index
    %c0_71 = arith.constant 0 : index
    %62 = vector.load %arg1[%c0_68, %c1_69, %c0_70, %c0_71] : memref<4x9x9x4xf32, #tpu.memory_space<vmem>>, vector<1x8x8x4xf32>
    %63 = vector.shape_cast %62 : vector<1x8x8x4xf32> to vector<8x8x4xf32>
    %64 = vector.shape_cast %63 : vector<8x8x4xf32> to vector<64x4xf32>
    %65 = arith.truncf %64 : vector<64x4xf32> to vector<64x4xbf16>
    %c0_72 = arith.constant 0 : index
    %c0_73 = arith.constant 0 : index
    %66 = vector.load %arg5[%c0_72, %c0_73] : memref<64x128xf32, #tpu.memory_space<vmem>>, vector<64x128xf32>
    %c6 = arith.constant 6 : index
    %c0_74 = arith.constant 0 : index
    %c0_75 = arith.constant 0 : index
    %67 = vector.load %arg2[%c6, %c0_74, %c0_75] : memref<9x4x128xbf16, #tpu.memory_space<vmem>>, vector<1x4x128xbf16>
    %68 = vector.shape_cast %67 : vector<1x4x128xbf16> to vector<4x128xbf16>
    %cst_76 = arith.constant dense<0.000000e+00> : vector<64x128xf32>
    %69 = tpu.matmul %65, %68, %cst_76 {dimension_numbers = #tpu.dot_dimension_numbers<[1], [0], [0], [1], [0, 0, 1, 1], [], []>} : vector<64x4xbf16>, vector<4x128xbf16>, vector<64x128xf32> -> vector<64x128xf32>
    %70 = arith.addf %66, %69 : vector<64x128xf32>
    %c0_77 = arith.constant 0 : index
    %c0_78 = arith.constant 0 : index
    %71 = vector.load %arg5[%c0_77, %c0_78] : memref<64x128xf32, #tpu.memory_space<vmem>>, vector<64x128xf32>
    tpu.vector_store %arg5[%c0_77, %c0_78], %70 {strides = array<i32>} : memref<64x128xf32, #tpu.memory_space<vmem>>, vector<64x128xf32>,
    %c1_79 = arith.constant 1 : index
    %c1_80 = arith.constant 1 : index
    %c0_81 = arith.constant 0 : index
    %c0_82 = arith.constant 0 : index
    %72 = vector.load %arg1[%c1_79, %c1_80, %c0_81, %c0_82] : memref<4x9x9x4xf32, #tpu.memory_space<vmem>>, vector<1x8x8x4xf32>
    %73 = vector.shape_cast %72 : vector<1x8x8x4xf32> to vector<8x8x4xf32>
    %74 = vector.shape_cast %73 : vector<8x8x4xf32> to vector<64x4xf32>
    %75 = arith.truncf %74 : vector<64x4xf32> to vector<64x4xbf16>
    %c0_83 = arith.constant 0 : index
    %c0_84 = arith.constant 0 : index
    %76 = vector.load %arg5[%c0_83, %c0_84] : memref<64x128xf32, #tpu.memory_space<vmem>>, vector<64x128xf32>
    %c7 = arith.constant 7 : index
    %c0_85 = arith.constant 0 : index
    %c0_86 = arith.constant 0 : index
    %77 = vector.load %arg2[%c7, %c0_85, %c0_86] : memref<9x4x128xbf16, #tpu.memory_space<vmem>>, vector<1x4x128xbf16>
    %78 = vector.shape_cast %77 : vector<1x4x128xbf16> to vector<4x128xbf16>
    %cst_87 = arith.constant dense<0.000000e+00> : vector<64x128xf32>
    %79 = tpu.matmul %75, %78, %cst_87 {dimension_numbers = #tpu.dot_dimension_numbers<[1], [0], [0], [1], [0, 0, 1, 1], [], []>} : vector<64x4xbf16>, vector<4x128xbf16>, vector<64x128xf32> -> vector<64x128xf32>
    %80 = arith.addf %76, %79 : vector<64x128xf32>
    %c0_88 = arith.constant 0 : index
    %c0_89 = arith.constant 0 : index
    %81 = vector.load %arg5[%c0_88, %c0_89] : memref<64x128xf32, #tpu.memory_space<vmem>>, vector<64x128xf32>
    tpu.vector_store %arg5[%c0_88, %c0_89], %80 {strides = array<i32>} : memref<64x128xf32, #tpu.memory_space<vmem>>, vector<64x128xf32>,
    %c0_90 = arith.constant 0 : index
    %c1_91 = arith.constant 1 : index
    %c1_92 = arith.constant 1 : index
    %c0_93 = arith.constant 0 : index
    %82 = vector.load %arg1[%c0_90, %c1_91, %c1_92, %c0_93] : memref<4x9x9x4xf32, #tpu.memory_space<vmem>>, vector<1x8x8x4xf32>
    %83 = vector.shape_cast %82 : vector<1x8x8x4xf32> to vector<8x8x4xf32>
    %84 = vector.shape_cast %83 : vector<8x8x4xf32> to vector<64x4xf32>
    %85 = arith.truncf %84 : vector<64x4xf32> to vector<64x4xbf16>
    %c0_94 = arith.constant 0 : index
    %c0_95 = arith.constant 0 : index
    %86 = vector.load %arg5[%c0_94, %c0_95] : memref<64x128xf32, #tpu.memory_space<vmem>>, vector<64x128xf32>
    %c8 = arith.constant 8 : index
    %c0_96 = arith.constant 0 : index
    %c0_97 = arith.constant 0 : index
    %87 = vector.load %arg2[%c8, %c0_96, %c0_97] : memref<9x4x128xbf16, #tpu.memory_space<vmem>>, vector<1x4x128xbf16>
    %88 = vector.shape_cast %87 : vector<1x4x128xbf16> to vector<4x128xbf16>
    %cst_98 = arith.constant dense<0.000000e+00> : vector<64x128xf32>
    %89 = tpu.matmul %85, %88, %cst_98 {dimension_numbers = #tpu.dot_dimension_numbers<[1], [0], [0], [1], [0, 0, 1, 1], [], []>} : vector<64x4xbf16>, vector<4x128xbf16>, vector<64x128xf32> -> vector<64x128xf32>
    %90 = arith.addf %86, %89 : vector<64x128xf32>
    %c0_99 = arith.constant 0 : index
    %c0_100 = arith.constant 0 : index
    %91 = vector.load %arg5[%c0_99, %c0_100] : memref<64x128xf32, #tpu.memory_space<vmem>>, vector<64x128xf32>
    tpu.vector_store %arg5[%c0_99, %c0_100], %90 {strides = array<i32>} : memref<64x128xf32, #tpu.memory_space<vmem>>, vector<64x128xf32>,
    %c0_101 = arith.constant 0 : index
    %c0_102 = arith.constant 0 : index
    %92 = vector.load %arg5[%c0_101, %c0_102] : memref<64x128xf32, #tpu.memory_space<vmem>>, vector<64x128xf32>
    %c0_103 = arith.constant 0 : index
    %c0_104 = arith.constant 0 : index
    %93 = vector.load %arg3[%c0_103, %c0_104] : memref<1x128xf32, #tpu.memory_space<vmem>>, vector<1x128xf32>
    %94 = vector.broadcast %93 : vector<1x128xf32> to vector<64x128xf32>
    %95 = arith.addf %92, %94 : vector<64x128xf32>
    %cst_105 = arith.constant 0.000000e+00 : f32
    %96 = vector.broadcast %cst_105 : f32 to vector<64x128xf32>
    %97 = arith.maximumf %95, %96 : vector<64x128xf32>
    %cst_106 = arith.constant 0.000000e+00 : f32
    %98 = vector.broadcast %cst_106 : f32 to vector<1x10x10x128xf32>
    %c0_107 = arith.constant 0 : index
    %c0_108 = arith.constant 0 : index
    %c0_109 = arith.constant 0 : index
    %c0_110 = arith.constant 0 : index
    %99 = vector.load %arg4[%c0_107, %c0_108, %c0_109, %c0_110] : memref<1x10x10x128xf32, #tpu.memory_space<vmem>>, vector<1x10x10x128xf32>
    tpu.vector_store %arg4[%c0_107, %c0_108, %c0_109, %c0_110], %98 {strides = array<i32>} : memref<1x10x10x128xf32, #tpu.memory_space<vmem>>, vector<1x10x10x128xf32>,
    %100 = vector.shape_cast %97 : vector<64x128xf32> to vector<8x8x128xf32>
    %c0_111 = arith.constant 0 : index
    %c1_112 = arith.constant 1 : index
    %c1_113 = arith.constant 1 : index
    %c0_114 = arith.constant 0 : index
    %101 = vector.load %arg4[%c0_111, %c1_112, %c1_113, %c0_114] : memref<1x10x10x128xf32, #tpu.memory_space<vmem>>, vector<1x8x8x128xf32>
    %102 = vector.shape_cast %101 : vector<1x8x8x128xf32> to vector<8x8x128xf32>
    %103 = vector.shape_cast %100 : vector<8x8x128xf32> to vector<1x8x8x128xf32>
    tpu.vector_store %arg4[%c0_111, %c1_112, %c1_113, %c0_114], %103 {strides = array<i32>} : memref<1x10x10x128xf32, #tpu.memory_space<vmem>>, vector<1x8x8x128xf32>,
    return
  }
  func.func @transform_0(%arg0: i32) -> (i32, i32, i32, i32) {
    %c0_i32 = arith.constant 0 : i32
    %c0_i32_0 = arith.constant 0 : i32
    %c0_i32_1 = arith.constant 0 : i32
    %c0_i32_2 = arith.constant 0 : i32
    return %arg0, %c0_i32, %c0_i32_0, %c0_i32_1 : i32, i32, i32, i32
  }
  func.func @transform_1(%arg0: i32) -> (i32, i32, i32) {
    %c0_i32 = arith.constant 0 : i32
    %c0_i32_0 = arith.constant 0 : i32
    %c0_i32_1 = arith.constant 0 : i32
    %c0_i32_2 = arith.constant 0 : i32
    return %c0_i32, %c0_i32_0, %c0_i32_1 : i32, i32, i32
  }
  func.func @transform_2(%arg0: i32) -> (i32, i32) {
    %c0_i32 = arith.constant 0 : i32
    %c0_i32_0 = arith.constant 0 : i32
    %c0_i32_1 = arith.constant 0 : i32
    return %c0_i32, %c0_i32_0 : i32, i32
  }
  func.func @transform_3(%arg0: i32) -> (i32, i32, i32, i32) {
    %c0_i32 = arith.constant 0 : i32
    %c0_i32_0 = arith.constant 0 : i32
    %c0_i32_1 = arith.constant 0 : i32
    %c0_i32_2 = arith.constant 0 : i32
    return %arg0, %c0_i32, %c0_i32_0, %c0_i32_1 : i32, i32, i32, i32
  }
}

module attributes {stable_mosaic.version = 11 : i64} {
  func.func @_conv_bn_add_relu_kernel(%arg0: i32, %arg1: memref<1x10x10x128xf32, #tpu.memory_space<vmem>>, %arg2: memref<9x128x128xbf16, #tpu.memory_space<vmem>>, %arg3: memref<1x128xf32, #tpu.memory_space<vmem>>, %arg4: memref<1x8x8x4xbf16, #tpu.memory_space<vmem>>, %arg5: memref<4x128xbf16, #tpu.memory_space<vmem>>, %arg6: memref<1x128xf32, #tpu.memory_space<vmem>>, %arg7: memref<1x8x8x128xf32, #tpu.memory_space<vmem>>, %arg8: memref<64x128xf32, #tpu.memory_space<vmem>>) attributes {dimension_semantics = [#tpu.dimension_semantics<parallel>], iteration_bounds = array<i64: 2>, scalar_prefetch = 0 : i64, scratch_operands = 1 : i64, tpu.core_type = #tpu.core_type<tc>, window_params = [{transform_indices = @transform_0, window_bounds = array<i64: 1, 10, 10, 128>}, {pipeline_mode = #tpu.pipeline_mode<synchronous>, transform_indices = @transform_1, window_bounds = array<i64: 9, 128, 128>}, {pipeline_mode = #tpu.pipeline_mode<synchronous>, transform_indices = @transform_2, window_bounds = array<i64: 1, 128>}, {transform_indices = @transform_3, window_bounds = array<i64: 1, 8, 8, 4>}, {pipeline_mode = #tpu.pipeline_mode<synchronous>, transform_indices = @transform_4, window_bounds = array<i64: 4, 128>}, {pipeline_mode = #tpu.pipeline_mode<synchronous>, transform_indices = @transform_5, window_bounds = array<i64: 1, 128>}, {transform_indices = @transform_6, window_bounds = array<i64: 1, 8, 8, 128>}]} {
    %c0 = arith.constant 0 : index
    %c0_0 = arith.constant 0 : index
    %c0_1 = arith.constant 0 : index
    %c0_2 = arith.constant 0 : index
    %0 = vector.load %arg4[%c0, %c0_0, %c0_1, %c0_2] : memref<1x8x8x4xbf16, #tpu.memory_space<vmem>>, vector<1x8x8x4xbf16>
    %1 = vector.shape_cast %0 : vector<1x8x8x4xbf16> to vector<8x8x4xbf16>
    %2 = arith.extf %1 : vector<8x8x4xbf16> to vector<8x8x4xf32>
    %3 = vector.shape_cast %2 : vector<8x8x4xf32> to vector<64x4xf32>
    %4 = arith.truncf %3 : vector<64x4xf32> to vector<64x4xbf16>
    %c0_3 = arith.constant 0 : index
    %c0_4 = arith.constant 0 : index
    %5 = vector.load %arg5[%c0_3, %c0_4] : memref<4x128xbf16, #tpu.memory_space<vmem>>, vector<4x128xbf16>
    %cst = arith.constant dense<0.000000e+00> : vector<64x128xf32>
    %6 = tpu.matmul %4, %5, %cst {dimension_numbers = #tpu.dot_dimension_numbers<[1], [0], [0], [1], [0, 0, 1, 1], [], []>} : vector<64x4xbf16>, vector<4x128xbf16>, vector<64x128xf32> -> vector<64x128xf32>
    %c0_5 = arith.constant 0 : index
    %c0_6 = arith.constant 0 : index
    %7 = vector.load %arg6[%c0_5, %c0_6] : memref<1x128xf32, #tpu.memory_space<vmem>>, vector<1x128xf32>
    %8 = vector.broadcast %7 : vector<1x128xf32> to vector<64x128xf32>
    %9 = arith.addf %6, %8 : vector<64x128xf32>
    %c0_7 = arith.constant 0 : index
    %c0_8 = arith.constant 0 : index
    %10 = vector.load %arg8[%c0_7, %c0_8] : memref<64x128xf32, #tpu.memory_space<vmem>>, vector<64x128xf32>
    tpu.vector_store %arg8[%c0_7, %c0_8], %9 {strides = array<i32>} : memref<64x128xf32, #tpu.memory_space<vmem>>, vector<64x128xf32>,
    %c0_9 = arith.constant 0 : index
    %c0_10 = arith.constant 0 : index
    %c0_11 = arith.constant 0 : index
    %c0_12 = arith.constant 0 : index
    %11 = vector.load %arg1[%c0_9, %c0_10, %c0_11, %c0_12] : memref<1x10x10x128xf32, #tpu.memory_space<vmem>>, vector<1x8x8x128xf32>
    %12 = vector.shape_cast %11 : vector<1x8x8x128xf32> to vector<8x8x128xf32>
    %13 = vector.shape_cast %12 : vector<8x8x128xf32> to vector<64x128xf32>
    %14 = arith.truncf %13 : vector<64x128xf32> to vector<64x128xbf16>
    %c0_13 = arith.constant 0 : index
    %c0_14 = arith.constant 0 : index
    %15 = vector.load %arg8[%c0_13, %c0_14] : memref<64x128xf32, #tpu.memory_space<vmem>>, vector<64x128xf32>
    %c0_15 = arith.constant 0 : index
    %c0_16 = arith.constant 0 : index
    %c0_17 = arith.constant 0 : index
    %16 = vector.load %arg2[%c0_15, %c0_16, %c0_17] : memref<9x128x128xbf16, #tpu.memory_space<vmem>>, vector<1x128x128xbf16>
    %17 = vector.shape_cast %16 : vector<1x128x128xbf16> to vector<128x128xbf16>
    %cst_18 = arith.constant dense<0.000000e+00> : vector<64x128xf32>
    %18 = tpu.matmul %14, %17, %cst_18 {dimension_numbers = #tpu.dot_dimension_numbers<[1], [0], [0], [1], [0, 0, 1, 1], [], []>} : vector<64x128xbf16>, vector<128x128xbf16>, vector<64x128xf32> -> vector<64x128xf32>
    %19 = arith.addf %15, %18 : vector<64x128xf32>
    %c0_19 = arith.constant 0 : index
    %c0_20 = arith.constant 0 : index
    %20 = vector.load %arg8[%c0_19, %c0_20] : memref<64x128xf32, #tpu.memory_space<vmem>>, vector<64x128xf32>
    tpu.vector_store %arg8[%c0_19, %c0_20], %19 {strides = array<i32>} : memref<64x128xf32, #tpu.memory_space<vmem>>, vector<64x128xf32>,
    %c0_21 = arith.constant 0 : index
    %c0_22 = arith.constant 0 : index
    %c1 = arith.constant 1 : index
    %c0_23 = arith.constant 0 : index
    %21 = vector.load %arg1[%c0_21, %c0_22, %c1, %c0_23] : memref<1x10x10x128xf32, #tpu.memory_space<vmem>>, vector<1x8x8x128xf32>
    %22 = vector.shape_cast %21 : vector<1x8x8x128xf32> to vector<8x8x128xf32>
    %23 = vector.shape_cast %22 : vector<8x8x128xf32> to vector<64x128xf32>
    %24 = arith.truncf %23 : vector<64x128xf32> to vector<64x128xbf16>
    %c0_24 = arith.constant 0 : index
    %c0_25 = arith.constant 0 : index
    %25 = vector.load %arg8[%c0_24, %c0_25] : memref<64x128xf32, #tpu.memory_space<vmem>>, vector<64x128xf32>
    %c1_26 = arith.constant 1 : index
    %c0_27 = arith.constant 0 : index
    %c0_28 = arith.constant 0 : index
    %26 = vector.load %arg2[%c1_26, %c0_27, %c0_28] : memref<9x128x128xbf16, #tpu.memory_space<vmem>>, vector<1x128x128xbf16>
    %27 = vector.shape_cast %26 : vector<1x128x128xbf16> to vector<128x128xbf16>
    %cst_29 = arith.constant dense<0.000000e+00> : vector<64x128xf32>
    %28 = tpu.matmul %24, %27, %cst_29 {dimension_numbers = #tpu.dot_dimension_numbers<[1], [0], [0], [1], [0, 0, 1, 1], [], []>} : vector<64x128xbf16>, vector<128x128xbf16>, vector<64x128xf32> -> vector<64x128xf32>
    %29 = arith.addf %25, %28 : vector<64x128xf32>
    %c0_30 = arith.constant 0 : index
    %c0_31 = arith.constant 0 : index
    %30 = vector.load %arg8[%c0_30, %c0_31] : memref<64x128xf32, #tpu.memory_space<vmem>>, vector<64x128xf32>
    tpu.vector_store %arg8[%c0_30, %c0_31], %29 {strides = array<i32>} : memref<64x128xf32, #tpu.memory_space<vmem>>, vector<64x128xf32>,
    %c0_32 = arith.constant 0 : index
    %c0_33 = arith.constant 0 : index
    %c2 = arith.constant 2 : index
    %c0_34 = arith.constant 0 : index
    %31 = vector.load %arg1[%c0_32, %c0_33, %c2, %c0_34] : memref<1x10x10x128xf32, #tpu.memory_space<vmem>>, vector<1x8x8x128xf32>
    %32 = vector.shape_cast %31 : vector<1x8x8x128xf32> to vector<8x8x128xf32>
    %33 = vector.shape_cast %32 : vector<8x8x128xf32> to vector<64x128xf32>
    %34 = arith.truncf %33 : vector<64x128xf32> to vector<64x128xbf16>
    %c0_35 = arith.constant 0 : index
    %c0_36 = arith.constant 0 : index
    %35 = vector.load %arg8[%c0_35, %c0_36] : memref<64x128xf32, #tpu.memory_space<vmem>>, vector<64x128xf32>
    %c2_37 = arith.constant 2 : index
    %c0_38 = arith.constant 0 : index
    %c0_39 = arith.constant 0 : index
    %36 = vector.load %arg2[%c2_37, %c0_38, %c0_39] : memref<9x128x128xbf16, #tpu.memory_space<vmem>>, vector<1x128x128xbf16>
    %37 = vector.shape_cast %36 : vector<1x128x128xbf16> to vector<128x128xbf16>
    %cst_40 = arith.constant dense<0.000000e+00> : vector<64x128xf32>
    %38 = tpu.matmul %34, %37, %cst_40 {dimension_numbers = #tpu.dot_dimension_numbers<[1], [0], [0], [1], [0, 0, 1, 1], [], []>} : vector<64x128xbf16>, vector<128x128xbf16>, vector<64x128xf32> -> vector<64x128xf32>
    %39 = arith.addf %35, %38 : vector<64x128xf32>
    %c0_41 = arith.constant 0 : index
    %c0_42 = arith.constant 0 : index
    %40 = vector.load %arg8[%c0_41, %c0_42] : memref<64x128xf32, #tpu.memory_space<vmem>>, vector<64x128xf32>
    tpu.vector_store %arg8[%c0_41, %c0_42], %39 {strides = array<i32>} : memref<64x128xf32, #tpu.memory_space<vmem>>, vector<64x128xf32>,
    %c0_43 = arith.constant 0 : index
    %c1_44 = arith.constant 1 : index
    %c0_45 = arith.constant 0 : index
    %c0_46 = arith.constant 0 : index
    %41 = vector.load %arg1[%c0_43, %c1_44, %c0_45, %c0_46] : memref<1x10x10x128xf32, #tpu.memory_space<vmem>>, vector<1x8x8x128xf32>
    %42 = vector.shape_cast %41 : vector<1x8x8x128xf32> to vector<8x8x128xf32>
    %43 = vector.shape_cast %42 : vector<8x8x128xf32> to vector<64x128xf32>
    %44 = arith.truncf %43 : vector<64x128xf32> to vector<64x128xbf16>
    %c0_47 = arith.constant 0 : index
    %c0_48 = arith.constant 0 : index
    %45 = vector.load %arg8[%c0_47, %c0_48] : memref<64x128xf32, #tpu.memory_space<vmem>>, vector<64x128xf32>
    %c3 = arith.constant 3 : index
    %c0_49 = arith.constant 0 : index
    %c0_50 = arith.constant 0 : index
    %46 = vector.load %arg2[%c3, %c0_49, %c0_50] : memref<9x128x128xbf16, #tpu.memory_space<vmem>>, vector<1x128x128xbf16>
    %47 = vector.shape_cast %46 : vector<1x128x128xbf16> to vector<128x128xbf16>
    %cst_51 = arith.constant dense<0.000000e+00> : vector<64x128xf32>
    %48 = tpu.matmul %44, %47, %cst_51 {dimension_numbers = #tpu.dot_dimension_numbers<[1], [0], [0], [1], [0, 0, 1, 1], [], []>} : vector<64x128xbf16>, vector<128x128xbf16>, vector<64x128xf32> -> vector<64x128xf32>
    %49 = arith.addf %45, %48 : vector<64x128xf32>
    %c0_52 = arith.constant 0 : index
    %c0_53 = arith.constant 0 : index
    %50 = vector.load %arg8[%c0_52, %c0_53] : memref<64x128xf32, #tpu.memory_space<vmem>>, vector<64x128xf32>
    tpu.vector_store %arg8[%c0_52, %c0_53], %49 {strides = array<i32>} : memref<64x128xf32, #tpu.memory_space<vmem>>, vector<64x128xf32>,
    %c0_54 = arith.constant 0 : index
    %c1_55 = arith.constant 1 : index
    %c1_56 = arith.constant 1 : index
    %c0_57 = arith.constant 0 : index
    %51 = vector.load %arg1[%c0_54, %c1_55, %c1_56, %c0_57] : memref<1x10x10x128xf32, #tpu.memory_space<vmem>>, vector<1x8x8x128xf32>
    %52 = vector.shape_cast %51 : vector<1x8x8x128xf32> to vector<8x8x128xf32>
    %53 = vector.shape_cast %52 : vector<8x8x128xf32> to vector<64x128xf32>
    %54 = arith.truncf %53 : vector<64x128xf32> to vector<64x128xbf16>
    %c0_58 = arith.constant 0 : index
    %c0_59 = arith.constant 0 : index
    %55 = vector.load %arg8[%c0_58, %c0_59] : memref<64x128xf32, #tpu.memory_space<vmem>>, vector<64x128xf32>
    %c4 = arith.constant 4 : index
    %c0_60 = arith.constant 0 : index
    %c0_61 = arith.constant 0 : index
    %56 = vector.load %arg2[%c4, %c0_60, %c0_61] : memref<9x128x128xbf16, #tpu.memory_space<vmem>>, vector<1x128x128xbf16>
    %57 = vector.shape_cast %56 : vector<1x128x128xbf16> to vector<128x128xbf16>
    %cst_62 = arith.constant dense<0.000000e+00> : vector<64x128xf32>
    %58 = tpu.matmul %54, %57, %cst_62 {dimension_numbers = #tpu.dot_dimension_numbers<[1], [0], [0], [1], [0, 0, 1, 1], [], []>} : vector<64x128xbf16>, vector<128x128xbf16>, vector<64x128xf32> -> vector<64x128xf32>
    %59 = arith.addf %55, %58 : vector<64x128xf32>
    %c0_63 = arith.constant 0 : index
    %c0_64 = arith.constant 0 : index
    %60 = vector.load %arg8[%c0_63, %c0_64] : memref<64x128xf32, #tpu.memory_space<vmem>>, vector<64x128xf32>
    tpu.vector_store %arg8[%c0_63, %c0_64], %59 {strides = array<i32>} : memref<64x128xf32, #tpu.memory_space<vmem>>, vector<64x128xf32>,
    %c0_65 = arith.constant 0 : index
    %c1_66 = arith.constant 1 : index
    %c2_67 = arith.constant 2 : index
    %c0_68 = arith.constant 0 : index
    %61 = vector.load %arg1[%c0_65, %c1_66, %c2_67, %c0_68] : memref<1x10x10x128xf32, #tpu.memory_space<vmem>>, vector<1x8x8x128xf32>
    %62 = vector.shape_cast %61 : vector<1x8x8x128xf32> to vector<8x8x128xf32>
    %63 = vector.shape_cast %62 : vector<8x8x128xf32> to vector<64x128xf32>
    %64 = arith.truncf %63 : vector<64x128xf32> to vector<64x128xbf16>
    %c0_69 = arith.constant 0 : index
    %c0_70 = arith.constant 0 : index
    %65 = vector.load %arg8[%c0_69, %c0_70] : memref<64x128xf32, #tpu.memory_space<vmem>>, vector<64x128xf32>
    %c5 = arith.constant 5 : index
    %c0_71 = arith.constant 0 : index
    %c0_72 = arith.constant 0 : index
    %66 = vector.load %arg2[%c5, %c0_71, %c0_72] : memref<9x128x128xbf16, #tpu.memory_space<vmem>>, vector<1x128x128xbf16>
    %67 = vector.shape_cast %66 : vector<1x128x128xbf16> to vector<128x128xbf16>
    %cst_73 = arith.constant dense<0.000000e+00> : vector<64x128xf32>
    %68 = tpu.matmul %64, %67, %cst_73 {dimension_numbers = #tpu.dot_dimension_numbers<[1], [0], [0], [1], [0, 0, 1, 1], [], []>} : vector<64x128xbf16>, vector<128x128xbf16>, vector<64x128xf32> -> vector<64x128xf32>
    %69 = arith.addf %65, %68 : vector<64x128xf32>
    %c0_74 = arith.constant 0 : index
    %c0_75 = arith.constant 0 : index
    %70 = vector.load %arg8[%c0_74, %c0_75] : memref<64x128xf32, #tpu.memory_space<vmem>>, vector<64x128xf32>
    tpu.vector_store %arg8[%c0_74, %c0_75], %69 {strides = array<i32>} : memref<64x128xf32, #tpu.memory_space<vmem>>, vector<64x128xf32>,
    %c0_76 = arith.constant 0 : index
    %c2_77 = arith.constant 2 : index
    %c0_78 = arith.constant 0 : index
    %c0_79 = arith.constant 0 : index
    %71 = vector.load %arg1[%c0_76, %c2_77, %c0_78, %c0_79] : memref<1x10x10x128xf32, #tpu.memory_space<vmem>>, vector<1x8x8x128xf32>
    %72 = vector.shape_cast %71 : vector<1x8x8x128xf32> to vector<8x8x128xf32>
    %73 = vector.shape_cast %72 : vector<8x8x128xf32> to vector<64x128xf32>
    %74 = arith.truncf %73 : vector<64x128xf32> to vector<64x128xbf16>
    %c0_80 = arith.constant 0 : index
    %c0_81 = arith.constant 0 : index
    %75 = vector.load %arg8[%c0_80, %c0_81] : memref<64x128xf32, #tpu.memory_space<vmem>>, vector<64x128xf32>
    %c6 = arith.constant 6 : index
    %c0_82 = arith.constant 0 : index
    %c0_83 = arith.constant 0 : index
    %76 = vector.load %arg2[%c6, %c0_82, %c0_83] : memref<9x128x128xbf16, #tpu.memory_space<vmem>>, vector<1x128x128xbf16>
    %77 = vector.shape_cast %76 : vector<1x128x128xbf16> to vector<128x128xbf16>
    %cst_84 = arith.constant dense<0.000000e+00> : vector<64x128xf32>
    %78 = tpu.matmul %74, %77, %cst_84 {dimension_numbers = #tpu.dot_dimension_numbers<[1], [0], [0], [1], [0, 0, 1, 1], [], []>} : vector<64x128xbf16>, vector<128x128xbf16>, vector<64x128xf32> -> vector<64x128xf32>
    %79 = arith.addf %75, %78 : vector<64x128xf32>
    %c0_85 = arith.constant 0 : index
    %c0_86 = arith.constant 0 : index
    %80 = vector.load %arg8[%c0_85, %c0_86] : memref<64x128xf32, #tpu.memory_space<vmem>>, vector<64x128xf32>
    tpu.vector_store %arg8[%c0_85, %c0_86], %79 {strides = array<i32>} : memref<64x128xf32, #tpu.memory_space<vmem>>, vector<64x128xf32>,
    %c0_87 = arith.constant 0 : index
    %c2_88 = arith.constant 2 : index
    %c1_89 = arith.constant 1 : index
    %c0_90 = arith.constant 0 : index
    %81 = vector.load %arg1[%c0_87, %c2_88, %c1_89, %c0_90] : memref<1x10x10x128xf32, #tpu.memory_space<vmem>>, vector<1x8x8x128xf32>
    %82 = vector.shape_cast %81 : vector<1x8x8x128xf32> to vector<8x8x128xf32>
    %83 = vector.shape_cast %82 : vector<8x8x128xf32> to vector<64x128xf32>
    %84 = arith.truncf %83 : vector<64x128xf32> to vector<64x128xbf16>
    %c0_91 = arith.constant 0 : index
    %c0_92 = arith.constant 0 : index
    %85 = vector.load %arg8[%c0_91, %c0_92] : memref<64x128xf32, #tpu.memory_space<vmem>>, vector<64x128xf32>
    %c7 = arith.constant 7 : index
    %c0_93 = arith.constant 0 : index
    %c0_94 = arith.constant 0 : index
    %86 = vector.load %arg2[%c7, %c0_93, %c0_94] : memref<9x128x128xbf16, #tpu.memory_space<vmem>>, vector<1x128x128xbf16>
    %87 = vector.shape_cast %86 : vector<1x128x128xbf16> to vector<128x128xbf16>
    %cst_95 = arith.constant dense<0.000000e+00> : vector<64x128xf32>
    %88 = tpu.matmul %84, %87, %cst_95 {dimension_numbers = #tpu.dot_dimension_numbers<[1], [0], [0], [1], [0, 0, 1, 1], [], []>} : vector<64x128xbf16>, vector<128x128xbf16>, vector<64x128xf32> -> vector<64x128xf32>
    %89 = arith.addf %85, %88 : vector<64x128xf32>
    %c0_96 = arith.constant 0 : index
    %c0_97 = arith.constant 0 : index
    %90 = vector.load %arg8[%c0_96, %c0_97] : memref<64x128xf32, #tpu.memory_space<vmem>>, vector<64x128xf32>
    tpu.vector_store %arg8[%c0_96, %c0_97], %89 {strides = array<i32>} : memref<64x128xf32, #tpu.memory_space<vmem>>, vector<64x128xf32>,
    %c0_98 = arith.constant 0 : index
    %c2_99 = arith.constant 2 : index
    %c2_100 = arith.constant 2 : index
    %c0_101 = arith.constant 0 : index
    %91 = vector.load %arg1[%c0_98, %c2_99, %c2_100, %c0_101] : memref<1x10x10x128xf32, #tpu.memory_space<vmem>>, vector<1x8x8x128xf32>
    %92 = vector.shape_cast %91 : vector<1x8x8x128xf32> to vector<8x8x128xf32>
    %93 = vector.shape_cast %92 : vector<8x8x128xf32> to vector<64x128xf32>
    %94 = arith.truncf %93 : vector<64x128xf32> to vector<64x128xbf16>
    %c0_102 = arith.constant 0 : index
    %c0_103 = arith.constant 0 : index
    %95 = vector.load %arg8[%c0_102, %c0_103] : memref<64x128xf32, #tpu.memory_space<vmem>>, vector<64x128xf32>
    %c8 = arith.constant 8 : index
    %c0_104 = arith.constant 0 : index
    %c0_105 = arith.constant 0 : index
    %96 = vector.load %arg2[%c8, %c0_104, %c0_105] : memref<9x128x128xbf16, #tpu.memory_space<vmem>>, vector<1x128x128xbf16>
    %97 = vector.shape_cast %96 : vector<1x128x128xbf16> to vector<128x128xbf16>
    %cst_106 = arith.constant dense<0.000000e+00> : vector<64x128xf32>
    %98 = tpu.matmul %94, %97, %cst_106 {dimension_numbers = #tpu.dot_dimension_numbers<[1], [0], [0], [1], [0, 0, 1, 1], [], []>} : vector<64x128xbf16>, vector<128x128xbf16>, vector<64x128xf32> -> vector<64x128xf32>
    %99 = arith.addf %95, %98 : vector<64x128xf32>
    %c0_107 = arith.constant 0 : index
    %c0_108 = arith.constant 0 : index
    %100 = vector.load %arg8[%c0_107, %c0_108] : memref<64x128xf32, #tpu.memory_space<vmem>>, vector<64x128xf32>
    tpu.vector_store %arg8[%c0_107, %c0_108], %99 {strides = array<i32>} : memref<64x128xf32, #tpu.memory_space<vmem>>, vector<64x128xf32>,
    %c0_109 = arith.constant 0 : index
    %c0_110 = arith.constant 0 : index
    %101 = vector.load %arg8[%c0_109, %c0_110] : memref<64x128xf32, #tpu.memory_space<vmem>>, vector<64x128xf32>
    %c0_111 = arith.constant 0 : index
    %c0_112 = arith.constant 0 : index
    %102 = vector.load %arg3[%c0_111, %c0_112] : memref<1x128xf32, #tpu.memory_space<vmem>>, vector<1x128xf32>
    %103 = vector.broadcast %102 : vector<1x128xf32> to vector<64x128xf32>
    %104 = arith.addf %101, %103 : vector<64x128xf32>
    %cst_113 = arith.constant 0.000000e+00 : f32
    %105 = vector.broadcast %cst_113 : f32 to vector<64x128xf32>
    %106 = arith.maximumf %104, %105 : vector<64x128xf32>
    %107 = vector.shape_cast %106 : vector<64x128xf32> to vector<1x8x8x128xf32>
    %c0_114 = arith.constant 0 : index
    %c0_115 = arith.constant 0 : index
    %c0_116 = arith.constant 0 : index
    %c0_117 = arith.constant 0 : index
    %108 = vector.load %arg7[%c0_114, %c0_115, %c0_116, %c0_117] : memref<1x8x8x128xf32, #tpu.memory_space<vmem>>, vector<1x8x8x128xf32>
    tpu.vector_store %arg7[%c0_114, %c0_115, %c0_116, %c0_117], %107 {strides = array<i32>} : memref<1x8x8x128xf32, #tpu.memory_space<vmem>>, vector<1x8x8x128xf32>,
    return
  }
  func.func @transform_0(%arg0: i32) -> (i32, i32, i32, i32) {
    %c0_i32 = arith.constant 0 : i32
    %c0_i32_0 = arith.constant 0 : i32
    %c0_i32_1 = arith.constant 0 : i32
    %c0_i32_2 = arith.constant 0 : i32
    return %arg0, %c0_i32, %c0_i32_0, %c0_i32_1 : i32, i32, i32, i32
  }
  func.func @transform_1(%arg0: i32) -> (i32, i32, i32) {
    %c0_i32 = arith.constant 0 : i32
    %c0_i32_0 = arith.constant 0 : i32
    %c0_i32_1 = arith.constant 0 : i32
    %c0_i32_2 = arith.constant 0 : i32
    return %c0_i32, %c0_i32_0, %c0_i32_1 : i32, i32, i32
  }
  func.func @transform_2(%arg0: i32) -> (i32, i32) {
    %c0_i32 = arith.constant 0 : i32
    %c0_i32_0 = arith.constant 0 : i32
    %c0_i32_1 = arith.constant 0 : i32
    return %c0_i32, %c0_i32_0 : i32, i32
  }
  func.func @transform_3(%arg0: i32) -> (i32, i32, i32, i32) {
    %c0_i32 = arith.constant 0 : i32
    %c0_i32_0 = arith.constant 0 : i32
    %c0_i32_1 = arith.constant 0 : i32
    %c0_i32_2 = arith.constant 0 : i32
    return %arg0, %c0_i32, %c0_i32_0, %c0_i32_1 : i32, i32, i32, i32
  }
  func.func @transform_4(%arg0: i32) -> (i32, i32) {
    %c0_i32 = arith.constant 0 : i32
    %c0_i32_0 = arith.constant 0 : i32
    %c0_i32_1 = arith.constant 0 : i32
    return %c0_i32, %c0_i32_0 : i32, i32
  }
  func.func @transform_5(%arg0: i32) -> (i32, i32) {
    %c0_i32 = arith.constant 0 : i32
    %c0_i32_0 = arith.constant 0 : i32
    %c0_i32_1 = arith.constant 0 : i32
    return %c0_i32, %c0_i32_0 : i32, i32
  }
  func.func @transform_6(%arg0: i32) -> (i32, i32, i32, i32) {
    %c0_i32 = arith.constant 0 : i32
    %c0_i32_0 = arith.constant 0 : i32
    %c0_i32_1 = arith.constant 0 : i32
    %c0_i32_2 = arith.constant 0 : i32
    return %arg0, %c0_i32, %c0_i32_0, %c0_i32_1 : i32, i32, i32, i32
  }
}

</mosaic_0001>

<llo_original>
// kernel: basic_block_forward.2
$region0: #{basic_block_forward.2}
  #allocation0 [shape = 'u32[]', space=smem, size = 0x4, offset = 0x4, fixed_abs, tag = 'smem constant byte address 0x4 - core index']
  #allocation1 [shape = 'u32[144,128]{1,0:T(1,128)}', space=vmem, size = 0x12000, scoped, tag = 'internal scratch']
  #allocation2 [shape = 'f32[64,128]{1,0:T(8,128)}', space=vmem, size = 0x8000, scoped, tag = 'scratch operand']
  %s0 = inlined_call_operand.vmem [shape: f32[8,9,9,4], index: 0, kind: input, shape index: {}]
  %s1 = inlined_call_operand.vmem [shape: bf16[9,4,128], index: 1, kind: input, shape index: {}]
  %s2 = inlined_call_operand.vmem [shape: f32[1,128], index: 2, kind: input, shape index: {}]
  %s3 = inlined_call_operand.vmem [shape: f32[2,10,10,128], index: 3, kind: output, shape index: {}]
  %s4 = sld [smem:[#allocation0]]
  $region45: #{basic_block_forward.2} parent=0
    _
  %s6 = ssub.s32 1, %s4
  %s7 = scalar_select 0, %s6, %s4
  loop: start=0, step=1, limit=4
  $region2: #{basic_block_forward.2} parent=0 // loop_pre_header
    _
  $region3: #{basic_block_forward.2} parent=0 // loop_header
    %s9 = sphi 0, %s13
    %p10 = scmp.ge.s32.totalorder %s9, 4
    %s19 = sphi 0, %s21
    %s22 = sphi 0, %s19
    %s23 = sphi 0, %s22
    %s39 = sphi 0, %s23
    %s43 = sphi 0, %s43
    %s45 = sphi 0, %s43
    %s46 = sphi 0, %s45
    %s60 = sphi 0, %s46
    %s64 = sphi 0, %s64
    %s66 = sphi 0, %s64
    %s67 = sphi 0, %s66
    %s81 = sphi 0, %s67
    %s87 = sphi 0, %s89
    %s90 = sphi 0, %s87
    %s91 = sphi 0, %s90
    %s107 = sphi 0, %s91
  $region4: #{basic_block_forward.2} parent=0 // loop_header_branch
    %12 = sbr.rel (%p10) target = $region8
  $region5: #{basic_block_forward.2} parent=0 // loop_body
    %s14 = ssub.s32 %s9, 1
    %s15 = ssub.s32 %s9, 2
    %s16 = sadd.s32 %s9, 1
    %s17 = ssub.s32 %s9, %s16
    %p18 = scmp.eq.s32.totalorder %s17, 0
    %s20 = sadd.s32 %s19, 1
    %s21 = scalar_select %p18, %s19, %s20
    %p24 = pneg %p18
    %p25 = scmp.eq.s32.totalorder %s9, 1
    %p26 = por %p24, %p25
    %p27 = scmp.ne.s32.totalorder %s19, %s22
    %p28 = scmp.eq.s32.totalorder %s9, 0
    %p29 = por %p27, %p28
    %p30 = scmp.ne.s32.totalorder %s19, %s22
    %p31 = scmp.eq.s32.totalorder %s14, 1
    %p32 = por %p30, %p31
    %p33 = scmp.ne.s32.totalorder %s22, %s23
    %p34 = scmp.eq.s32.totalorder %s14, 0
    %p35 = por %p33, %p34
    %p36 = scmp.ne.s32.totalorder %s22, %s23
    %p37 = scmp.eq.s32.totalorder %s15, 1
    %p38 = por %p36, %p37
    %p40 = scmp.ne.s32.totalorder %s23, %s39
    %p41 = scmp.eq.s32.totalorder %s15, 0
    %p42 = por %p40, %p41
    %s44 = sadd.s32 %s43, 1
    %p47 = scmp.eq.s32.totalorder %s9, 1
    %p48 = scmp.ne.s32.totalorder %s43, %s45
    %p49 = scmp.eq.s32.totalorder %s9, 0
    %p50 = por %p48, %p49
    %p51 = scmp.ne.s32.totalorder %s43, %s45
    %p52 = scmp.eq.s32.totalorder %s14, 1
    %p53 = por %p51, %p52
    %p54 = scmp.ne.s32.totalorder %s45, %s46
    %p55 = scmp.eq.s32.totalorder %s14, 0
    %p56 = por %p54, %p55
    %p57 = scmp.ne.s32.totalorder %s45, %s46
    %p58 = scmp.eq.s32.totalorder %s15, 1
    %p59 = por %p57, %p58
    %p61 = scmp.ne.s32.totalorder %s46, %s60
    %p62 = scmp.eq.s32.totalorder %s15, 0
    %p63 = por %p61, %p62
    %s65 = sadd.s32 %s64, 1
    %p68 = scmp.eq.s32.totalorder %s9, 1
    %p69 = scmp.ne.s32.totalorder %s64, %s66
    %p70 = scmp.eq.s32.totalorder %s9, 0
    %p71 = por %p69, %p70
    %p72 = scmp.ne.s32.totalorder %s64, %s66
    %p73 = scmp.eq.s32.totalorder %s14, 1
    %p74 = por %p72, %p73
    %p75 = scmp.ne.s32.totalorder %s66, %s67
    %p76 = scmp.eq.s32.totalorder %s14, 0
    %p77 = por %p75, %p76
    %p78 = scmp.ne.s32.totalorder %s66, %s67
    %p79 = scmp.eq.s32.totalorder %s15, 1
    %p80 = por %p78, %p79
    %p82 = scmp.ne.s32.totalorder %s67, %s81
    %p83 = scmp.eq.s32.totalorder %s15, 0
    %p84 = por %p82, %p83
    %s85 = ssub.s32 %s9, %s16
    %p86 = scmp.eq.s32.totalorder %s85, 0
    %s88 = sadd.s32 %s87, 1
    %s89 = scalar_select %p86, %s87, %s88
    %p92 = pneg %p86
    %p93 = scmp.eq.s32.totalorder %s9, 1
    %p94 = por %p92, %p93
    %p95 = scmp.ne.s32.totalorder %s87, %s90
    %p96 = scmp.eq.s32.totalorder %s9, 0
    %p97 = por %p95, %p96
    %p98 = scmp.ne.s32.totalorder %s87, %s90
    %p99 = scmp.eq.s32.totalorder %s14, 1
    %p100 = por %p98, %p99
    %p101 = scmp.ne.s32.totalorder %s90, %s91
    %p102 = scmp.eq.s32.totalorder %s14, 0
    %p103 = por %p101, %p102
    %p104 = scmp.ne.s32.totalorder %s90, %s91
    %p105 = scmp.eq.s32.totalorder %s15, 1
    %p106 = por %p104, %p105
    %p108 = scmp.ne.s32.totalorder %s91, %s107
    %p109 = scmp.eq.s32.totalorder %s15, 0
    %p110 = por %p108, %p109
    %p111 = scmp.le.s32.totalorder 1, %s9
    %p112 = scmp.lt.s32.totalorder %s9, 3
    %p113 = pnand %p111, %p112
    %p114 = pneg %p113
    // Predicated region
    $region9: #{basic_block_forward.2} parent=5 // pred_check
      _
    $region10: #{basic_block_forward.2} parent=5 // pred_check_branch
      %116 = sbr.rel (%p113) target = $region12
    $region11: #{basic_block_forward.2} parent=5 // pred_region
      %s117 = ssub.s32 %s9, 1
      // Predicated region
      $region13: #{basic_block_forward.2} parent=11 // pred_check
        %p118 = pneg %p56
      $region14: #{basic_block_forward.2} parent=11 // pred_check_branch
        %120 = sbr.rel (%p118) target = $region16
      $region15: #{basic_block_forward.2} parent=11 // pred_region
        _
      $region16: #{basic_block_forward.2} parent=11 // pred_fallthru
        _
      // Predicated region
      $region17: #{basic_block_forward.2} parent=11 // pred_check
        %p121 = pneg %p77
      $region18: #{basic_block_forward.2} parent=11 // pred_check_branch
        %123 = sbr.rel (%p121) target = $region20
      $region19: #{basic_block_forward.2} parent=11 // pred_region
        _
      $region20: #{basic_block_forward.2} parent=11 // pred_fallthru
        _
    $region12: #{basic_block_forward.2} parent=5 // pred_fallthru
      _
    %p124 = scmp.lt.s32.totalorder %s9, 2
    // Predicated region
    $region21: #{basic_block_forward.2} parent=5 // pred_check
      %p125 = pneg %p124
    $region22: #{basic_block_forward.2} parent=5 // pred_check_branch
      %127 = sbr.rel (%p125) target = $region24
    $region23: #{basic_block_forward.2} parent=5 // pred_region
      // Predicated region
      $region25: #{basic_block_forward.2} parent=23 // pred_check
        %p128 = pneg %p29
      $region26: #{basic_block_forward.2} parent=23 // pred_check_branch
        %130 = sbr.rel (%p128) target = $region28
      $region27: #{basic_block_forward.2} parent=23 // pred_region
        %s131 = smul.u32 4, %s9
        %p132 = scmp.lt.s32.totalorder %s131, 7
        %s133 = scalar_select %p132, %s131, 7
        %s134 = smul.addr %s133, 18
        %s135 = smul.addr %s134, 8
        %s136 = scalar_lea.vmem %s0, %s135
        %s137 = smul.u32 4, %s9
      $region28: #{basic_block_forward.2} parent=23 // pred_fallthru
        _
    $region24: #{basic_block_forward.2} parent=5 // pred_fallthru
      _
    %p138 = scmp.le.s32.totalorder 1, %s9
    %p139 = scmp.lt.s32.totalorder %s9, 3
    %p140 = pnand %p138, %p139
    %p141 = pneg %p140
    // Predicated region
    $region29: #{basic_block_forward.2} parent=5 // pred_check
      _
    $region30: #{basic_block_forward.2} parent=5 // pred_check_branch
      %143 = sbr.rel (%p140) target = $region32
    $region31: #{basic_block_forward.2} parent=5 // pred_region
      %s144 = ssub.s32 %s9, 1
      %s145 = smul.u32 4, %s14
      %p146 = scmp.lt.s32.totalorder %s145, 7
      %s147 = scalar_select %p146, %s145, 7
      %s148 = smul.addr %s147, 18
      %s149 = smul.addr %s148, 8
      %s150 = scalar_lea.vmem %s0, %s149
      %p151 = pneg %p35
      %p152 = pneg %p32
      %p153 = pneg %p56
      %p154 = pneg %p53
      %p155 = pneg %p77
      %p156 = pneg %p74
      %p157 = pneg %p103
      %p158 = pneg %p100
      %p159 = scmp.lt.s32.totalorder %s14, 1
      %s160 = scalar_select %p159, %s14, 1
      %s161 = smul.addr %s160, 20
      %s162 = smul.addr %s161, 8
      %s163 = scalar_lea.vmem %s3, %s162
      %s164 = smul.u32 4, %s14
      %p165 = scmp.lt.s32.totalorder %s164, 7
      %s166 = scalar_select %p165, %s164, 7
      %s167 = smul.addr %s166, 18
      %s168 = smul.addr %s167, 8
      %s169 = scalar_lea.vmem %s0, %s168
      %s170 = smul.u32 4, %s14
      %p171 = scmp.lt.s32.totalorder %s14, 1
      %s172 = scalar_select %p171, %s14, 1
      %s173 = smul.addr %s172, 20
      %s174 = smul.addr %s173, 8
      %s175 = scalar_lea.vmem %s3, %s174
      %177 = vst [vmem:[#allocation2] sm:$0xff] 0.0
      %178 = vst [vmem:[#allocation2 + $0x8] sm:$0xff] 0.0
      %179 = vst [vmem:[#allocation2 + $0x10] sm:$0xff] 0.0
      %180 = vst [vmem:[#allocation2 + $0x18] sm:$0xff] 0.0
      %181 = vst [vmem:[#allocation2 + $0x20] sm:$0xff] 0.0
      %182 = vst [vmem:[#allocation2 + $0x28] sm:$0xff] 0.0
      %183 = vst [vmem:[#allocation2 + $0x30] sm:$0xff] 0.0
      %184 = vst [vmem:[#allocation2 + $0x38] sm:$0xff] 0.0
      %v185 = vld [vmem:[%s169] sm:$0xff]
      %v186 = vld [vmem:[%s169 + $0x10] sm:$0xff]
      %v187 = vld [vmem:[%s169 + $0x20] sm:$0xff]
      %v188 = vld [vmem:[%s169 + $0x30] sm:$0xff]
      %v189 = vld [vmem:[%s169 + $0x40] sm:$0xff]
      %v190 = vld [vmem:[%s169 + $0x50] sm:$0xff]
      %v191 = vld [vmem:[%s169 + $0x60] sm:$0xff]
      %v192 = vld [vmem:[%s169 + $0x70] sm:$0xff]
      %v193 = vpack.c.bf16 %v186, %v185
      %v194 = vpack.c.bf16 %v188, %v187
      %v195 = vpack.c.bf16 %v190, %v189
      %v196 = vpack.c.bf16 %v192, %v191
      %v197 = vld [vmem:[#allocation2] sm:$0xff]
      %v198 = vld [vmem:[#allocation2 + $0x8] sm:$0xff]
      %v199 = vld [vmem:[#allocation2 + $0x10] sm:$0xff]
      %v200 = vld [vmem:[#allocation2 + $0x18] sm:$0xff]
      %v201 = vld [vmem:[#allocation2 + $0x20] sm:$0xff]
      %v202 = vld [vmem:[#allocation2 + $0x28] sm:$0xff]
      %v203 = vld [vmem:[#allocation2 + $0x30] sm:$0xff]
      %v204 = vld [vmem:[#allocation2 + $0x38] sm:$0xff]
      %v205 = vld [vmem:[%s1] sm:$0x3]
      %vm206 = vcmask 31744
      %v208 = vsel %vm206, %v193, 0
      %v211 = vsel %vm206, %v194, 0
      %v214 = vsel %vm206, %v195, 0
      %v217 = vsel %vm206, %v196, 0
      %vm219 = vcmask 1041408
      %v221 = vsel %vm219, %v205, 0
      %223 = vmatprep.subr.bf16.mxu0 0
      %224 = vmatpush1.bf16.msra.mxu0 %v221
      %225 = vmatprep.subr.bf16.mxu0 0
      %226 = vmatpush1.bf16.msra.mxu0 0
      %227 = vmatprep.subr.bf16.mxu0 0
      %228 = vmatpush1.bf16.msra.mxu0 0
      %229 = vmatprep.subr.bf16.mxu0 0
      %230 = vmatpush1.bf16.msra.mxu0 0
      %231 = vmatprep.subr.bf16.mxu0 0
      %232 = vmatpush1.bf16.msra.mxu0 0
      %233 = vmatprep.subr.bf16.mxu0 0
      %234 = vmatpush1.bf16.msra.mxu0 0
      %235 = vmatprep.subr.bf16.mxu0 0
      %236 = vmatpush1.bf16.msra.mxu0 0
      %237 = vmatprep.subr.bf16.mxu0 0
      %238 = vmatpush1.bf16.msra.mxu0 0
      %239 = vmatprep.subr.bf16.mxu0 0
      %240 = vmatpush1.bf16.msra.mxu0 0
      %241 = vmatprep.subr.bf16.mxu0 0
      %242 = vmatpush1.bf16.msra.mxu0 0
      %243 = vmatprep.subr.bf16.mxu0 0
      %244 = vmatpush1.bf16.msra.mxu0 0
      %245 = vmatprep.subr.bf16.mxu0 0
      %246 = vmatpush1.bf16.msra.mxu0 0
      %247 = vmatprep.subr.bf16.mxu0 0
      %248 = vmatpush1.bf16.msra.mxu0 0
      %249 = vmatprep.subr.bf16.mxu0 0
      %250 = vmatpush1.bf16.msra.mxu0 0
      %251 = vmatprep.subr.bf16.mxu0 0
      %252 = vmatpush1.bf16.msra.mxu0 0
      %253 = vmatprep.subr.bf16.mxu0 0
      %254 = vmatpush1.bf16.msra.mxu0 0
      %255 = vmatprep.mubr.bf16.mxu0 0
      %256 = vmatmul.mubr.bf16.gmra.mrb[0].mxu0 %v208
      %v257 = vpop.f32.mrb[0].mxu0
      %v258 = vadd.f32 0.0, %v257
      %v259 = vpop.f32.mrb[0].mxu0
      %v260 = vpop.f32.mrb[0].mxu0
      %v261 = vadd.f32 0.0, %v260
      %v262 = vpop.f32.mrb[0].mxu0
      %263 = vmatprep.mubr.bf16.mxu0 0
      %264 = vmatmul.mubr.bf16.gmra.mrb[0].mxu0 %v211
      %v265 = vpop.f32.mrb[0].mxu0
      %v266 = vadd.f32 0.0, %v265
      %v267 = vpop.f32.mrb[0].mxu0
      %v268 = vpop.f32.mrb[0].mxu0
      %v269 = vadd.f32 0.0, %v268
      %v270 = vpop.f32.mrb[0].mxu0
      %271 = vmatprep.mubr.bf16.mxu0 0
      %272 = vmatmul.mubr.bf16.gmra.mrb[0].mxu0 %v214
      %v273 = vpop.f32.mrb[0].mxu0
      %v274 = vadd.f32 0.0, %v273
      %v275 = vpop.f32.mrb[0].mxu0
      %v276 = vpop.f32.mrb[0].mxu0
      %v277 = vadd.f32 0.0, %v276
      %v278 = vpop.f32.mrb[0].mxu0
      %279 = vmatprep.mubr.bf16.mxu0 0
      %280 = vmatmul.mubr.bf16.gmra.mrb[0].mxu0 %v217
      %v281 = vpop.f32.mrb[0].mxu0
      %v282 = vadd.f32 0.0, %v281
      %v283 = vpop.f32.mrb[0].mxu0
      %v284 = vpop.f32.mrb[0].mxu0
      %v285 = vadd.f32 0.0, %v284
      %v286 = vpop.f32.mrb[0].mxu0
      %287 = vdwg.mxu0
      %v288 = vadd.f32 %v197, %v258
      %v289 = vadd.f32 %v198, %v261
      %v290 = vadd.f32 %v199, %v266
      %v291 = vadd.f32 %v200, %v269
      %v292 = vadd.f32 %v201, %v274
      %v293 = vadd.f32 %v202, %v277
      %v294 = vadd.f32 %v203, %v282
      %v295 = vadd.f32 %v204, %v285
      %296 = vst [vmem:[#allocation2] sm:$0xff] %v288
      %297 = vst [vmem:[#allocation2 + $0x8] sm:$0xff] %v289
      %298 = vst [vmem:[#allocation2 + $0x10] sm:$0xff] %v290
      %299 = vst [vmem:[#allocation2 + $0x18] sm:$0xff] %v291
      %300 = vst [vmem:[#allocation2 + $0x20] sm:$0xff] %v292
      %301 = vst [vmem:[#allocation2 + $0x28] sm:$0xff] %v293
      %302 = vst [vmem:[#allocation2 + $0x30] sm:$0xff] %v294
      %303 = vst [vmem:[#allocation2 + $0x38] sm:$0xff] %v295
      %s304 = scalar_lea.vmem %s169, 144
      %v305 = vld [vmem:[%s304] sm:$0xff]
      %v306 = vld [vmem:[%s304 + $0x10] sm:$0xff]
      %v307 = vld [vmem:[%s304 + $0x20] sm:$0xff]
      %v308 = vld [vmem:[%s304 + $0x30] sm:$0xff]
      %v309 = vld [vmem:[%s304 + $0x40] sm:$0xff]
      %v310 = vld [vmem:[%s304 + $0x50] sm:$0xff]
      %v311 = vld [vmem:[%s304 + $0x60] sm:$0xff]
      %v312 = vld [vmem:[%s304 + $0x70] sm:$0xff]
      %v313 = vpack.c.bf16 %v306, %v305
      %v314 = vpack.c.bf16 %v308, %v307
      %v315 = vpack.c.bf16 %v310, %v309
      %v316 = vpack.c.bf16 %v312, %v311
      %v317 = vld [vmem:[#allocation2] sm:$0xff]
      %v318 = vld [vmem:[#allocation2 + $0x8] sm:$0xff]
      %v319 = vld [vmem:[#allocation2 + $0x10] sm:$0xff]
      %v320 = vld [vmem:[#allocation2 + $0x18] sm:$0xff]
      %v321 = vld [vmem:[#allocation2 + $0x20] sm:$0xff]
      %v322 = vld [vmem:[#allocation2 + $0x28] sm:$0xff]
      %v323 = vld [vmem:[#allocation2 + $0x30] sm:$0xff]
      %v324 = vld [vmem:[#allocation2 + $0x38] sm:$0xff]
      %s325 = scalar_lea.vmem %s1, 2
      %v326 = vld [vmem:[%s325] sm:$0x3]
      %v328 = vsel %vm206, %v313, 0
      %v331 = vsel %vm206, %v314, 0
      %v334 = vsel %vm206, %v315, 0
      %v337 = vsel %vm206, %v316, 0
      %v340 = vsel %vm219, %v326, 0
      %342 = vmatprep.subr.bf16.mxu0 0
      %343 = vmatpush1.bf16.msra.mxu0 %v340
      %344 = vmatprep.subr.bf16.mxu0 0
      %345 = vmatpush1.bf16.msra.mxu0 0
      %346 = vmatprep.subr.bf16.mxu0 0
      %347 = vmatpush1.bf16.msra.mxu0 0
      %348 = vmatprep.subr.bf16.mxu0 0
      %349 = vmatpush1.bf16.msra.mxu0 0
      %350 = vmatprep.subr.bf16.mxu0 0
      %351 = vmatpush1.bf16.msra.mxu0 0
      %352 = vmatprep.subr.bf16.mxu0 0
      %353 = vmatpush1.bf16.msra.mxu0 0
      %354 = vmatprep.subr.bf16.mxu0 0
      %355 = vmatpush1.bf16.msra.mxu0 0
      %356 = vmatprep.subr.bf16.mxu0 0
      %357 = vmatpush1.bf16.msra.mxu0 0
      %358 = vmatprep.subr.bf16.mxu0 0
      %359 = vmatpush1.bf16.msra.mxu0 0
      %360 = vmatprep.subr.bf16.mxu0 0
      %361 = vmatpush1.bf16.msra.mxu0 0
      %362 = vmatprep.subr.bf16.mxu0 0
      %363 = vmatpush1.bf16.msra.mxu0 0
      %364 = vmatprep.subr.bf16.mxu0 0
      %365 = vmatpush1.bf16.msra.mxu0 0
      %366 = vmatprep.subr.bf16.mxu0 0
      %367 = vmatpush1.bf16.msra.mxu0 0
      %368 = vmatprep.subr.bf16.mxu0 0
      %369 = vmatpush1.bf16.msra.mxu0 0
      %370 = vmatprep.subr.bf16.mxu0 0
      %371 = vmatpush1.bf16.msra.mxu0 0
      %372 = vmatprep.subr.bf16.mxu0 0
      %373 = vmatpush1.bf16.msra.mxu0 0
      %374 = vmatprep.mubr.bf16.mxu0 0
      %375 = vmatmul.mubr.bf16.gmra.mrb[0].mxu0 %v328
      %v376 = vpop.f32.mrb[0].mxu0
      %v377 = vadd.f32 0.0, %v376
      %v378 = vpop.f32.mrb[0].mxu0
      %v379 = vpop.f32.mrb[0].mxu0
      %v380 = vadd.f32 0.0, %v379
      %v381 = vpop.f32.mrb[0].mxu0
      %382 = vmatprep.mubr.bf16.mxu0 0
      %383 = vmatmul.mubr.bf16.gmra.mrb[0].mxu0 %v331
      %v384 = vpop.f32.mrb[0].mxu0
      %v385 = vadd.f32 0.0, %v384
      %v386 = vpop.f32.mrb[0].mxu0
      %v387 = vpop.f32.mrb[0].mxu0
      %v388 = vadd.f32 0.0, %v387
      %v389 = vpop.f32.mrb[0].mxu0
      %390 = vmatprep.mubr.bf16.mxu0 0
      %391 = vmatmul.mubr.bf16.gmra.mrb[0].mxu0 %v334
      %v392 = vpop.f32.mrb[0].mxu0
      %v393 = vadd.f32 0.0, %v392
      %v394 = vpop.f32.mrb[0].mxu0
      %v395 = vpop.f32.mrb[0].mxu0
      %v396 = vadd.f32 0.0, %v395
      %v397 = vpop.f32.mrb[0].mxu0
      %398 = vmatprep.mubr.bf16.mxu0 0
      %399 = vmatmul.mubr.bf16.gmra.mrb[0].mxu0 %v337
      %v400 = vpop.f32.mrb[0].mxu0
      %v401 = vadd.f32 0.0, %v400
      %v402 = vpop.f32.mrb[0].mxu0
      %v403 = vpop.f32.mrb[0].mxu0
      %v404 = vadd.f32 0.0, %v403
      %v405 = vpop.f32.mrb[0].mxu0
      %406 = vdwg.mxu0
      %v407 = vadd.f32 %v317, %v377
      %v408 = vadd.f32 %v318, %v380
      %v409 = vadd.f32 %v319, %v385
      %v410 = vadd.f32 %v320, %v388
      %v411 = vadd.f32 %v321, %v393
      %v412 = vadd.f32 %v322, %v396
      %v413 = vadd.f32 %v323, %v401
      %v414 = vadd.f32 %v324, %v404
      %415 = vst [vmem:[#allocation2] sm:$0xff] %v407
      %416 = vst [vmem:[#allocation2 + $0x8] sm:$0xff] %v408
      %417 = vst [vmem:[#allocation2 + $0x10] sm:$0xff] %v409
      %418 = vst [vmem:[#allocation2 + $0x18] sm:$0xff] %v410
      %419 = vst [vmem:[#allocation2 + $0x20] sm:$0xff] %v411
      %420 = vst [vmem:[#allocation2 + $0x28] sm:$0xff] %v412
      %421 = vst [vmem:[#allocation2 + $0x30] sm:$0xff] %v413
      %422 = vst [vmem:[#allocation2 + $0x38] sm:$0xff] %v414
      %v423 = vld [vmem:[%s169 + $0x1] sm:$0xff]
      %v424 = vld [vmem:[%s169 + $0x11] sm:$0xff]
      %v425 = vld [vmem:[%s169 + $0x21] sm:$0xff]
      %v426 = vld [vmem:[%s169 + $0x31] sm:$0xff]
      %v427 = vld [vmem:[%s169 + $0x41] sm:$0xff]
      %v428 = vld [vmem:[%s169 + $0x51] sm:$0xff]
      %v429 = vld [vmem:[%s169 + $0x61] sm:$0xff]
      %v430 = vld [vmem:[%s169 + $0x71] sm:$0xff]
      %v431 = vpack.c.bf16 %v424, %v423
      %v432 = vpack.c.bf16 %v426, %v425
      %v433 = vpack.c.bf16 %v428, %v427
      %v434 = vpack.c.bf16 %v430, %v429
      %v435 = vld [vmem:[#allocation2] sm:$0xff]
      %v436 = vld [vmem:[#allocation2 + $0x8] sm:$0xff]
      %v437 = vld [vmem:[#allocation2 + $0x10] sm:$0xff]
      %v438 = vld [vmem:[#allocation2 + $0x18] sm:$0xff]
      %v439 = vld [vmem:[#allocation2 + $0x20] sm:$0xff]
      %v440 = vld [vmem:[#allocation2 + $0x28] sm:$0xff]
      %v441 = vld [vmem:[#allocation2 + $0x30] sm:$0xff]
      %v442 = vld [vmem:[#allocation2 + $0x38] sm:$0xff]
      %s443 = scalar_lea.vmem %s1, 4
      %v444 = vld [vmem:[%s443] sm:$0x3]
      %v446 = vsel %vm206, %v431, 0
      %v449 = vsel %vm206, %v432, 0
      %v452 = vsel %vm206, %v433, 0
      %v455 = vsel %vm206, %v434, 0
      %v458 = vsel %vm219, %v444, 0
      %460 = vmatprep.subr.bf16.mxu0 0
      %461 = vmatpush1.bf16.msra.mxu0 %v458
      %462 = vmatprep.subr.bf16.mxu0 0
      %463 = vmatpush1.bf16.msra.mxu0 0
      %464 = vmatprep.subr.bf16.mxu0 0
      %465 = vmatpush1.bf16.msra.mxu0 0
      %466 = vmatprep.subr.bf16.mxu0 0
      %467 = vmatpush1.bf16.msra.mxu0 0
      %468 = vmatprep.subr.bf16.mxu0 0
      %469 = vmatpush1.bf16.msra.mxu0 0
      %470 = vmatprep.subr.bf16.mxu0 0
      %471 = vmatpush1.bf16.msra.mxu0 0
      %472 = vmatprep.subr.bf16.mxu0 0
      %473 = vmatpush1.bf16.msra.mxu0 0
      %474 = vmatprep.subr.bf16.mxu0 0
      %475 = vmatpush1.bf16.msra.mxu0 0
      %476 = vmatprep.subr.bf16.mxu0 0
      %477 = vmatpush1.bf16.msra.mxu0 0
      %478 = vmatprep.subr.bf16.mxu0 0
      %479 = vmatpush1.bf16.msra.mxu0 0
      %480 = vmatprep.subr.bf16.mxu0 0
      %481 = vmatpush1.bf16.msra.mxu0 0
      %482 = vmatprep.subr.bf16.mxu0 0
      %483 = vmatpush1.bf16.msra.mxu0 0
      %484 = vmatprep.subr.bf16.mxu0 0
      %485 = vmatpush1.bf16.msra.mxu0 0
      %486 = vmatprep.subr.bf16.mxu0 0
      %487 = vmatpush1.bf16.msra.mxu0 0
      %488 = vmatprep.subr.bf16.mxu0 0
      %489 = vmatpush1.bf16.msra.mxu0 0
      %490 = vmatprep.subr.bf16.mxu0 0
      %491 = vmatpush1.bf16.msra.mxu0 0
      %492 = vmatprep.mubr.bf16.mxu0 0
      %493 = vmatmul.mubr.bf16.gmra.mrb[0].mxu0 %v446
      %v494 = vpop.f32.mrb[0].mxu0
      %v495 = vadd.f32 0.0, %v494
      %v496 = vpop.f32.mrb[0].mxu0
      %v497 = vpop.f32.mrb[0].mxu0
      %v498 = vadd.f32 0.0, %v497
      %v499 = vpop.f32.mrb[0].mxu0
      %500 = vmatprep.mubr.bf16.mxu0 0
      %501 = vmatmul.mubr.bf16.gmra.mrb[0].mxu0 %v449
      %v502 = vpop.f32.mrb[0].mxu0
      %v503 = vadd.f32 0.0, %v502
      %v504 = vpop.f32.mrb[0].mxu0
      %v505 = vpop.f32.mrb[0].mxu0
      %v506 = vadd.f32 0.0, %v505
      %v507 = vpop.f32.mrb[0].mxu0
      %508 = vmatprep.mubr.bf16.mxu0 0
      %509 = vmatmul.mubr.bf16.gmra.mrb[0].mxu0 %v452
      %v510 = vpop.f32.mrb[0].mxu0
      %v511 = vadd.f32 0.0, %v510
      %v512 = vpop.f32.mrb[0].mxu0
      %v513 = vpop.f32.mrb[0].mxu0
      %v514 = vadd.f32 0.0, %v513
      %v515 = vpop.f32.mrb[0].mxu0
      %516 = vmatprep.mubr.bf16.mxu0 0
      %517 = vmatmul.mubr.bf16.gmra.mrb[0].mxu0 %v455
      %v518 = vpop.f32.mrb[0].mxu0
      %v519 = vadd.f32 0.0, %v518
      %v520 = vpop.f32.mrb[0].mxu0
      %v521 = vpop.f32.mrb[0].mxu0
      %v522 = vadd.f32 0.0, %v521
      %v523 = vpop.f32.mrb[0].mxu0
      %524 = vdwg.mxu0
      %v525 = vadd.f32 %v435, %v495
      %v526 = vadd.f32 %v436, %v498
      %v527 = vadd.f32 %v437, %v503
      %v528 = vadd.f32 %v438, %v506
      %v529 = vadd.f32 %v439, %v511
      %v530 = vadd.f32 %v440, %v514
      %v531 = vadd.f32 %v441, %v519
      %v532 = vadd.f32 %v442, %v522
      %533 = vst [vmem:[#allocation2] sm:$0xff] %v525
      %534 = vst [vmem:[#allocation2 + $0x8] sm:$0xff] %v526
      %535 = vst [vmem:[#allocation2 + $0x10] sm:$0xff] %v527
      %536 = vst [vmem:[#allocation2 + $0x18] sm:$0xff] %v528
      %537 = vst [vmem:[#allocation2 + $0x20] sm:$0xff] %v529
      %538 = vst [vmem:[#allocation2 + $0x28] sm:$0xff] %v530
      %539 = vst [vmem:[#allocation2 + $0x30] sm:$0xff] %v531
      %540 = vst [vmem:[#allocation2 + $0x38] sm:$0xff] %v532
      %s541 = scalar_lea.vmem %s169, 288
      %v542 = vld [vmem:[%s541] sm:$0xff]
      %v543 = vld [vmem:[%s541 + $0x10] sm:$0xff]
      %v544 = vld [vmem:[%s541 + $0x20] sm:$0xff]
      %v545 = vld [vmem:[%s541 + $0x30] sm:$0xff]
      %v546 = vld [vmem:[%s541 + $0x40] sm:$0xff]
      %v547 = vld [vmem:[%s541 + $0x50] sm:$0xff]
      %v548 = vld [vmem:[%s541 + $0x60] sm:$0xff]
      %v549 = vld [vmem:[%s541 + $0x70] sm:$0xff]
      %v550 = vpack.c.bf16 %v543, %v542
      %v551 = vpack.c.bf16 %v545, %v544
      %v552 = vpack.c.bf16 %v547, %v546
      %v553 = vpack.c.bf16 %v549, %v548
      %v554 = vld [vmem:[#allocation2] sm:$0xff]
      %v555 = vld [vmem:[#allocation2 + $0x8] sm:$0xff]
      %v556 = vld [vmem:[#allocation2 + $0x10] sm:$0xff]
      %v557 = vld [vmem:[#allocation2 + $0x18] sm:$0xff]
      %v558 = vld [vmem:[#allocation2 + $0x20] sm:$0xff]
      %v559 = vld [vmem:[#allocation2 + $0x28] sm:$0xff]
      %v560 = vld [vmem:[#allocation2 + $0x30] sm:$0xff]
      %v561 = vld [vmem:[#allocation2 + $0x38] sm:$0xff]
      %s562 = scalar_lea.vmem %s1, 6
      %v563 = vld [vmem:[%s562] sm:$0x3]
      %v565 = vsel %vm206, %v550, 0
      %v568 = vsel %vm206, %v551, 0
      %v571 = vsel %vm206, %v552, 0
      %v574 = vsel %vm206, %v553, 0
      %v577 = vsel %vm219, %v563, 0
      %579 = vmatprep.subr.bf16.mxu0 0
      %580 = vmatpush1.bf16.msra.mxu0 %v577
      %581 = vmatprep.subr.bf16.mxu0 0
      %582 = vmatpush1.bf16.msra.mxu0 0
      %583 = vmatprep.subr.bf16.mxu0 0
      %584 = vmatpush1.bf16.msra.mxu0 0
      %585 = vmatprep.subr.bf16.mxu0 0
      %586 = vmatpush1.bf16.msra.mxu0 0
      %587 = vmatprep.subr.bf16.mxu0 0
      %588 = vmatpush1.bf16.msra.mxu0 0
      %589 = vmatprep.subr.bf16.mxu0 0
      %590 = vmatpush1.bf16.msra.mxu0 0
      %591 = vmatprep.subr.bf16.mxu0 0
      %592 = vmatpush1.bf16.msra.mxu0 0
      %593 = vmatprep.subr.bf16.mxu0 0
      %594 = vmatpush1.bf16.msra.mxu0 0
      %595 = vmatprep.subr.bf16.mxu0 0
      %596 = vmatpush1.bf16.msra.mxu0 0
      %597 = vmatprep.subr.bf16.mxu0 0
      %598 = vmatpush1.bf16.msra.mxu0 0
      %599 = vmatprep.subr.bf16.mxu0 0
      %600 = vmatpush1.bf16.msra.mxu0 0
      %601 = vmatprep.subr.bf16.mxu0 0
      %602 = vmatpush1.bf16.msra.mxu0 0
      %603 = vmatprep.subr.bf16.mxu0 0
      %604 = vmatpush1.bf16.msra.mxu0 0
      %605 = vmatprep.subr.bf16.mxu0 0
      %606 = vmatpush1.bf16.msra.mxu0 0
      %607 = vmatprep.subr.bf16.mxu0 0
      %608 = vmatpush1.bf16.msra.mxu0 0
      %609 = vmatprep.subr.bf16.mxu0 0
      %610 = vmatpush1.bf16.msra.mxu0 0
      %611 = vmatprep.mubr.bf16.mxu0 0
      %612 = vmatmul.mubr.bf16.gmra.mrb[0].mxu0 %v565
      %v613 = vpop.f32.mrb[0].mxu0
      %v614 = vadd.f32 0.0, %v613
      %v615 = vpop.f32.mrb[0].mxu0
      %v616 = vpop.f32.mrb[0].mxu0
      %v617 = vadd.f32 0.0, %v616
      %v618 = vpop.f32.mrb[0].mxu0
      %619 = vmatprep.mubr.bf16.mxu0 0
      %620 = vmatmul.mubr.bf16.gmra.mrb[0].mxu0 %v568
      %v621 = vpop.f32.mrb[0].mxu0
      %v622 = vadd.f32 0.0, %v621
      %v623 = vpop.f32.mrb[0].mxu0
      %v624 = vpop.f32.mrb[0].mxu0
      %v625 = vadd.f32 0.0, %v624
      %v626 = vpop.f32.mrb[0].mxu0
      %627 = vmatprep.mubr.bf16.mxu0 0
      %628 = vmatmul.mubr.bf16.gmra.mrb[0].mxu0 %v571
      %v629 = vpop.f32.mrb[0].mxu0
      %v630 = vadd.f32 0.0, %v629
      %v631 = vpop.f32.mrb[0].mxu0
      %v632 = vpop.f32.mrb[0].mxu0
      %v633 = vadd.f32 0.0, %v632
      %v634 = vpop.f32.mrb[0].mxu0
      %635 = vmatprep.mubr.bf16.mxu0 0
      %636 = vmatmul.mubr.bf16.gmra.mrb[0].mxu0 %v574
      %v637 = vpop.f32.mrb[0].mxu0
      %v638 = vadd.f32 0.0, %v637
      %v639 = vpop.f32.mrb[0].mxu0
      %v640 = vpop.f32.mrb[0].mxu0
      %v641 = vadd.f32 0.0, %v640
      %v642 = vpop.f32.mrb[0].mxu0
      %643 = vdwg.mxu0
      %v644 = vadd.f32 %v554, %v614
      %v645 = vadd.f32 %v555, %v617
      %v646 = vadd.f32 %v556, %v622
      %v647 = vadd.f32 %v557, %v625
      %v648 = vadd.f32 %v558, %v630
      %v649 = vadd.f32 %v559, %v633
      %v650 = vadd.f32 %v560, %v638
      %v651 = vadd.f32 %v561, %v641
      %652 = vst [vmem:[#allocation2] sm:$0xff] %v644
      %653 = vst [vmem:[#allocation2 + $0x8] sm:$0xff] %v645
      %654 = vst [vmem:[#allocation2 + $0x10] sm:$0xff] %v646
      %655 = vst [vmem:[#allocation2 + $0x18] sm:$0xff] %v647
      %656 = vst [vmem:[#allocation2 + $0x20] sm:$0xff] %v648
      %657 = vst [vmem:[#allocation2 + $0x28] sm:$0xff] %v649
      %658 = vst [vmem:[#allocation2 + $0x30] sm:$0xff] %v650
      %659 = vst [vmem:[#allocation2 + $0x38] sm:$0xff] %v651
      %s660 = scalar_lea.vmem %s169, 432
      %v661 = vld [vmem:[%s660] sm:$0xff]
      %v662 = vld [vmem:[%s660 + $0x10] sm:$0xff]
      %v663 = vld [vmem:[%s660 + $0x20] sm:$0xff]
      %v664 = vld [vmem:[%s660 + $0x30] sm:$0xff]
      %v665 = vld [vmem:[%s660 + $0x40] sm:$0xff]
      %v666 = vld [vmem:[%s660 + $0x50] sm:$0xff]
      %v667 = vld [vmem:[%s660 + $0x60] sm:$0xff]
      %v668 = vld [vmem:[%s660 + $0x70] sm:$0xff]
      %v669 = vpack.c.bf16 %v662, %v661
      %v670 = vpack.c.bf16 %v664, %v663
      %v671 = vpack.c.bf16 %v666, %v665
      %v672 = vpack.c.bf16 %v668, %v667
      %v673 = vld [vmem:[#allocation2] sm:$0xff]
      %v674 = vld [vmem:[#allocation2 + $0x8] sm:$0xff]
      %v675 = vld [vmem:[#allocation2 + $0x10] sm:$0xff]
      %v676 = vld [vmem:[#allocation2 + $0x18] sm:$0xff]
      %v677 = vld [vmem:[#allocation2 + $0x20] sm:$0xff]
      %v678 = vld [vmem:[#allocation2 + $0x28] sm:$0xff]
      %v679 = vld [vmem:[#allocation2 + $0x30] sm:$0xff]
      %v680 = vld [vmem:[#allocation2 + $0x38] sm:$0xff]
      %s681 = scalar_lea.vmem %s1, 8
      %v682 = vld [vmem:[%s681] sm:$0x3]
      %v684 = vsel %vm206, %v669, 0
      %v687 = vsel %vm206, %v670, 0
      %v690 = vsel %vm206, %v671, 0
      %v693 = vsel %vm206, %v672, 0
      %v696 = vsel %vm219, %v682, 0
      %698 = vmatprep.subr.bf16.mxu0 0
      %699 = vmatpush1.bf16.msra.mxu0 %v696
      %700 = vmatprep.subr.bf16.mxu0 0
      %701 = vmatpush1.bf16.msra.mxu0 0
      %702 = vmatprep.subr.bf16.mxu0 0
      %703 = vmatpush1.bf16.msra.mxu0 0
      %704 = vmatprep.subr.bf16.mxu0 0
      %705 = vmatpush1.bf16.msra.mxu0 0
      %706 = vmatprep.subr.bf16.mxu0 0
      %707 = vmatpush1.bf16.msra.mxu0 0
      %708 = vmatprep.subr.bf16.mxu0 0
      %709 = vmatpush1.bf16.msra.mxu0 0
      %710 = vmatprep.subr.bf16.mxu0 0
      %711 = vmatpush1.bf16.msra.mxu0 0
      %712 = vmatprep.subr.bf16.mxu0 0
      %713 = vmatpush1.bf16.msra.mxu0 0
      %714 = vmatprep.subr.bf16.mxu0 0
      %715 = vmatpush1.bf16.msra.mxu0 0
      %716 = vmatprep.subr.bf16.mxu0 0
      %717 = vmatpush1.bf16.msra.mxu0 0
      %718 = vmatprep.subr.bf16.mxu0 0
      %719 = vmatpush1.bf16.msra.mxu0 0
      %720 = vmatprep.subr.bf16.mxu0 0
      %721 = vmatpush1.bf16.msra.mxu0 0
      %722 = vmatprep.subr.bf16.mxu0 0
      %723 = vmatpush1.bf16.msra.mxu0 0
      %724 = vmatprep.subr.bf16.mxu0 0
      %725 = vmatpush1.bf16.msra.mxu0 0
      %726 = vmatprep.subr.bf16.mxu0 0
      %727 = vmatpush1.bf16.msra.mxu0 0
      %728 = vmatprep.subr.bf16.mxu0 0
      %729 = vmatpush1.bf16.msra.mxu0 0
      %730 = vmatprep.mubr.bf16.mxu0 0
      %731 = vmatmul.mubr.bf16.gmra.mrb[0].mxu0 %v684
      %v732 = vpop.f32.mrb[0].mxu0
      %v733 = vadd.f32 0.0, %v732
      %v734 = vpop.f32.mrb[0].mxu0
      %v735 = vpop.f32.mrb[0].mxu0
      %v736 = vadd.f32 0.0, %v735
      %v737 = vpop.f32.mrb[0].mxu0
      %738 = vmatprep.mubr.bf16.mxu0 0
      %739 = vmatmul.mubr.bf16.gmra.mrb[0].mxu0 %v687
      %v740 = vpop.f32.mrb[0].mxu0
      %v741 = vadd.f32 0.0, %v740
      %v742 = vpop.f32.mrb[0].mxu0
      %v743 = vpop.f32.mrb[0].mxu0
      %v744 = vadd.f32 0.0, %v743
      %v745 = vpop.f32.mrb[0].mxu0
      %746 = vmatprep.mubr.bf16.mxu0 0
      %747 = vmatmul.mubr.bf16.gmra.mrb[0].mxu0 %v690
      %v748 = vpop.f32.mrb[0].mxu0
      %v749 = vadd.f32 0.0, %v748
      %v750 = vpop.f32.mrb[0].mxu0
      %v751 = vpop.f32.mrb[0].mxu0
      %v752 = vadd.f32 0.0, %v751
      %v753 = vpop.f32.mrb[0].mxu0
      %754 = vmatprep.mubr.bf16.mxu0 0
      %755 = vmatmul.mubr.bf16.gmra.mrb[0].mxu0 %v693
      %v756 = vpop.f32.mrb[0].mxu0
      %v757 = vadd.f32 0.0, %v756
      %v758 = vpop.f32.mrb[0].mxu0
      %v759 = vpop.f32.mrb[0].mxu0
      %v760 = vadd.f32 0.0, %v759
      %v761 = vpop.f32.mrb[0].mxu0
      %762 = vdwg.mxu0
      %v763 = vadd.f32 %v673, %v733
      %v764 = vadd.f32 %v674, %v736
      %v765 = vadd.f32 %v675, %v741
      %v766 = vadd.f32 %v676, %v744
      %v767 = vadd.f32 %v677, %v749
      %v768 = vadd.f32 %v678, %v752
      %v769 = vadd.f32 %v679, %v757
      %v770 = vadd.f32 %v680, %v760
      %771 = vst [vmem:[#allocation2] sm:$0xff] %v763
      %772 = vst [vmem:[#allocation2 + $0x8] sm:$0xff] %v764
      %773 = vst [vmem:[#allocation2 + $0x10] sm:$0xff] %v765
      %774 = vst [vmem:[#allocation2 + $0x18] sm:$0xff] %v766
      %775 = vst [vmem:[#allocation2 + $0x20] sm:$0xff] %v767
      %776 = vst [vmem:[#allocation2 + $0x28] sm:$0xff] %v768
      %777 = vst [vmem:[#allocation2 + $0x30] sm:$0xff] %v769
      %778 = vst [vmem:[#allocation2 + $0x38] sm:$0xff] %v770
      %v779 = vld [vmem:[%s541 + $0x1] sm:$0xff]
      %v780 = vld [vmem:[%s541 + $0x11] sm:$0xff]
      %v781 = vld [vmem:[%s541 + $0x21] sm:$0xff]
      %v782 = vld [vmem:[%s541 + $0x31] sm:$0xff]
      %v783 = vld [vmem:[%s541 + $0x41] sm:$0xff]
      %v784 = vld [vmem:[%s541 + $0x51] sm:$0xff]
      %v785 = vld [vmem:[%s541 + $0x61] sm:$0xff]
      %v786 = vld [vmem:[%s541 + $0x71] sm:$0xff]
      %v787 = vpack.c.bf16 %v780, %v779
      %v788 = vpack.c.bf16 %v782, %v781
      %v789 = vpack.c.bf16 %v784, %v783
      %v790 = vpack.c.bf16 %v786, %v785
      %v791 = vld [vmem:[#allocation2] sm:$0xff]
      %v792 = vld [vmem:[#allocation2 + $0x8] sm:$0xff]
      %v793 = vld [vmem:[#allocation2 + $0x10] sm:$0xff]
      %v794 = vld [vmem:[#allocation2 + $0x18] sm:$0xff]
      %v795 = vld [vmem:[#allocation2 + $0x20] sm:$0xff]
      %v796 = vld [vmem:[#allocation2 + $0x28] sm:$0xff]
      %v797 = vld [vmem:[#allocation2 + $0x30] sm:$0xff]
      %v798 = vld [vmem:[#allocation2 + $0x38] sm:$0xff]
      %s799 = scalar_lea.vmem %s1, 10
      %v800 = vld [vmem:[%s799] sm:$0x3]
      %v802 = vsel %vm206, %v787, 0
      %v805 = vsel %vm206, %v788, 0
      %v808 = vsel %vm206, %v789, 0
      %v811 = vsel %vm206, %v790, 0
      %v814 = vsel %vm219, %v800, 0
      %816 = vmatprep.subr.bf16.mxu0 0
      %817 = vmatpush1.bf16.msra.mxu0 %v814
      %818 = vmatprep.subr.bf16.mxu0 0
      %819 = vmatpush1.bf16.msra.mxu0 0
      %820 = vmatprep.subr.bf16.mxu0 0
      %821 = vmatpush1.bf16.msra.mxu0 0
      %822 = vmatprep.subr.bf16.mxu0 0
      %823 = vmatpush1.bf16.msra.mxu0 0
      %824 = vmatprep.subr.bf16.mxu0 0
      %825 = vmatpush1.bf16.msra.mxu0 0
      %826 = vmatprep.subr.bf16.mxu0 0
      %827 = vmatpush1.bf16.msra.mxu0 0
      %828 = vmatprep.subr.bf16.mxu0 0
      %829 = vmatpush1.bf16.msra.mxu0 0
      %830 = vmatprep.subr.bf16.mxu0 0
      %831 = vmatpush1.bf16.msra.mxu0 0
      %832 = vmatprep.subr.bf16.mxu0 0
      %833 = vmatpush1.bf16.msra.mxu0 0
      %834 = vmatprep.subr.bf16.mxu0 0
      %835 = vmatpush1.bf16.msra.mxu0 0
      %836 = vmatprep.subr.bf16.mxu0 0
      %837 = vmatpush1.bf16.msra.mxu0 0
      %838 = vmatprep.subr.bf16.mxu0 0
      %839 = vmatpush1.bf16.msra.mxu0 0
      %840 = vmatprep.subr.bf16.mxu0 0
      %841 = vmatpush1.bf16.msra.mxu0 0
      %842 = vmatprep.subr.bf16.mxu0 0
      %843 = vmatpush1.bf16.msra.mxu0 0
      %844 = vmatprep.subr.bf16.mxu0 0
      %845 = vmatpush1.bf16.msra.mxu0 0
      %846 = vmatprep.subr.bf16.mxu0 0
      %847 = vmatpush1.bf16.msra.mxu0 0
      %848 = vmatprep.mubr.bf16.mxu0 0
      %849 = vmatmul.mubr.bf16.gmra.mrb[0].mxu0 %v802
      %v850 = vpop.f32.mrb[0].mxu0
      %v851 = vadd.f32 0.0, %v850
      %v852 = vpop.f32.mrb[0].mxu0
      %v853 = vpop.f32.mrb[0].mxu0
      %v854 = vadd.f32 0.0, %v853
      %v855 = vpop.f32.mrb[0].mxu0
      %856 = vmatprep.mubr.bf16.mxu0 0
      %857 = vmatmul.mubr.bf16.gmra.mrb[0].mxu0 %v805
      %v858 = vpop.f32.mrb[0].mxu0
      %v859 = vadd.f32 0.0, %v858
      %v860 = vpop.f32.mrb[0].mxu0
      %v861 = vpop.f32.mrb[0].mxu0
      %v862 = vadd.f32 0.0, %v861
      %v863 = vpop.f32.mrb[0].mxu0
      %864 = vmatprep.mubr.bf16.mxu0 0
      %865 = vmatmul.mubr.bf16.gmra.mrb[0].mxu0 %v808
      %v866 = vpop.f32.mrb[0].mxu0
      %v867 = vadd.f32 0.0, %v866
      %v868 = vpop.f32.mrb[0].mxu0
      %v869 = vpop.f32.mrb[0].mxu0
      %v870 = vadd.f32 0.0, %v869
      %v871 = vpop.f32.mrb[0].mxu0
      %872 = vmatprep.mubr.bf16.mxu0 0
      %873 = vmatmul.mubr.bf16.gmra.mrb[0].mxu0 %v811
      %v874 = vpop.f32.mrb[0].mxu0
      %v875 = vadd.f32 0.0, %v874
      %v876 = vpop.f32.mrb[0].mxu0
      %v877 = vpop.f32.mrb[0].mxu0
      %v878 = vadd.f32 0.0, %v877
      %v879 = vpop.f32.mrb[0].mxu0
      %880 = vdwg.mxu0
      %v881 = vadd.f32 %v791, %v851
      %v882 = vadd.f32 %v792, %v854
      %v883 = vadd.f32 %v793, %v859
      %v884 = vadd.f32 %v794, %v862
      %v885 = vadd.f32 %v795, %v867
      %v886 = vadd.f32 %v796, %v870
      %v887 = vadd.f32 %v797, %v875
      %v888 = vadd.f32 %v798, %v878
      %889 = vst [vmem:[#allocation2] sm:$0xff] %v881
      %890 = vst [vmem:[#allocation2 + $0x8] sm:$0xff] %v882
      %891 = vst [vmem:[#allocation2 + $0x10] sm:$0xff] %v883
      %892 = vst [vmem:[#allocation2 + $0x18] sm:$0xff] %v884
      %893 = vst [vmem:[#allocation2 + $0x20] sm:$0xff] %v885
      %894 = vst [vmem:[#allocation2 + $0x28] sm:$0xff] %v886
      %895 = vst [vmem:[#allocation2 + $0x30] sm:$0xff] %v887
      %896 = vst [vmem:[#allocation2 + $0x38] sm:$0xff] %v888
      %s897 = scalar_lea.vmem %s169, 16
      %v898 = vld [vmem:[%s897] sm:$0xff]
      %v899 = vld [vmem:[%s897 + $0x10] sm:$0xff]
      %v900 = vld [vmem:[%s897 + $0x20] sm:$0xff]
      %v901 = vld [vmem:[%s897 + $0x30] sm:$0xff]
      %v902 = vld [vmem:[%s897 + $0x40] sm:$0xff]
      %v903 = vld [vmem:[%s897 + $0x50] sm:$0xff]
      %v904 = vld [vmem:[%s897 + $0x60] sm:$0xff]
      %v905 = vld [vmem:[%s897 + $0x70] sm:$0xff]
      %v906 = vpack.c.bf16 %v899, %v898
      %v907 = vpack.c.bf16 %v901, %v900
      %v908 = vpack.c.bf16 %v903, %v902
      %v909 = vpack.c.bf16 %v905, %v904
      %v910 = vld [vmem:[#allocation2] sm:$0xff]
      %v911 = vld [vmem:[#allocation2 + $0x8] sm:$0xff]
      %v912 = vld [vmem:[#allocation2 + $0x10] sm:$0xff]
      %v913 = vld [vmem:[#allocation2 + $0x18] sm:$0xff]
      %v914 = vld [vmem:[#allocation2 + $0x20] sm:$0xff]
      %v915 = vld [vmem:[#allocation2 + $0x28] sm:$0xff]
      %v916 = vld [vmem:[#allocation2 + $0x30] sm:$0xff]
      %v917 = vld [vmem:[#allocation2 + $0x38] sm:$0xff]
      %s918 = scalar_lea.vmem %s1, 12
      %v919 = vld [vmem:[%s918] sm:$0x3]
      %v921 = vsel %vm206, %v906, 0
      %v924 = vsel %vm206, %v907, 0
      %v927 = vsel %vm206, %v908, 0
      %v930 = vsel %vm206, %v909, 0
      %v933 = vsel %vm219, %v919, 0
      %935 = vmatprep.subr.bf16.mxu0 0
      %936 = vmatpush1.bf16.msra.mxu0 %v933
      %937 = vmatprep.subr.bf16.mxu0 0
      %938 = vmatpush1.bf16.msra.mxu0 0
      %939 = vmatprep.subr.bf16.mxu0 0
      %940 = vmatpush1.bf16.msra.mxu0 0
      %941 = vmatprep.subr.bf16.mxu0 0
      %942 = vmatpush1.bf16.msra.mxu0 0
      %943 = vmatprep.subr.bf16.mxu0 0
      %944 = vmatpush1.bf16.msra.mxu0 0
      %945 = vmatprep.subr.bf16.mxu0 0
      %946 = vmatpush1.bf16.msra.mxu0 0
      %947 = vmatprep.subr.bf16.mxu0 0
      %948 = vmatpush1.bf16.msra.mxu0 0
      %949 = vmatprep.subr.bf16.mxu0 0
      %950 = vmatpush1.bf16.msra.mxu0 0
      %951 = vmatprep.subr.bf16.mxu0 0
      %952 = vmatpush1.bf16.msra.mxu0 0
      %953 = vmatprep.subr.bf16.mxu0 0
      %954 = vmatpush1.bf16.msra.mxu0 0
      %955 = vmatprep.subr.bf16.mxu0 0
      %956 = vmatpush1.bf16.msra.mxu0 0
      %957 = vmatprep.subr.bf16.mxu0 0
      %958 = vmatpush1.bf16.msra.mxu0 0
      %959 = vmatprep.subr.bf16.mxu0 0
      %960 = vmatpush1.bf16.msra.mxu0 0
      %961 = vmatprep.subr.bf16.mxu0 0
      %962 = vmatpush1.bf16.msra.mxu0 0
      %963 = vmatprep.subr.bf16.mxu0 0
      %964 = vmatpush1.bf16.msra.mxu0 0
      %965 = vmatprep.subr.bf16.mxu0 0
      %966 = vmatpush1.bf16.msra.mxu0 0
      %967 = vmatprep.mubr.bf16.mxu0 0
      %968 = vmatmul.mubr.bf16.gmra.mrb[0].mxu0 %v921
      %v969 = vpop.f32.mrb[0].mxu0
      %v970 = vadd.f32 0.0, %v969
      %v971 = vpop.f32.mrb[0].mxu0
      %v972 = vpop.f32.mrb[0].mxu0
      %v973 = vadd.f32 0.0, %v972
      %v974 = vpop.f32.mrb[0].mxu0
      %975 = vmatprep.mubr.bf16.mxu0 0
      %976 = vmatmul.mubr.bf16.gmra.mrb[0].mxu0 %v924
      %v977 = vpop.f32.mrb[0].mxu0
      %v978 = vadd.f32 0.0, %v977
      %v979 = vpop.f32.mrb[0].mxu0
      %v980 = vpop.f32.mrb[0].mxu0
      %v981 = vadd.f32 0.0, %v980
      %v982 = vpop.f32.mrb[0].mxu0
      %983 = vmatprep.mubr.bf16.mxu0 0
      %984 = vmatmul.mubr.bf16.gmra.mrb[0].mxu0 %v927
      %v985 = vpop.f32.mrb[0].mxu0
      %v986 = vadd.f32 0.0, %v985
      %v987 = vpop.f32.mrb[0].mxu0
      %v988 = vpop.f32.mrb[0].mxu0
      %v989 = vadd.f32 0.0, %v988
      %v990 = vpop.f32.mrb[0].mxu0
      %991 = vmatprep.mubr.bf16.mxu0 0
      %992 = vmatmul.mubr.bf16.gmra.mrb[0].mxu0 %v930
      %v993 = vpop.f32.mrb[0].mxu0
      %v994 = vadd.f32 0.0, %v993
      %v995 = vpop.f32.mrb[0].mxu0
      %v996 = vpop.f32.mrb[0].mxu0
      %v997 = vadd.f32 0.0, %v996
      %v998 = vpop.f32.mrb[0].mxu0
      %999 = vdwg.mxu0
      %v1000 = vadd.f32 %v910, %v970
      %v1001 = vadd.f32 %v911, %v973
      %v1002 = vadd.f32 %v912, %v978
      %v1003 = vadd.f32 %v913, %v981
      %v1004 = vadd.f32 %v914, %v986
      %v1005 = vadd.f32 %v915, %v989
      %v1006 = vadd.f32 %v916, %v994
      %v1007 = vadd.f32 %v917, %v997
      %1008 = vst [vmem:[#allocation2] sm:$0xff] %v1000
      %1009 = vst [vmem:[#allocation2 + $0x8] sm:$0xff] %v1001
      %1010 = vst [vmem:[#allocation2 + $0x10] sm:$0xff] %v1002
      %1011 = vst [vmem:[#allocation2 + $0x18] sm:$0xff] %v1003
      %1012 = vst [vmem:[#allocation2 + $0x20] sm:$0xff] %v1004
      %1013 = vst [vmem:[#allocation2 + $0x28] sm:$0xff] %v1005
      %1014 = vst [vmem:[#allocation2 + $0x30] sm:$0xff] %v1006
      %1015 = vst [vmem:[#allocation2 + $0x38] sm:$0xff] %v1007
      %s1016 = scalar_lea.vmem %s169, 160
      %v1017 = vld [vmem:[%s1016] sm:$0xff]
      %v1018 = vld [vmem:[%s1016 + $0x10] sm:$0xff]
      %v1019 = vld [vmem:[%s1016 + $0x20] sm:$0xff]
      %v1020 = vld [vmem:[%s1016 + $0x30] sm:$0xff]
      %v1021 = vld [vmem:[%s1016 + $0x40] sm:$0xff]
      %v1022 = vld [vmem:[%s1016 + $0x50] sm:$0xff]
      %v1023 = vld [vmem:[%s1016 + $0x60] sm:$0xff]
      %v1024 = vld [vmem:[%s1016 + $0x70] sm:$0xff]
      %v1025 = vpack.c.bf16 %v1018, %v1017
      %v1026 = vpack.c.bf16 %v1020, %v1019
      %v1027 = vpack.c.bf16 %v1022, %v1021
      %v1028 = vpack.c.bf16 %v1024, %v1023
      %v1029 = vld [vmem:[#allocation2] sm:$0xff]
      %v1030 = vld [vmem:[#allocation2 + $0x8] sm:$0xff]
      %v1031 = vld [vmem:[#allocation2 + $0x10] sm:$0xff]
      %v1032 = vld [vmem:[#allocation2 + $0x18] sm:$0xff]
      %v1033 = vld [vmem:[#allocation2 + $0x20] sm:$0xff]
      %v1034 = vld [vmem:[#allocation2 + $0x28] sm:$0xff]
      %v1035 = vld [vmem:[#allocation2 + $0x30] sm:$0xff]
      %v1036 = vld [vmem:[#allocation2 + $0x38] sm:$0xff]
      %s1037 = scalar_lea.vmem %s1, 14
      %v1038 = vld [vmem:[%s1037] sm:$0x3]
      %v1040 = vsel %vm206, %v1025, 0
      %v1043 = vsel %vm206, %v1026, 0
      %v1046 = vsel %vm206, %v1027, 0
      %v1049 = vsel %vm206, %v1028, 0
      %v1052 = vsel %vm219, %v1038, 0
      %1054 = vmatprep.subr.bf16.mxu0 0
      %1055 = vmatpush1.bf16.msra.mxu0 %v1052
      %1056 = vmatprep.subr.bf16.mxu0 0
      %1057 = vmatpush1.bf16.msra.mxu0 0
      %1058 = vmatprep.subr.bf16.mxu0 0
      %1059 = vmatpush1.bf16.msra.mxu0 0
      %1060 = vmatprep.subr.bf16.mxu0 0
      %1061 = vmatpush1.bf16.msra.mxu0 0
      %1062 = vmatprep.subr.bf16.mxu0 0
      %1063 = vmatpush1.bf16.msra.mxu0 0
      %1064 = vmatprep.subr.bf16.mxu0 0
      %1065 = vmatpush1.bf16.msra.mxu0 0
      %1066 = vmatprep.subr.bf16.mxu0 0
      %1067 = vmatpush1.bf16.msra.mxu0 0
      %1068 = vmatprep.subr.bf16.mxu0 0
      %1069 = vmatpush1.bf16.msra.mxu0 0
      %1070 = vmatprep.subr.bf16.mxu0 0
      %1071 = vmatpush1.bf16.msra.mxu0 0
      %1072 = vmatprep.subr.bf16.mxu0 0
      %1073 = vmatpush1.bf16.msra.mxu0 0
      %1074 = vmatprep.subr.bf16.mxu0 0
      %1075 = vmatpush1.bf16.msra.mxu0 0
      %1076 = vmatprep.subr.bf16.mxu0 0
      %1077 = vmatpush1.bf16.msra.mxu0 0
      %1078 = vmatprep.subr.bf16.mxu0 0
      %1079 = vmatpush1.bf16.msra.mxu0 0
      %1080 = vmatprep.subr.bf16.mxu0 0
      %1081 = vmatpush1.bf16.msra.mxu0 0
      %1082 = vmatprep.subr.bf16.mxu0 0
      %1083 = vmatpush1.bf16.msra.mxu0 0
      %1084 = vmatprep.subr.bf16.mxu0 0
      %1085 = vmatpush1.bf16.msra.mxu0 0
      %1086 = vmatprep.mubr.bf16.mxu0 0
      %1087 = vmatmul.mubr.bf16.gmra.mrb[0].mxu0 %v1040
      %v1088 = vpop.f32.mrb[0].mxu0
      %v1089 = vadd.f32 0.0, %v1088
      %v1090 = vpop.f32.mrb[0].mxu0
      %v1091 = vpop.f32.mrb[0].mxu0
      %v1092 = vadd.f32 0.0, %v1091
      %v1093 = vpop.f32.mrb[0].mxu0
      %1094 = vmatprep.mubr.bf16.mxu0 0
      %1095 = vmatmul.mubr.bf16.gmra.mrb[0].mxu0 %v1043
      %v1096 = vpop.f32.mrb[0].mxu0
      %v1097 = vadd.f32 0.0, %v1096
      %v1098 = vpop.f32.mrb[0].mxu0
      %v1099 = vpop.f32.mrb[0].mxu0
      %v1100 = vadd.f32 0.0, %v1099
      %v1101 = vpop.f32.mrb[0].mxu0
      %1102 = vmatprep.mubr.bf16.mxu0 0
      %1103 = vmatmul.mubr.bf16.gmra.mrb[0].mxu0 %v1046
      %v1104 = vpop.f32.mrb[0].mxu0
      %v1105 = vadd.f32 0.0, %v1104
      %v1106 = vpop.f32.mrb[0].mxu0
      %v1107 = vpop.f32.mrb[0].mxu0
      %v1108 = vadd.f32 0.0, %v1107
      %v1109 = vpop.f32.mrb[0].mxu0
      %1110 = vmatprep.mubr.bf16.mxu0 0
      %1111 = vmatmul.mubr.bf16.gmra.mrb[0].mxu0 %v1049
      %v1112 = vpop.f32.mrb[0].mxu0
      %v1113 = vadd.f32 0.0, %v1112
      %v1114 = vpop.f32.mrb[0].mxu0
      %v1115 = vpop.f32.mrb[0].mxu0
      %v1116 = vadd.f32 0.0, %v1115
      %v1117 = vpop.f32.mrb[0].mxu0
      %1118 = vdwg.mxu0
      %v1119 = vadd.f32 %v1029, %v1089
      %v1120 = vadd.f32 %v1030, %v1092
      %v1121 = vadd.f32 %v1031, %v1097
      %v1122 = vadd.f32 %v1032, %v1100
      %v1123 = vadd.f32 %v1033, %v1105
      %v1124 = vadd.f32 %v1034, %v1108
      %v1125 = vadd.f32 %v1035, %v1113
      %v1126 = vadd.f32 %v1036, %v1116
      %1127 = vst [vmem:[#allocation2] sm:$0xff] %v1119
      %1128 = vst [vmem:[#allocation2 + $0x8] sm:$0xff] %v1120
      %1129 = vst [vmem:[#allocation2 + $0x10] sm:$0xff] %v1121
      %1130 = vst [vmem:[#allocation2 + $0x18] sm:$0xff] %v1122
      %1131 = vst [vmem:[#allocation2 + $0x20] sm:$0xff] %v1123
      %1132 = vst [vmem:[#allocation2 + $0x28] sm:$0xff] %v1124
      %1133 = vst [vmem:[#allocation2 + $0x30] sm:$0xff] %v1125
      %1134 = vst [vmem:[#allocation2 + $0x38] sm:$0xff] %v1126
      %v1135 = vld [vmem:[%s897 + $0x1] sm:$0xff]
      %v1136 = vld [vmem:[%s897 + $0x11] sm:$0xff]
      %v1137 = vld [vmem:[%s897 + $0x21] sm:$0xff]
      %v1138 = vld [vmem:[%s897 + $0x31] sm:$0xff]
      %v1139 = vld [vmem:[%s897 + $0x41] sm:$0xff]
      %v1140 = vld [vmem:[%s897 + $0x51] sm:$0xff]
      %v1141 = vld [vmem:[%s897 + $0x61] sm:$0xff]
      %v1142 = vld [vmem:[%s897 + $0x71] sm:$0xff]
      %v1143 = vpack.c.bf16 %v1136, %v1135
      %v1144 = vpack.c.bf16 %v1138, %v1137
      %v1145 = vpack.c.bf16 %v1140, %v1139
      %v1146 = vpack.c.bf16 %v1142, %v1141
      %v1147 = vld [vmem:[#allocation2] sm:$0xff]
      %v1148 = vld [vmem:[#allocation2 + $0x8] sm:$0xff]
      %v1149 = vld [vmem:[#allocation2 + $0x10] sm:$0xff]
      %v1150 = vld [vmem:[#allocation2 + $0x18] sm:$0xff]
      %v1151 = vld [vmem:[#allocation2 + $0x20] sm:$0xff]
      %v1152 = vld [vmem:[#allocation2 + $0x28] sm:$0xff]
      %v1153 = vld [vmem:[#allocation2 + $0x30] sm:$0xff]
      %v1154 = vld [vmem:[#allocation2 + $0x38] sm:$0xff]
      %s1155 = scalar_lea.vmem %s1, 16
      %v1156 = vld [vmem:[%s1155] sm:$0x3]
      %v1158 = vsel %vm206, %v1143, 0
      %v1161 = vsel %vm206, %v1144, 0
      %v1164 = vsel %vm206, %v1145, 0
      %v1167 = vsel %vm206, %v1146, 0
      %v1170 = vsel %vm219, %v1156, 0
      %1172 = vmatprep.subr.bf16.mxu0 0
      %1173 = vmatpush1.bf16.msra.mxu0 %v1170
      %1174 = vmatprep.subr.bf16.mxu0 0
      %1175 = vmatpush1.bf16.msra.mxu0 0
      %1176 = vmatprep.subr.bf16.mxu0 0
      %1177 = vmatpush1.bf16.msra.mxu0 0
      %1178 = vmatprep.subr.bf16.mxu0 0
      %1179 = vmatpush1.bf16.msra.mxu0 0
      %1180 = vmatprep.subr.bf16.mxu0 0
      %1181 = vmatpush1.bf16.msra.mxu0 0
      %1182 = vmatprep.subr.bf16.mxu0 0
      %1183 = vmatpush1.bf16.msra.mxu0 0
      %1184 = vmatprep.subr.bf16.mxu0 0
      %1185 = vmatpush1.bf16.msra.mxu0 0
      %1186 = vmatprep.subr.bf16.mxu0 0
      %1187 = vmatpush1.bf16.msra.mxu0 0
      %1188 = vmatprep.subr.bf16.mxu0 0
      %1189 = vmatpush1.bf16.msra.mxu0 0
      %1190 = vmatprep.subr.bf16.mxu0 0
      %1191 = vmatpush1.bf16.msra.mxu0 0
      %1192 = vmatprep.subr.bf16.mxu0 0
      %1193 = vmatpush1.bf16.msra.mxu0 0
      %1194 = vmatprep.subr.bf16.mxu0 0
      %1195 = vmatpush1.bf16.msra.mxu0 0
      %1196 = vmatprep.subr.bf16.mxu0 0
      %1197 = vmatpush1.bf16.msra.mxu0 0
      %1198 = vmatprep.subr.bf16.mxu0 0
      %1199 = vmatpush1.bf16.msra.mxu0 0
      %1200 = vmatprep.subr.bf16.mxu0 0
      %1201 = vmatpush1.bf16.msra.mxu0 0
      %1202 = vmatprep.subr.bf16.mxu0 0
      %1203 = vmatpush1.bf16.msra.mxu0 0
      %1204 = vmatprep.mubr.bf16.mxu0 0
      %1205 = vmatmul.mubr.bf16.gmra.mrb[0].mxu0 %v1158
      %v1206 = vpop.f32.mrb[0].mxu0
      %v1207 = vadd.f32 0.0, %v1206
      %v1208 = vpop.f32.mrb[0].mxu0
      %v1209 = vpop.f32.mrb[0].mxu0
      %v1210 = vadd.f32 0.0, %v1209
      %v1211 = vpop.f32.mrb[0].mxu0
      %1212 = vmatprep.mubr.bf16.mxu0 0
      %1213 = vmatmul.mubr.bf16.gmra.mrb[0].mxu0 %v1161
      %v1214 = vpop.f32.mrb[0].mxu0
      %v1215 = vadd.f32 0.0, %v1214
      %v1216 = vpop.f32.mrb[0].mxu0
      %v1217 = vpop.f32.mrb[0].mxu0
      %v1218 = vadd.f32 0.0, %v1217
      %v1219 = vpop.f32.mrb[0].mxu0
      %1220 = vmatprep.mubr.bf16.mxu0 0
      %1221 = vmatmul.mubr.bf16.gmra.mrb[0].mxu0 %v1164
      %v1222 = vpop.f32.mrb[0].mxu0
      %v1223 = vadd.f32 0.0, %v1222
      %v1224 = vpop.f32.mrb[0].mxu0
      %v1225 = vpop.f32.mrb[0].mxu0
      %v1226 = vadd.f32 0.0, %v1225
      %v1227 = vpop.f32.mrb[0].mxu0
      %1228 = vmatprep.mubr.bf16.mxu0 0
      %1229 = vmatmul.mubr.bf16.gmra.mrb[0].mxu0 %v1167
      %v1230 = vpop.f32.mrb[0].mxu0
      %v1231 = vadd.f32 0.0, %v1230
      %v1232 = vpop.f32.mrb[0].mxu0
      %v1233 = vpop.f32.mrb[0].mxu0
      %v1234 = vadd.f32 0.0, %v1233
      %v1235 = vpop.f32.mrb[0].mxu0
      %1236 = vdwg.mxu0
      %v1237 = vadd.f32 %v1147, %v1207
      %v1238 = vadd.f32 %v1148, %v1210
      %v1239 = vadd.f32 %v1149, %v1215
      %v1240 = vadd.f32 %v1150, %v1218
      %v1241 = vadd.f32 %v1151, %v1223
      %v1242 = vadd.f32 %v1152, %v1226
      %v1243 = vadd.f32 %v1153, %v1231
      %v1244 = vadd.f32 %v1154, %v1234
      %1245 = vst [vmem:[#allocation2] sm:$0xff] %v1237
      %1246 = vst [vmem:[#allocation2 + $0x8] sm:$0xff] %v1238
      %1247 = vst [vmem:[#allocation2 + $0x10] sm:$0xff] %v1239
      %1248 = vst [vmem:[#allocation2 + $0x18] sm:$0xff] %v1240
      %1249 = vst [vmem:[#allocation2 + $0x20] sm:$0xff] %v1241
      %1250 = vst [vmem:[#allocation2 + $0x28] sm:$0xff] %v1242
      %1251 = vst [vmem:[#allocation2 + $0x30] sm:$0xff] %v1243
      %1252 = vst [vmem:[#allocation2 + $0x38] sm:$0xff] %v1244
      %v1253 = vld [vmem:[#allocation2] sm:$0xff]
      %v1254 = vld [vmem:[#allocation2 + $0x8] sm:$0xff]
      %v1255 = vld [vmem:[#allocation2 + $0x10] sm:$0xff]
      %v1256 = vld [vmem:[#allocation2 + $0x18] sm:$0xff]
      %v1257 = vld [vmem:[#allocation2 + $0x20] sm:$0xff]
      %v1258 = vld [vmem:[#allocation2 + $0x28] sm:$0xff]
      %v1259 = vld [vmem:[#allocation2 + $0x30] sm:$0xff]
      %v1260 = vld [vmem:[#allocation2 + $0x38] sm:$0xff]
      %v1261 = vld [vmem:[%s2] sm:$0x1]
      %v1263 = vlaneseq
      %v1264 = vshrl.u32 %v1263, 7
      %v1265 = vsub.s32 0, %v1264
      %v1266 = vrot.slane %v1261, %v1265
      %v1268 = vadd.f32 %v1253, %v1266
      %v1269 = vadd.f32 %v1254, %v1266
      %v1270 = vadd.f32 %v1255, %v1266
      %v1271 = vadd.f32 %v1256, %v1266
      %v1272 = vadd.f32 %v1257, %v1266
      %v1273 = vadd.f32 %v1258, %v1266
      %v1274 = vadd.f32 %v1259, %v1266
      %v1275 = vadd.f32 %v1260, %v1266
      %v1276 = vmax.f32 %v1268, 0.0
      %v1277 = vmax.f32 %v1269, 0.0
      %v1278 = vmax.f32 %v1270, 0.0
      %v1279 = vmax.f32 %v1271, 0.0
      %v1280 = vmax.f32 %v1272, 0.0
      %v1281 = vmax.f32 %v1273, 0.0
      %v1282 = vmax.f32 %v1274, 0.0
      %v1283 = vmax.f32 %v1275, 0.0
      %1284 = vst [vmem:[%s175] sm:$0xff] 0.0
      %1285 = vst [vmem:[%s175 + $0x8] sm:$0x3] 0.0
      %1286 = vst [vmem:[%s175 + $0x10] sm:$0xff] 0.0
      %1287 = vst [vmem:[%s175 + $0x18] sm:$0x3] 0.0
      %1288 = vst [vmem:[%s175 + $0x20] sm:$0xff] 0.0
      %1289 = vst [vmem:[%s175 + $0x28] sm:$0x3] 0.0
      %1290 = vst [vmem:[%s175 + $0x30] sm:$0xff] 0.0
      %1291 = vst [vmem:[%s175 + $0x38] sm:$0x3] 0.0
      %1292 = vst [vmem:[%s175 + $0x40] sm:$0xff] 0.0
      %1293 = vst [vmem:[%s175 + $0x48] sm:$0x3] 0.0
      %1294 = vst [vmem:[%s175 + $0x50] sm:$0xff] 0.0
      %1295 = vst [vmem:[%s175 + $0x58] sm:$0x3] 0.0
      %1296 = vst [vmem:[%s175 + $0x60] sm:$0xff] 0.0
      %1297 = vst [vmem:[%s175 + $0x68] sm:$0x3] 0.0
      %1298 = vst [vmem:[%s175 + $0x70] sm:$0xff] 0.0
      %1299 = vst [vmem:[%s175 + $0x78] sm:$0x3] 0.0
      %1300 = vst [vmem:[%s175 + $0x80] sm:$0xff] 0.0
      %1301 = vst [vmem:[%s175 + $0x88] sm:$0x3] 0.0
      %1302 = vst [vmem:[%s175 + $0x90] sm:$0xff] 0.0
      %1303 = vst [vmem:[%s175 + $0x98] sm:$0x3] 0.0
      %s1304 = scalar_lea.vmem %s175, 16
      %1305 = vst [vmem:[%s1304 + $0x1] sm:$0xff] %v1276
      %1306 = vst [vmem:[%s1304 + $0x11] sm:$0xff] %v1277
      %1307 = vst [vmem:[%s1304 + $0x21] sm:$0xff] %v1278
      %1308 = vst [vmem:[%s1304 + $0x31] sm:$0xff] %v1279
      %1309 = vst [vmem:[%s1304 + $0x41] sm:$0xff] %v1280
      %1310 = vst [vmem:[%s1304 + $0x51] sm:$0xff] %v1281
      %1311 = vst [vmem:[%s1304 + $0x61] sm:$0xff] %v1282
      %1312 = vst [vmem:[%s1304 + $0x71] sm:$0xff] %v1283
      %p1313 = scmp.lt.s32.totalorder %s14, 1
      %s1314 = scalar_select %p1313, %s14, 1
      %s1315 = smul.addr %s1314, 20
      %s1316 = smul.addr %s1315, 8
      %s1317 = scalar_lea.vmem %s3, %s1316
      // Predicated region
      $region33: #{basic_block_forward.2} parent=31 // pred_check
        %p1318 = pneg %p100
      $region34: #{basic_block_forward.2} parent=31 // pred_check_branch
        %1320 = sbr.rel (%p1318) target = $region36
      $region35: #{basic_block_forward.2} parent=31 // pred_region
        _
      $region36: #{basic_block_forward.2} parent=31 // pred_fallthru
        _
    $region32: #{basic_block_forward.2} parent=5 // pred_fallthru
      _
    %p1321 = scmp.le.s32.totalorder 2, %s9
    // Predicated region
    $region37: #{basic_block_forward.2} parent=5 // pred_check
      %p1322 = pneg %p1321
    $region38: #{basic_block_forward.2} parent=5 // pred_check_branch
      %1324 = sbr.rel (%p1322) target = $region40
    $region39: #{basic_block_forward.2} parent=5 // pred_region
      %s1325 = ssub.s32 %s9, 2
      // Predicated region
      $region41: #{basic_block_forward.2} parent=39 // pred_check
        %p1326 = pneg %p106
      $region42: #{basic_block_forward.2} parent=39 // pred_check_branch
        %1328 = sbr.rel (%p1326) target = $region44
      $region43: #{basic_block_forward.2} parent=39 // pred_region
        %p1329 = scmp.lt.s32.totalorder %s15, 1
        %s1330 = scalar_select %p1329, %s15, 1
        %s1331 = smul.addr %s1330, 20
        %s1332 = smul.addr %s1331, 8
        %s1333 = scalar_lea.vmem %s3, %s1332
      $region44: #{basic_block_forward.2} parent=39 // pred_fallthru
        _
    $region40: #{basic_block_forward.2} parent=5 // pred_fallthru
      _
  $region6: #{basic_block_forward.2} parent=0 // loop_footer
    %s13 = sadd.s32 1, %s9
  $region7: #{basic_block_forward.2} parent=0 // loop_footer_branch
    %8 = sbr.rel target = $region3
  $region8: #{basic_block_forward.2} parent=0 // loop_exit
    _

// kernel: basic_block_forward.3
$region0: #{basic_block_forward.3}
  #allocation0 [shape = 'u32[]', space=smem, size = 0x4, offset = 0x4, fixed_abs, tag = 'smem constant byte address 0x4 - core index']
  #allocation1 [shape = 'u32[144,128]{1,0:T(1,128)}', space=vmem, size = 0x12000, scoped, tag = 'internal scratch']
  #allocation2 [shape = 'f32[64,128]{1,0:T(8,128)}', space=vmem, size = 0x8000, scoped, tag = 'scratch operand']
  %s0 = inlined_call_operand.vmem [shape: f32[2,10,10,128], index: 0, kind: input, shape index: {}]
  %s1 = inlined_call_operand.vmem [shape: bf16[9,128,128], index: 1, kind: input, shape index: {}]
  %s2 = inlined_call_operand.vmem [shape: f32[1,128], index: 2, kind: input, shape index: {}]
  %s3 = inlined_call_operand.vmem [shape: bf16[2,8,8,4], index: 3, kind: input, shape index: {}]
  %s4 = inlined_call_operand.vmem [shape: bf16[4,128], index: 4, kind: input, shape index: {}]
  %s5 = inlined_call_operand.vmem [shape: f32[1,128], index: 5, kind: input, shape index: {}]
  %s6 = inlined_call_operand.vmem [shape: f32[2,8,8,128], index: 6, kind: output, shape index: {}]
  %s7 = sld [smem:[#allocation0]]
  $region57: #{basic_block_forward.3} parent=0
    _
  %s9 = ssub.s32 1, %s7
  %s10 = scalar_select 0, %s9, %s7
  loop: start=0, step=1, limit=4
  $region2: #{basic_block_forward.3} parent=0 // loop_pre_header
    _
  $region3: #{basic_block_forward.3} parent=0 // loop_header
    %s12 = sphi 0, %s16
    %p13 = scmp.ge.s32.totalorder %s12, 4
    %s22 = sphi 0, %s24
    %s25 = sphi 0, %s22
    %s26 = sphi 0, %s25
    %s42 = sphi 0, %s26
    %s46 = sphi 0, %s46
    %s48 = sphi 0, %s46
    %s49 = sphi 0, %s48
    %s63 = sphi 0, %s49
    %s67 = sphi 0, %s67
    %s69 = sphi 0, %s67
    %s70 = sphi 0, %s69
    %s84 = sphi 0, %s70
    %s90 = sphi 0, %s92
    %s93 = sphi 0, %s90
    %s94 = sphi 0, %s93
    %s110 = sphi 0, %s94
    %s114 = sphi 0, %s114
    %s116 = sphi 0, %s114
    %s117 = sphi 0, %s116
    %s131 = sphi 0, %s117
    %s135 = sphi 0, %s135
    %s137 = sphi 0, %s135
    %s138 = sphi 0, %s137
    %s152 = sphi 0, %s138
    %s158 = sphi 0, %s160
    %s161 = sphi 0, %s158
    %s162 = sphi 0, %s161
    %s178 = sphi 0, %s162
  $region4: #{basic_block_forward.3} parent=0 // loop_header_branch
    %15 = sbr.rel (%p13) target = $region8
  $region5: #{basic_block_forward.3} parent=0 // loop_body
    %s17 = ssub.s32 %s12, 1
    %s18 = ssub.s32 %s12, 2
    %s19 = sadd.s32 %s12, 1
    %s20 = ssub.s32 %s12, %s19
    %p21 = scmp.eq.s32.totalorder %s20, 0
    %s23 = sadd.s32 %s22, 1
    %s24 = scalar_select %p21, %s22, %s23
    %p27 = pneg %p21
    %p28 = scmp.eq.s32.totalorder %s12, 1
    %p29 = por %p27, %p28
    %p30 = scmp.ne.s32.totalorder %s22, %s25
    %p31 = scmp.eq.s32.totalorder %s12, 0
    %p32 = por %p30, %p31
    %p33 = scmp.ne.s32.totalorder %s22, %s25
    %p34 = scmp.eq.s32.totalorder %s17, 1
    %p35 = por %p33, %p34
    %p36 = scmp.ne.s32.totalorder %s25, %s26
    %p37 = scmp.eq.s32.totalorder %s17, 0
    %p38 = por %p36, %p37
    %p39 = scmp.ne.s32.totalorder %s25, %s26
    %p40 = scmp.eq.s32.totalorder %s18, 1
    %p41 = por %p39, %p40
    %p43 = scmp.ne.s32.totalorder %s26, %s42
    %p44 = scmp.eq.s32.totalorder %s18, 0
    %p45 = por %p43, %p44
    %s47 = sadd.s32 %s46, 1
    %p50 = scmp.eq.s32.totalorder %s12, 1
    %p51 = scmp.ne.s32.totalorder %s46, %s48
    %p52 = scmp.eq.s32.totalorder %s12, 0
    %p53 = por %p51, %p52
    %p54 = scmp.ne.s32.totalorder %s46, %s48
    %p55 = scmp.eq.s32.totalorder %s17, 1
    %p56 = por %p54, %p55
    %p57 = scmp.ne.s32.totalorder %s48, %s49
    %p58 = scmp.eq.s32.totalorder %s17, 0
    %p59 = por %p57, %p58
    %p60 = scmp.ne.s32.totalorder %s48, %s49
    %p61 = scmp.eq.s32.totalorder %s18, 1
    %p62 = por %p60, %p61
    %p64 = scmp.ne.s32.totalorder %s49, %s63
    %p65 = scmp.eq.s32.totalorder %s18, 0
    %p66 = por %p64, %p65
    %s68 = sadd.s32 %s67, 1
    %p71 = scmp.eq.s32.totalorder %s12, 1
    %p72 = scmp.ne.s32.totalorder %s67, %s69
    %p73 = scmp.eq.s32.totalorder %s12, 0
    %p74 = por %p72, %p73
    %p75 = scmp.ne.s32.totalorder %s67, %s69
    %p76 = scmp.eq.s32.totalorder %s17, 1
    %p77 = por %p75, %p76
    %p78 = scmp.ne.s32.totalorder %s69, %s70
    %p79 = scmp.eq.s32.totalorder %s17, 0
    %p80 = por %p78, %p79
    %p81 = scmp.ne.s32.totalorder %s69, %s70
    %p82 = scmp.eq.s32.totalorder %s18, 1
    %p83 = por %p81, %p82
    %p85 = scmp.ne.s32.totalorder %s70, %s84
    %p86 = scmp.eq.s32.totalorder %s18, 0
    %p87 = por %p85, %p86
    %s88 = ssub.s32 %s12, %s19
    %p89 = scmp.eq.s32.totalorder %s88, 0
    %s91 = sadd.s32 %s90, 1
    %s92 = scalar_select %p89, %s90, %s91
    %p95 = pneg %p89
    %p96 = scmp.eq.s32.totalorder %s12, 1
    %p97 = por %p95, %p96
    %p98 = scmp.ne.s32.totalorder %s90, %s93
    %p99 = scmp.eq.s32.totalorder %s12, 0
    %p100 = por %p98, %p99
    %p101 = scmp.ne.s32.totalorder %s90, %s93
    %p102 = scmp.eq.s32.totalorder %s17, 1
    %p103 = por %p101, %p102
    %p104 = scmp.ne.s32.totalorder %s93, %s94
    %p105 = scmp.eq.s32.totalorder %s17, 0
    %p106 = por %p104, %p105
    %p107 = scmp.ne.s32.totalorder %s93, %s94
    %p108 = scmp.eq.s32.totalorder %s18, 1
    %p109 = por %p107, %p108
    %p111 = scmp.ne.s32.totalorder %s94, %s110
    %p112 = scmp.eq.s32.totalorder %s18, 0
    %p113 = por %p111, %p112
    %s115 = sadd.s32 %s114, 1
    %p118 = scmp.eq.s32.totalorder %s12, 1
    %p119 = scmp.ne.s32.totalorder %s114, %s116
    %p120 = scmp.eq.s32.totalorder %s12, 0
    %p121 = por %p119, %p120
    %p122 = scmp.ne.s32.totalorder %s114, %s116
    %p123 = scmp.eq.s32.totalorder %s17, 1
    %p124 = por %p122, %p123
    %p125 = scmp.ne.s32.totalorder %s116, %s117
    %p126 = scmp.eq.s32.totalorder %s17, 0
    %p127 = por %p125, %p126
    %p128 = scmp.ne.s32.totalorder %s116, %s117
    %p129 = scmp.eq.s32.totalorder %s18, 1
    %p130 = por %p128, %p129
    %p132 = scmp.ne.s32.totalorder %s117, %s131
    %p133 = scmp.eq.s32.totalorder %s18, 0
    %p134 = por %p132, %p133
    %s136 = sadd.s32 %s135, 1
    %p139 = scmp.eq.s32.totalorder %s12, 1
    %p140 = scmp.ne.s32.totalorder %s135, %s137
    %p141 = scmp.eq.s32.totalorder %s12, 0
    %p142 = por %p140, %p141
    %p143 = scmp.ne.s32.totalorder %s135, %s137
    %p144 = scmp.eq.s32.totalorder %s17, 1
    %p145 = por %p143, %p144
    %p146 = scmp.ne.s32.totalorder %s137, %s138
    %p147 = scmp.eq.s32.totalorder %s17, 0
    %p148 = por %p146, %p147
    %p149 = scmp.ne.s32.totalorder %s137, %s138
    %p150 = scmp.eq.s32.totalorder %s18, 1
    %p151 = por %p149, %p150
    %p153 = scmp.ne.s32.totalorder %s138, %s152
    %p154 = scmp.eq.s32.totalorder %s18, 0
    %p155 = por %p153, %p154
    %s156 = ssub.s32 %s12, %s19
    %p157 = scmp.eq.s32.totalorder %s156, 0
    %s159 = sadd.s32 %s158, 1
    %s160 = scalar_select %p157, %s158, %s159
    %p163 = pneg %p157
    %p164 = scmp.eq.s32.totalorder %s12, 1
    %p165 = por %p163, %p164
    %p166 = scmp.ne.s32.totalorder %s158, %s161
    %p167 = scmp.eq.s32.totalorder %s12, 0
    %p168 = por %p166, %p167
    %p169 = scmp.ne.s32.totalorder %s158, %s161
    %p170 = scmp.eq.s32.totalorder %s17, 1
    %p171 = por %p169, %p170
    %p172 = scmp.ne.s32.totalorder %s161, %s162
    %p173 = scmp.eq.s32.totalorder %s17, 0
    %p174 = por %p172, %p173
    %p175 = scmp.ne.s32.totalorder %s161, %s162
    %p176 = scmp.eq.s32.totalorder %s18, 1
    %p177 = por %p175, %p176
    %p179 = scmp.ne.s32.totalorder %s162, %s178
    %p180 = scmp.eq.s32.totalorder %s18, 0
    %p181 = por %p179, %p180
    %p182 = scmp.le.s32.totalorder 1, %s12
    %p183 = scmp.lt.s32.totalorder %s12, 3
    %p184 = pnand %p182, %p183
    %p185 = pneg %p184
    // Predicated region
    $region9: #{basic_block_forward.3} parent=5 // pred_check
      _
    $region10: #{basic_block_forward.3} parent=5 // pred_check_branch
      %187 = sbr.rel (%p184) target = $region12
    $region11: #{basic_block_forward.3} parent=5 // pred_region
      %s188 = ssub.s32 %s12, 1
      // Predicated region
      $region13: #{basic_block_forward.3} parent=11 // pred_check
        %p189 = pneg %p59
      $region14: #{basic_block_forward.3} parent=11 // pred_check_branch
        %191 = sbr.rel (%p189) target = $region16
      $region15: #{basic_block_forward.3} parent=11 // pred_region
        _
      $region16: #{basic_block_forward.3} parent=11 // pred_fallthru
        _
      // Predicated region
      $region17: #{basic_block_forward.3} parent=11 // pred_check
        %p192 = pneg %p80
      $region18: #{basic_block_forward.3} parent=11 // pred_check_branch
        %194 = sbr.rel (%p192) target = $region20
      $region19: #{basic_block_forward.3} parent=11 // pred_region
        _
      $region20: #{basic_block_forward.3} parent=11 // pred_fallthru
        _
      // Predicated region
      $region21: #{basic_block_forward.3} parent=11 // pred_check
        %p195 = pneg %p127
      $region22: #{basic_block_forward.3} parent=11 // pred_check_branch
        %197 = sbr.rel (%p195) target = $region24
      $region23: #{basic_block_forward.3} parent=11 // pred_region
        _
      $region24: #{basic_block_forward.3} parent=11 // pred_fallthru
        _
      // Predicated region
      $region25: #{basic_block_forward.3} parent=11 // pred_check
        %p198 = pneg %p148
      $region26: #{basic_block_forward.3} parent=11 // pred_check_branch
        %200 = sbr.rel (%p198) target = $region28
      $region27: #{basic_block_forward.3} parent=11 // pred_region
        _
      $region28: #{basic_block_forward.3} parent=11 // pred_fallthru
        _
    $region12: #{basic_block_forward.3} parent=5 // pred_fallthru
      _
    %p201 = scmp.lt.s32.totalorder %s12, 2
    // Predicated region
    $region29: #{basic_block_forward.3} parent=5 // pred_check
      %p202 = pneg %p201
    $region30: #{basic_block_forward.3} parent=5 // pred_check_branch
      %204 = sbr.rel (%p202) target = $region32
    $region31: #{basic_block_forward.3} parent=5 // pred_region
      // Predicated region
      $region33: #{basic_block_forward.3} parent=31 // pred_check
        %p205 = pneg %p32
      $region34: #{basic_block_forward.3} parent=31 // pred_check_branch
        %207 = sbr.rel (%p205) target = $region36
      $region35: #{basic_block_forward.3} parent=31 // pred_region
        %p208 = scmp.lt.s32.totalorder %s12, 1
        %s209 = scalar_select %p208, %s12, 1
        %s210 = smul.addr %s209, 20
        %s211 = smul.addr %s210, 8
        %s212 = scalar_lea.vmem %s0, %s211
      $region36: #{basic_block_forward.3} parent=31 // pred_fallthru
        _
      // Predicated region
      $region37: #{basic_block_forward.3} parent=31 // pred_check
        %p213 = pneg %p100
      $region38: #{basic_block_forward.3} parent=31 // pred_check_branch
        %215 = sbr.rel (%p213) target = $region40
      $region39: #{basic_block_forward.3} parent=31 // pred_region
        %p216 = scmp.lt.s32.totalorder %s12, 1
        %s217 = scalar_select %p216, %s12, 1
        %s218 = smul.addr %s217, 8
        %s219 = smul.addr %s218, 4
        %s220 = scalar_lea.vmem %s3, %s219
      $region40: #{basic_block_forward.3} parent=31 // pred_fallthru
        _
    $region32: #{basic_block_forward.3} parent=5 // pred_fallthru
      _
    %p221 = scmp.le.s32.totalorder 1, %s12
    %p222 = scmp.lt.s32.totalorder %s12, 3
    %p223 = pnand %p221, %p222
    %p224 = pneg %p223
    // Predicated region
    $region41: #{basic_block_forward.3} parent=5 // pred_check
      _
    $region42: #{basic_block_forward.3} parent=5 // pred_check_branch
      %226 = sbr.rel (%p223) target = $region44
    $region43: #{basic_block_forward.3} parent=5 // pred_region
      %s227 = ssub.s32 %s12, 1
      %p228 = scmp.lt.s32.totalorder %s17, 1
      %s229 = scalar_select %p228, %s17, 1
      %s230 = smul.addr %s229, 20
      %s231 = smul.addr %s230, 8
      %s232 = scalar_lea.vmem %s0, %s231
      %p233 = pneg %p38
      %p234 = pneg %p35
      %p235 = pneg %p59
      %p236 = pneg %p56
      %p237 = pneg %p80
      %p238 = pneg %p77
      %p239 = scmp.lt.s32.totalorder %s17, 1
      %s240 = scalar_select %p239, %s17, 1
      %s241 = smul.addr %s240, 8
      %s242 = smul.addr %s241, 4
      %s243 = scalar_lea.vmem %s3, %s242
      %p244 = pneg %p106
      %p245 = pneg %p103
      %p246 = pneg %p127
      %p247 = pneg %p124
      %p248 = pneg %p148
      %p249 = pneg %p145
      %p250 = pneg %p174
      %p251 = pneg %p171
      %p252 = scmp.lt.s32.totalorder %s17, 1
      %s253 = scalar_select %p252, %s17, 1
      %s254 = smul.addr %s253, 8
      %s255 = smul.addr %s254, 8
      %s256 = scalar_lea.vmem %s6, %s255
      %p257 = scmp.lt.s32.totalorder %s17, 1
      %s258 = scalar_select %p257, %s17, 1
      %s259 = smul.addr %s258, 20
      %s260 = smul.addr %s259, 8
      %s261 = scalar_lea.vmem %s0, %s260
      %p262 = scmp.lt.s32.totalorder %s17, 1
      %s263 = scalar_select %p262, %s17, 1
      %s264 = smul.addr %s263, 8
      %s265 = smul.addr %s264, 4
      %s266 = scalar_lea.vmem %s3, %s265
      %p267 = scmp.lt.s32.totalorder %s17, 1
      %s268 = scalar_select %p267, %s17, 1
      %s269 = smul.addr %s268, 8
      %s270 = smul.addr %s269, 8
      %s271 = scalar_lea.vmem %s6, %s270
      %v273 = vld [vmem:[%s266] sm:$0xf]
      %v274 = vld [vmem:[%s266 + $0x4] sm:$0xf]
      %v275 = vld [vmem:[%s266 + $0x8] sm:$0xf]
      %v276 = vld [vmem:[%s266 + $0xc] sm:$0xf]
      %v277 = vld [vmem:[%s266 + $0x10] sm:$0xf]
      %v278 = vld [vmem:[%s266 + $0x14] sm:$0xf]
      %v279 = vld [vmem:[%s266 + $0x18] sm:$0xf]
      %v280 = vld [vmem:[%s266 + $0x1c] sm:$0xf]
      %v281 = vunpack.c.l.bf16 %v273
      %v282 = vunpack.c.l.bf16 %v274
      %v283 = vunpack.c.l.bf16 %v275
      %v284 = vunpack.c.l.bf16 %v276
      %v285 = vunpack.c.l.bf16 %v277
      %v286 = vunpack.c.l.bf16 %v278
      %v287 = vunpack.c.l.bf16 %v279
      %v288 = vunpack.c.l.bf16 %v280
      %v289 = vpack.c.bf16 %v282, %v281
      %v290 = vpack.c.bf16 %v284, %v283
      %v291 = vpack.c.bf16 %v286, %v285
      %v292 = vpack.c.bf16 %v288, %v287
      %v293 = vld [vmem:[%s4] sm:$0x3]
      %v294 = vld [vmem:[%s5] sm:$0x1]
      %v296 = vlaneseq
      %v297 = vshrl.u32 %v296, 7
      %v298 = vsub.s32 0, %v297
      %v299 = vrot.slane %v294, %v298
      %vm301 = vcmask 31744
      %v303 = vsel %vm301, %v289, 0
      %v306 = vsel %vm301, %v290, 0
      %v309 = vsel %vm301, %v291, 0
      %v312 = vsel %vm301, %v292, 0
      %vm314 = vcmask 1041408
      %v316 = vsel %vm314, %v293, 0
      %318 = vmatprep.subr.bf16.mxu0 0
      %319 = vmatpush1.bf16.msra.mxu0 %v316
      %320 = vmatprep.subr.bf16.mxu0 0
      %321 = vmatpush1.bf16.msra.mxu0 0
      %322 = vmatprep.subr.bf16.mxu0 0
      %323 = vmatpush1.bf16.msra.mxu0 0
      %324 = vmatprep.subr.bf16.mxu0 0
      %325 = vmatpush1.bf16.msra.mxu0 0
      %326 = vmatprep.subr.bf16.mxu0 0
      %327 = vmatpush1.bf16.msra.mxu0 0
      %328 = vmatprep.subr.bf16.mxu0 0
      %329 = vmatpush1.bf16.msra.mxu0 0
      %330 = vmatprep.subr.bf16.mxu0 0
      %331 = vmatpush1.bf16.msra.mxu0 0
      %332 = vmatprep.subr.bf16.mxu0 0
      %333 = vmatpush1.bf16.msra.mxu0 0
      %334 = vmatprep.subr.bf16.mxu0 0
      %335 = vmatpush1.bf16.msra.mxu0 0
      %336 = vmatprep.subr.bf16.mxu0 0
      %337 = vmatpush1.bf16.msra.mxu0 0
      %338 = vmatprep.subr.bf16.mxu0 0
      %339 = vmatpush1.bf16.msra.mxu0 0
      %340 = vmatprep.subr.bf16.mxu0 0
      %341 = vmatpush1.bf16.msra.mxu0 0
      %342 = vmatprep.subr.bf16.mxu0 0
      %343 = vmatpush1.bf16.msra.mxu0 0
      %344 = vmatprep.subr.bf16.mxu0 0
      %345 = vmatpush1.bf16.msra.mxu0 0
      %346 = vmatprep.subr.bf16.mxu0 0
      %347 = vmatpush1.bf16.msra.mxu0 0
      %348 = vmatprep.subr.bf16.mxu0 0
      %349 = vmatpush1.bf16.msra.mxu0 0
      %350 = vmatprep.mubr.bf16.mxu0 0
      %351 = vmatmul.mubr.bf16.gmra.mrb[0].mxu0 %v303
      %v352 = vpop.f32.mrb[0].mxu0
      %v353 = vadd.f32 %v299, %v352
      %v354 = vpop.f32.mrb[0].mxu0
      %v355 = vpop.f32.mrb[0].mxu0
      %v356 = vadd.f32 %v299, %v355
      %v357 = vpop.f32.mrb[0].mxu0
      %358 = vmatprep.mubr.bf16.mxu0 0
      %359 = vmatmul.mubr.bf16.gmra.mrb[0].mxu0 %v306
      %v360 = vpop.f32.mrb[0].mxu0
      %v361 = vadd.f32 %v299, %v360
      %v362 = vpop.f32.mrb[0].mxu0
      %v363 = vpop.f32.mrb[0].mxu0
      %v364 = vadd.f32 %v299, %v363
      %v365 = vpop.f32.mrb[0].mxu0
      %366 = vmatprep.mubr.bf16.mxu0 0
      %367 = vmatmul.mubr.bf16.gmra.mrb[0].mxu0 %v309
      %v368 = vpop.f32.mrb[0].mxu0
      %v369 = vadd.f32 %v299, %v368
      %v370 = vpop.f32.mrb[0].mxu0
      %v371 = vpop.f32.mrb[0].mxu0
      %v372 = vadd.f32 %v299, %v371
      %v373 = vpop.f32.mrb[0].mxu0
      %374 = vmatprep.mubr.bf16.mxu0 0
      %375 = vmatmul.mubr.bf16.gmra.mrb[0].mxu0 %v312
      %v376 = vpop.f32.mrb[0].mxu0
      %v377 = vadd.f32 %v299, %v376
      %v378 = vpop.f32.mrb[0].mxu0
      %v379 = vpop.f32.mrb[0].mxu0
      %v380 = vadd.f32 %v299, %v379
      %v381 = vpop.f32.mrb[0].mxu0
      %382 = vdwg.mxu0
      %383 = vst [vmem:[#allocation2] sm:$0xff] %v353
      %384 = vst [vmem:[#allocation2 + $0x8] sm:$0xff] %v356
      %385 = vst [vmem:[#allocation2 + $0x10] sm:$0xff] %v361
      %386 = vst [vmem:[#allocation2 + $0x18] sm:$0xff] %v364
      %387 = vst [vmem:[#allocation2 + $0x20] sm:$0xff] %v369
      %388 = vst [vmem:[#allocation2 + $0x28] sm:$0xff] %v372
      %389 = vst [vmem:[#allocation2 + $0x30] sm:$0xff] %v377
      %390 = vst [vmem:[#allocation2 + $0x38] sm:$0xff] %v380
      %v391 = vld [vmem:[%s261] sm:$0xff]
      %v392 = vld [vmem:[%s261 + $0x10] sm:$0xff]
      %v393 = vld [vmem:[%s261 + $0x20] sm:$0xff]
      %v394 = vld [vmem:[%s261 + $0x30] sm:$0xff]
      %v395 = vld [vmem:[%s261 + $0x40] sm:$0xff]
      %v396 = vld [vmem:[%s261 + $0x50] sm:$0xff]
      %v397 = vld [vmem:[%s261 + $0x60] sm:$0xff]
      %v398 = vld [vmem:[%s261 + $0x70] sm:$0xff]
      %v399 = vpack.c.bf16 %v392, %v391
      %v400 = vpack.c.bf16 %v394, %v393
      %v401 = vpack.c.bf16 %v396, %v395
      %v402 = vpack.c.bf16 %v398, %v397
      %v403 = vld [vmem:[#allocation2] sm:$0xff]
      %v404 = vld [vmem:[#allocation2 + $0x8] sm:$0xff]
      %v405 = vld [vmem:[#allocation2 + $0x10] sm:$0xff]
      %v406 = vld [vmem:[#allocation2 + $0x18] sm:$0xff]
      %v407 = vld [vmem:[#allocation2 + $0x20] sm:$0xff]
      %v408 = vld [vmem:[#allocation2 + $0x28] sm:$0xff]
      %v409 = vld [vmem:[#allocation2 + $0x30] sm:$0xff]
      %v410 = vld [vmem:[#allocation2 + $0x38] sm:$0xff]
      %v411 = vld [vmem:[%s1] sm:$0xf]
      %v412 = vld [vmem:[%s1 + $0x4] sm:$0xf]
      %v413 = vld [vmem:[%s1 + $0x8] sm:$0xf]
      %v414 = vld [vmem:[%s1 + $0xc] sm:$0xf]
      %v415 = vld [vmem:[%s1 + $0x10] sm:$0xf]
      %v416 = vld [vmem:[%s1 + $0x14] sm:$0xf]
      %v417 = vld [vmem:[%s1 + $0x18] sm:$0xf]
      %v418 = vld [vmem:[%s1 + $0x1c] sm:$0xf]
      %v419 = vld [vmem:[%s1 + $0x20] sm:$0xf]
      %v420 = vld [vmem:[%s1 + $0x24] sm:$0xf]
      %v421 = vld [vmem:[%s1 + $0x28] sm:$0xf]
      %v422 = vld [vmem:[%s1 + $0x2c] sm:$0xf]
      %v423 = vld [vmem:[%s1 + $0x30] sm:$0xf]
      %v424 = vld [vmem:[%s1 + $0x34] sm:$0xf]
      %v425 = vld [vmem:[%s1 + $0x38] sm:$0xf]
      %v426 = vld [vmem:[%s1 + $0x3c] sm:$0xf]
      %v443 = vunpack.c.l.b16 %v411
      %v444 = vunpack.c.l.b16 %v412
      %v445 = vunpack.c.l.b16 %v413
      %v446 = vunpack.c.l.b16 %v414
      %v447 = vunpack.c.l.b16 %v415
      %v448 = vunpack.c.l.b16 %v416
      %v449 = vunpack.c.l.b16 %v417
      %v450 = vunpack.c.l.b16 %v418
      %v451 = vunpack.c.l.b16 %v419
      %v452 = vunpack.c.l.b16 %v420
      %v453 = vunpack.c.l.b16 %v421
      %v454 = vunpack.c.l.b16 %v422
      %v455 = vunpack.c.l.b16 %v423
      %v456 = vunpack.c.l.b16 %v424
      %v457 = vunpack.c.l.b16 %v425
      %v458 = vunpack.c.l.b16 %v426
      %v459 = vpack.c.b16 %v444, %v443
      %v460 = vpack.c.b16 %v446, %v445
      %v461 = vpack.c.b16 %v448, %v447
      %v462 = vpack.c.b16 %v450, %v449
      %v463 = vpack.c.b16 %v452, %v451
      %v464 = vpack.c.b16 %v454, %v453
      %v465 = vpack.c.b16 %v456, %v455
      %v466 = vpack.c.b16 %v458, %v457
      %475 = vmatprep.subr.bf16.mxu0 0
      %476 = vmatpush1.bf16.msra.mxu0 %v459
      %477 = vmatprep.subr.bf16.mxu0 0
      %478 = vmatpush1.bf16.msra.mxu0 %v460
      %479 = vmatprep.subr.bf16.mxu0 0
      %480 = vmatpush1.bf16.msra.mxu0 %v461
      %481 = vmatprep.subr.bf16.mxu0 0
      %482 = vmatpush1.bf16.msra.mxu0 %v462
      %483 = vmatprep.subr.bf16.mxu0 0
      %484 = vmatpush1.bf16.msra.mxu0 %v463
      %485 = vmatprep.subr.bf16.mxu0 0
      %486 = vmatpush1.bf16.msra.mxu0 %v464
      %487 = vmatprep.subr.bf16.mxu0 0
      %488 = vmatpush1.bf16.msra.mxu0 %v465
      %489 = vmatprep.subr.bf16.mxu0 0
      %490 = vmatpush1.bf16.msra.mxu0 %v466
      %491 = vmatprep.subr.bf16.mxu0 0
      %492 = vmatpush1.bf16.msra.mxu0 0
      %493 = vmatprep.subr.bf16.mxu0 0
      %494 = vmatpush1.bf16.msra.mxu0 0
      %495 = vmatprep.subr.bf16.mxu0 0
      %496 = vmatpush1.bf16.msra.mxu0 0
      %497 = vmatprep.subr.bf16.mxu0 0
      %498 = vmatpush1.bf16.msra.mxu0 0
      %499 = vmatprep.subr.bf16.mxu0 0
      %500 = vmatpush1.bf16.msra.mxu0 0
      %501 = vmatprep.subr.bf16.mxu0 0
      %502 = vmatpush1.bf16.msra.mxu0 0
      %503 = vmatprep.subr.bf16.mxu0 0
      %504 = vmatpush1.bf16.msra.mxu0 0
      %505 = vmatprep.subr.bf16.mxu0 0
      %506 = vmatpush1.bf16.msra.mxu0 0
      %507 = vmatprep.mubr.bf16.mxu0 0
      %508 = vmatmul.mubr.bf16.gmra.mrb[0].mxu0 %v399
      %v509 = vpop.f32.mrb[0].mxu0
      %v510 = vadd.f32 0.0, %v509
      %v511 = vpop.f32.mrb[0].mxu0
      %v512 = vpop.f32.mrb[0].mxu0
      %v513 = vadd.f32 0.0, %v512
      %v514 = vpop.f32.mrb[0].mxu0
      %515 = vmatprep.mubr.bf16.mxu0 0
      %516 = vmatmul.mubr.bf16.gmra.mrb[0].mxu0 %v400
      %v517 = vpop.f32.mrb[0].mxu0
      %v518 = vadd.f32 0.0, %v517
      %v519 = vpop.f32.mrb[0].mxu0
      %v520 = vpop.f32.mrb[0].mxu0
      %v521 = vadd.f32 0.0, %v520
      %v522 = vpop.f32.mrb[0].mxu0
      %523 = vmatprep.mubr.bf16.mxu0 0
      %524 = vmatmul.mubr.bf16.gmra.mrb[0].mxu0 %v401
      %v525 = vpop.f32.mrb[0].mxu0
      %v526 = vadd.f32 0.0, %v525
      %v527 = vpop.f32.mrb[0].mxu0
      %v528 = vpop.f32.mrb[0].mxu0
      %v529 = vadd.f32 0.0, %v528
      %v530 = vpop.f32.mrb[0].mxu0
      %531 = vmatprep.mubr.bf16.mxu0 0
      %532 = vmatmul.mubr.bf16.gmra.mrb[0].mxu0 %v402
      %v533 = vpop.f32.mrb[0].mxu0
      %v534 = vadd.f32 0.0, %v533
      %v535 = vpop.f32.mrb[0].mxu0
      %v536 = vpop.f32.mrb[0].mxu0
      %v537 = vadd.f32 0.0, %v536
      %v538 = vpop.f32.mrb[0].mxu0
      %539 = vdwg.mxu0
      %v540 = vadd.f32 %v403, %v510
      %v541 = vadd.f32 %v404, %v513
      %v542 = vadd.f32 %v405, %v518
      %v543 = vadd.f32 %v406, %v521
      %v544 = vadd.f32 %v407, %v526
      %v545 = vadd.f32 %v408, %v529
      %v546 = vadd.f32 %v409, %v534
      %v547 = vadd.f32 %v410, %v537
      %548 = vst [vmem:[#allocation2] sm:$0xff] %v540
      %549 = vst [vmem:[#allocation2 + $0x8] sm:$0xff] %v541
      %550 = vst [vmem:[#allocation2 + $0x10] sm:$0xff] %v542
      %551 = vst [vmem:[#allocation2 + $0x18] sm:$0xff] %v543
      %552 = vst [vmem:[#allocation2 + $0x20] sm:$0xff] %v544
      %553 = vst [vmem:[#allocation2 + $0x28] sm:$0xff] %v545
      %554 = vst [vmem:[#allocation2 + $0x30] sm:$0xff] %v546
      %555 = vst [vmem:[#allocation2 + $0x38] sm:$0xff] %v547
      %v556 = vld [vmem:[%s261 + $0x1] sm:$0xff]
      %v557 = vld [vmem:[%s261 + $0x11] sm:$0xff]
      %v558 = vld [vmem:[%s261 + $0x21] sm:$0xff]
      %v559 = vld [vmem:[%s261 + $0x31] sm:$0xff]
      %v560 = vld [vmem:[%s261 + $0x41] sm:$0xff]
      %v561 = vld [vmem:[%s261 + $0x51] sm:$0xff]
      %v562 = vld [vmem:[%s261 + $0x61] sm:$0xff]
      %v563 = vld [vmem:[%s261 + $0x71] sm:$0xff]
      %v564 = vpack.c.bf16 %v557, %v556
      %v565 = vpack.c.bf16 %v559, %v558
      %v566 = vpack.c.bf16 %v561, %v560
      %v567 = vpack.c.bf16 %v563, %v562
      %v568 = vld [vmem:[#allocation2] sm:$0xff]
      %v569 = vld [vmem:[#allocation2 + $0x8] sm:$0xff]
      %v570 = vld [vmem:[#allocation2 + $0x10] sm:$0xff]
      %v571 = vld [vmem:[#allocation2 + $0x18] sm:$0xff]
      %v572 = vld [vmem:[#allocation2 + $0x20] sm:$0xff]
      %v573 = vld [vmem:[#allocation2 + $0x28] sm:$0xff]
      %v574 = vld [vmem:[#allocation2 + $0x30] sm:$0xff]
      %v575 = vld [vmem:[#allocation2 + $0x38] sm:$0xff]
      %s576 = scalar_lea.vmem %s1, 64
      %v577 = vld [vmem:[%s576] sm:$0xf]
      %v578 = vld [vmem:[%s576 + $0x4] sm:$0xf]
      %v579 = vld [vmem:[%s576 + $0x8] sm:$0xf]
      %v580 = vld [vmem:[%s576 + $0xc] sm:$0xf]
      %v581 = vld [vmem:[%s576 + $0x10] sm:$0xf]
      %v582 = vld [vmem:[%s576 + $0x14] sm:$0xf]
      %v583 = vld [vmem:[%s576 + $0x18] sm:$0xf]
      %v584 = vld [vmem:[%s576 + $0x1c] sm:$0xf]
      %v585 = vld [vmem:[%s576 + $0x20] sm:$0xf]
      %v586 = vld [vmem:[%s576 + $0x24] sm:$0xf]
      %v587 = vld [vmem:[%s576 + $0x28] sm:$0xf]
      %v588 = vld [vmem:[%s576 + $0x2c] sm:$0xf]
      %v589 = vld [vmem:[%s576 + $0x30] sm:$0xf]
      %v590 = vld [vmem:[%s576 + $0x34] sm:$0xf]
      %v591 = vld [vmem:[%s576 + $0x38] sm:$0xf]
      %v592 = vld [vmem:[%s576 + $0x3c] sm:$0xf]
      %v609 = vunpack.c.l.b16 %v577
      %v610 = vunpack.c.l.b16 %v578
      %v611 = vunpack.c.l.b16 %v579
      %v612 = vunpack.c.l.b16 %v580
      %v613 = vunpack.c.l.b16 %v581
      %v614 = vunpack.c.l.b16 %v582
      %v615 = vunpack.c.l.b16 %v583
      %v616 = vunpack.c.l.b16 %v584
      %v617 = vunpack.c.l.b16 %v585
      %v618 = vunpack.c.l.b16 %v586
      %v619 = vunpack.c.l.b16 %v587
      %v620 = vunpack.c.l.b16 %v588
      %v621 = vunpack.c.l.b16 %v589
      %v622 = vunpack.c.l.b16 %v590
      %v623 = vunpack.c.l.b16 %v591
      %v624 = vunpack.c.l.b16 %v592
      %v625 = vpack.c.b16 %v610, %v609
      %v626 = vpack.c.b16 %v612, %v611
      %v627 = vpack.c.b16 %v614, %v613
      %v628 = vpack.c.b16 %v616, %v615
      %v629 = vpack.c.b16 %v618, %v617
      %v630 = vpack.c.b16 %v620, %v619
      %v631 = vpack.c.b16 %v622, %v621
      %v632 = vpack.c.b16 %v624, %v623
      %641 = vmatprep.subr.bf16.mxu0 0
      %642 = vmatpush1.bf16.msra.mxu0 %v625
      %643 = vmatprep.subr.bf16.mxu0 0
      %644 = vmatpush1.bf16.msra.mxu0 %v626
      %645 = vmatprep.subr.bf16.mxu0 0
      %646 = vmatpush1.bf16.msra.mxu0 %v627
      %647 = vmatprep.subr.bf16.mxu0 0
      %648 = vmatpush1.bf16.msra.mxu0 %v628
      %649 = vmatprep.subr.bf16.mxu0 0
      %650 = vmatpush1.bf16.msra.mxu0 %v629
      %651 = vmatprep.subr.bf16.mxu0 0
      %652 = vmatpush1.bf16.msra.mxu0 %v630
      %653 = vmatprep.subr.bf16.mxu0 0
      %654 = vmatpush1.bf16.msra.mxu0 %v631
      %655 = vmatprep.subr.bf16.mxu0 0
      %656 = vmatpush1.bf16.msra.mxu0 %v632
      %657 = vmatprep.subr.bf16.mxu0 0
      %658 = vmatpush1.bf16.msra.mxu0 0
      %659 = vmatprep.subr.bf16.mxu0 0
      %660 = vmatpush1.bf16.msra.mxu0 0
      %661 = vmatprep.subr.bf16.mxu0 0
      %662 = vmatpush1.bf16.msra.mxu0 0
      %663 = vmatprep.subr.bf16.mxu0 0
      %664 = vmatpush1.bf16.msra.mxu0 0
      %665 = vmatprep.subr.bf16.mxu0 0
      %666 = vmatpush1.bf16.msra.mxu0 0
      %667 = vmatprep.subr.bf16.mxu0 0
      %668 = vmatpush1.bf16.msra.mxu0 0
      %669 = vmatprep.subr.bf16.mxu0 0
      %670 = vmatpush1.bf16.msra.mxu0 0
      %671 = vmatprep.subr.bf16.mxu0 0
      %672 = vmatpush1.bf16.msra.mxu0 0
      %673 = vmatprep.mubr.bf16.mxu0 0
      %674 = vmatmul.mubr.bf16.gmra.mrb[0].mxu0 %v564
      %v675 = vpop.f32.mrb[0].mxu0
      %v676 = vadd.f32 0.0, %v675
      %v677 = vpop.f32.mrb[0].mxu0
      %v678 = vpop.f32.mrb[0].mxu0
      %v679 = vadd.f32 0.0, %v678
      %v680 = vpop.f32.mrb[0].mxu0
      %681 = vmatprep.mubr.bf16.mxu0 0
      %682 = vmatmul.mubr.bf16.gmra.mrb[0].mxu0 %v565
      %v683 = vpop.f32.mrb[0].mxu0
      %v684 = vadd.f32 0.0, %v683
      %v685 = vpop.f32.mrb[0].mxu0
      %v686 = vpop.f32.mrb[0].mxu0
      %v687 = vadd.f32 0.0, %v686
      %v688 = vpop.f32.mrb[0].mxu0
      %689 = vmatprep.mubr.bf16.mxu0 0
      %690 = vmatmul.mubr.bf16.gmra.mrb[0].mxu0 %v566
      %v691 = vpop.f32.mrb[0].mxu0
      %v692 = vadd.f32 0.0, %v691
      %v693 = vpop.f32.mrb[0].mxu0
      %v694 = vpop.f32.mrb[0].mxu0
      %v695 = vadd.f32 0.0, %v694
      %v696 = vpop.f32.mrb[0].mxu0
      %697 = vmatprep.mubr.bf16.mxu0 0
      %698 = vmatmul.mubr.bf16.gmra.mrb[0].mxu0 %v567
      %v699 = vpop.f32.mrb[0].mxu0
      %v700 = vadd.f32 0.0, %v699
      %v701 = vpop.f32.mrb[0].mxu0
      %v702 = vpop.f32.mrb[0].mxu0
      %v703 = vadd.f32 0.0, %v702
      %v704 = vpop.f32.mrb[0].mxu0
      %705 = vdwg.mxu0
      %v706 = vadd.f32 %v568, %v676
      %v707 = vadd.f32 %v569, %v679
      %v708 = vadd.f32 %v570, %v684
      %v709 = vadd.f32 %v571, %v687
      %v710 = vadd.f32 %v572, %v692
      %v711 = vadd.f32 %v573, %v695
      %v712 = vadd.f32 %v574, %v700
      %v713 = vadd.f32 %v575, %v703
      %714 = vst [vmem:[#allocation2] sm:$0xff] %v706
      %715 = vst [vmem:[#allocation2 + $0x8] sm:$0xff] %v707
      %716 = vst [vmem:[#allocation2 + $0x10] sm:$0xff] %v708
      %717 = vst [vmem:[#allocation2 + $0x18] sm:$0xff] %v709
      %718 = vst [vmem:[#allocation2 + $0x20] sm:$0xff] %v710
      %719 = vst [vmem:[#allocation2 + $0x28] sm:$0xff] %v711
      %720 = vst [vmem:[#allocation2 + $0x30] sm:$0xff] %v712
      %721 = vst [vmem:[#allocation2 + $0x38] sm:$0xff] %v713
      %v722 = vld [vmem:[%s261 + $0x2] sm:$0xff]
      %v723 = vld [vmem:[%s261 + $0x12] sm:$0xff]
      %v724 = vld [vmem:[%s261 + $0x22] sm:$0xff]
      %v725 = vld [vmem:[%s261 + $0x32] sm:$0xff]
      %v726 = vld [vmem:[%s261 + $0x42] sm:$0xff]
      %v727 = vld [vmem:[%s261 + $0x52] sm:$0xff]
      %v728 = vld [vmem:[%s261 + $0x62] sm:$0xff]
      %v729 = vld [vmem:[%s261 + $0x72] sm:$0xff]
      %v730 = vpack.c.bf16 %v723, %v722
      %v731 = vpack.c.bf16 %v725, %v724
      %v732 = vpack.c.bf16 %v727, %v726
      %v733 = vpack.c.bf16 %v729, %v728
      %v734 = vld [vmem:[#allocation2] sm:$0xff]
      %v735 = vld [vmem:[#allocation2 + $0x8] sm:$0xff]
      %v736 = vld [vmem:[#allocation2 + $0x10] sm:$0xff]
      %v737 = vld [vmem:[#allocation2 + $0x18] sm:$0xff]
      %v738 = vld [vmem:[#allocation2 + $0x20] sm:$0xff]
      %v739 = vld [vmem:[#allocation2 + $0x28] sm:$0xff]
      %v740 = vld [vmem:[#allocation2 + $0x30] sm:$0xff]
      %v741 = vld [vmem:[#allocation2 + $0x38] sm:$0xff]
      %s742 = scalar_lea.vmem %s1, 128
      %v743 = vld [vmem:[%s742] sm:$0xf]
      %v744 = vld [vmem:[%s742 + $0x4] sm:$0xf]
      %v745 = vld [vmem:[%s742 + $0x8] sm:$0xf]
      %v746 = vld [vmem:[%s742 + $0xc] sm:$0xf]
      %v747 = vld [vmem:[%s742 + $0x10] sm:$0xf]
      %v748 = vld [vmem:[%s742 + $0x14] sm:$0xf]
      %v749 = vld [vmem:[%s742 + $0x18] sm:$0xf]
      %v750 = vld [vmem:[%s742 + $0x1c] sm:$0xf]
      %v751 = vld [vmem:[%s742 + $0x20] sm:$0xf]
      %v752 = vld [vmem:[%s742 + $0x24] sm:$0xf]
      %v753 = vld [vmem:[%s742 + $0x28] sm:$0xf]
      %v754 = vld [vmem:[%s742 + $0x2c] sm:$0xf]
      %v755 = vld [vmem:[%s742 + $0x30] sm:$0xf]
      %v756 = vld [vmem:[%s742 + $0x34] sm:$0xf]
      %v757 = vld [vmem:[%s742 + $0x38] sm:$0xf]
      %v758 = vld [vmem:[%s742 + $0x3c] sm:$0xf]
      %v775 = vunpack.c.l.b16 %v743
      %v776 = vunpack.c.l.b16 %v744
      %v777 = vunpack.c.l.b16 %v745
      %v778 = vunpack.c.l.b16 %v746
      %v779 = vunpack.c.l.b16 %v747
      %v780 = vunpack.c.l.b16 %v748
      %v781 = vunpack.c.l.b16 %v749
      %v782 = vunpack.c.l.b16 %v750
      %v783 = vunpack.c.l.b16 %v751
      %v784 = vunpack.c.l.b16 %v752
      %v785 = vunpack.c.l.b16 %v753
      %v786 = vunpack.c.l.b16 %v754
      %v787 = vunpack.c.l.b16 %v755
      %v788 = vunpack.c.l.b16 %v756
      %v789 = vunpack.c.l.b16 %v757
      %v790 = vunpack.c.l.b16 %v758
      %v791 = vpack.c.b16 %v776, %v775
      %v792 = vpack.c.b16 %v778, %v777
      %v793 = vpack.c.b16 %v780, %v779
      %v794 = vpack.c.b16 %v782, %v781
      %v795 = vpack.c.b16 %v784, %v783
      %v796 = vpack.c.b16 %v786, %v785
      %v797 = vpack.c.b16 %v788, %v787
      %v798 = vpack.c.b16 %v790, %v789
      %807 = vmatprep.subr.bf16.mxu0 0
      %808 = vmatpush1.bf16.msra.mxu0 %v791
      %809 = vmatprep.subr.bf16.mxu0 0
      %810 = vmatpush1.bf16.msra.mxu0 %v792
      %811 = vmatprep.subr.bf16.mxu0 0
      %812 = vmatpush1.bf16.msra.mxu0 %v793
      %813 = vmatprep.subr.bf16.mxu0 0
      %814 = vmatpush1.bf16.msra.mxu0 %v794
      %815 = vmatprep.subr.bf16.mxu0 0
      %816 = vmatpush1.bf16.msra.mxu0 %v795
      %817 = vmatprep.subr.bf16.mxu0 0
      %818 = vmatpush1.bf16.msra.mxu0 %v796
      %819 = vmatprep.subr.bf16.mxu0 0
      %820 = vmatpush1.bf16.msra.mxu0 %v797
      %821 = vmatprep.subr.bf16.mxu0 0
      %822 = vmatpush1.bf16.msra.mxu0 %v798
      %823 = vmatprep.subr.bf16.mxu0 0
      %824 = vmatpush1.bf16.msra.mxu0 0
      %825 = vmatprep.subr.bf16.mxu0 0
      %826 = vmatpush1.bf16.msra.mxu0 0
      %827 = vmatprep.subr.bf16.mxu0 0
      %828 = vmatpush1.bf16.msra.mxu0 0
      %829 = vmatprep.subr.bf16.mxu0 0
      %830 = vmatpush1.bf16.msra.mxu0 0
      %831 = vmatprep.subr.bf16.mxu0 0
      %832 = vmatpush1.bf16.msra.mxu0 0
      %833 = vmatprep.subr.bf16.mxu0 0
      %834 = vmatpush1.bf16.msra.mxu0 0
      %835 = vmatprep.subr.bf16.mxu0 0
      %836 = vmatpush1.bf16.msra.mxu0 0
      %837 = vmatprep.subr.bf16.mxu0 0
      %838 = vmatpush1.bf16.msra.mxu0 0
      %839 = vmatprep.mubr.bf16.mxu0 0
      %840 = vmatmul.mubr.bf16.gmra.mrb[0].mxu0 %v730
      %v841 = vpop.f32.mrb[0].mxu0
      %v842 = vadd.f32 0.0, %v841
      %v843 = vpop.f32.mrb[0].mxu0
      %v844 = vpop.f32.mrb[0].mxu0
      %v845 = vadd.f32 0.0, %v844
      %v846 = vpop.f32.mrb[0].mxu0
      %847 = vmatprep.mubr.bf16.mxu0 0
      %848 = vmatmul.mubr.bf16.gmra.mrb[0].mxu0 %v731
      %v849 = vpop.f32.mrb[0].mxu0
      %v850 = vadd.f32 0.0, %v849
      %v851 = vpop.f32.mrb[0].mxu0
      %v852 = vpop.f32.mrb[0].mxu0
      %v853 = vadd.f32 0.0, %v852
      %v854 = vpop.f32.mrb[0].mxu0
      %855 = vmatprep.mubr.bf16.mxu0 0
      %856 = vmatmul.mubr.bf16.gmra.mrb[0].mxu0 %v732
      %v857 = vpop.f32.mrb[0].mxu0
      %v858 = vadd.f32 0.0, %v857
      %v859 = vpop.f32.mrb[0].mxu0
      %v860 = vpop.f32.mrb[0].mxu0
      %v861 = vadd.f32 0.0, %v860
      %v862 = vpop.f32.mrb[0].mxu0
      %863 = vmatprep.mubr.bf16.mxu0 0
      %864 = vmatmul.mubr.bf16.gmra.mrb[0].mxu0 %v733
      %v865 = vpop.f32.mrb[0].mxu0
      %v866 = vadd.f32 0.0, %v865
      %v867 = vpop.f32.mrb[0].mxu0
      %v868 = vpop.f32.mrb[0].mxu0
      %v869 = vadd.f32 0.0, %v868
      %v870 = vpop.f32.mrb[0].mxu0
      %871 = vdwg.mxu0
      %v872 = vadd.f32 %v734, %v842
      %v873 = vadd.f32 %v735, %v845
      %v874 = vadd.f32 %v736, %v850
      %v875 = vadd.f32 %v737, %v853
      %v876 = vadd.f32 %v738, %v858
      %v877 = vadd.f32 %v739, %v861
      %v878 = vadd.f32 %v740, %v866
      %v879 = vadd.f32 %v741, %v869
      %880 = vst [vmem:[#allocation2] sm:$0xff] %v872
      %881 = vst [vmem:[#allocation2 + $0x8] sm:$0xff] %v873
      %882 = vst [vmem:[#allocation2 + $0x10] sm:$0xff] %v874
      %883 = vst [vmem:[#allocation2 + $0x18] sm:$0xff] %v875
      %884 = vst [vmem:[#allocation2 + $0x20] sm:$0xff] %v876
      %885 = vst [vmem:[#allocation2 + $0x28] sm:$0xff] %v877
      %886 = vst [vmem:[#allocation2 + $0x30] sm:$0xff] %v878
      %887 = vst [vmem:[#allocation2 + $0x38] sm:$0xff] %v879
      %s888 = scalar_lea.vmem %s261, 16
      %v889 = vld [vmem:[%s888] sm:$0xff]
      %v890 = vld [vmem:[%s888 + $0x10] sm:$0xff]
      %v891 = vld [vmem:[%s888 + $0x20] sm:$0xff]
      %v892 = vld [vmem:[%s888 + $0x30] sm:$0xff]
      %v893 = vld [vmem:[%s888 + $0x40] sm:$0xff]
      %v894 = vld [vmem:[%s888 + $0x50] sm:$0xff]
      %v895 = vld [vmem:[%s888 + $0x60] sm:$0xff]
      %v896 = vld [vmem:[%s888 + $0x70] sm:$0xff]
      %v897 = vpack.c.bf16 %v890, %v889
      %v898 = vpack.c.bf16 %v892, %v891
      %v899 = vpack.c.bf16 %v894, %v893
      %v900 = vpack.c.bf16 %v896, %v895
      %v901 = vld [vmem:[#allocation2] sm:$0xff]
      %v902 = vld [vmem:[#allocation2 + $0x8] sm:$0xff]
      %v903 = vld [vmem:[#allocation2 + $0x10] sm:$0xff]
      %v904 = vld [vmem:[#allocation2 + $0x18] sm:$0xff]
      %v905 = vld [vmem:[#allocation2 + $0x20] sm:$0xff]
      %v906 = vld [vmem:[#allocation2 + $0x28] sm:$0xff]
      %v907 = vld [vmem:[#allocation2 + $0x30] sm:$0xff]
      %v908 = vld [vmem:[#allocation2 + $0x38] sm:$0xff]
      %s909 = scalar_lea.vmem %s1, 192
      %v910 = vld [vmem:[%s909] sm:$0xf]
      %v911 = vld [vmem:[%s909 + $0x4] sm:$0xf]
      %v912 = vld [vmem:[%s909 + $0x8] sm:$0xf]
      %v913 = vld [vmem:[%s909 + $0xc] sm:$0xf]
      %v914 = vld [vmem:[%s909 + $0x10] sm:$0xf]
      %v915 = vld [vmem:[%s909 + $0x14] sm:$0xf]
      %v916 = vld [vmem:[%s909 + $0x18] sm:$0xf]
      %v917 = vld [vmem:[%s909 + $0x1c] sm:$0xf]
      %v918 = vld [vmem:[%s909 + $0x20] sm:$0xf]
      %v919 = vld [vmem:[%s909 + $0x24] sm:$0xf]
      %v920 = vld [vmem:[%s909 + $0x28] sm:$0xf]
      %v921 = vld [vmem:[%s909 + $0x2c] sm:$0xf]
      %v922 = vld [vmem:[%s909 + $0x30] sm:$0xf]
      %v923 = vld [vmem:[%s909 + $0x34] sm:$0xf]
      %v924 = vld [vmem:[%s909 + $0x38] sm:$0xf]
      %v925 = vld [vmem:[%s909 + $0x3c] sm:$0xf]
      %v942 = vunpack.c.l.b16 %v910
      %v943 = vunpack.c.l.b16 %v911
      %v944 = vunpack.c.l.b16 %v912
      %v945 = vunpack.c.l.b16 %v913
      %v946 = vunpack.c.l.b16 %v914
      %v947 = vunpack.c.l.b16 %v915
      %v948 = vunpack.c.l.b16 %v916
      %v949 = vunpack.c.l.b16 %v917
      %v950 = vunpack.c.l.b16 %v918
      %v951 = vunpack.c.l.b16 %v919
      %v952 = vunpack.c.l.b16 %v920
      %v953 = vunpack.c.l.b16 %v921
      %v954 = vunpack.c.l.b16 %v922
      %v955 = vunpack.c.l.b16 %v923
      %v956 = vunpack.c.l.b16 %v924
      %v957 = vunpack.c.l.b16 %v925
      %v958 = vpack.c.b16 %v943, %v942
      %v959 = vpack.c.b16 %v945, %v944
      %v960 = vpack.c.b16 %v947, %v946
      %v961 = vpack.c.b16 %v949, %v948
      %v962 = vpack.c.b16 %v951, %v950
      %v963 = vpack.c.b16 %v953, %v952
      %v964 = vpack.c.b16 %v955, %v954
      %v965 = vpack.c.b16 %v957, %v956
      %974 = vmatprep.subr.bf16.mxu0 0
      %975 = vmatpush1.bf16.msra.mxu0 %v958
      %976 = vmatprep.subr.bf16.mxu0 0
      %977 = vmatpush1.bf16.msra.mxu0 %v959
      %978 = vmatprep.subr.bf16.mxu0 0
      %979 = vmatpush1.bf16.msra.mxu0 %v960
      %980 = vmatprep.subr.bf16.mxu0 0
      %981 = vmatpush1.bf16.msra.mxu0 %v961
      %982 = vmatprep.subr.bf16.mxu0 0
      %983 = vmatpush1.bf16.msra.mxu0 %v962
      %984 = vmatprep.subr.bf16.mxu0 0
      %985 = vmatpush1.bf16.msra.mxu0 %v963
      %986 = vmatprep.subr.bf16.mxu0 0
      %987 = vmatpush1.bf16.msra.mxu0 %v964
      %988 = vmatprep.subr.bf16.mxu0 0
      %989 = vmatpush1.bf16.msra.mxu0 %v965
      %990 = vmatprep.subr.bf16.mxu0 0
      %991 = vmatpush1.bf16.msra.mxu0 0
      %992 = vmatprep.subr.bf16.mxu0 0
      %993 = vmatpush1.bf16.msra.mxu0 0
      %994 = vmatprep.subr.bf16.mxu0 0
      %995 = vmatpush1.bf16.msra.mxu0 0
      %996 = vmatprep.subr.bf16.mxu0 0
      %997 = vmatpush1.bf16.msra.mxu0 0
      %998 = vmatprep.subr.bf16.mxu0 0
      %999 = vmatpush1.bf16.msra.mxu0 0
      %1000 = vmatprep.subr.bf16.mxu0 0
      %1001 = vmatpush1.bf16.msra.mxu0 0
      %1002 = vmatprep.subr.bf16.mxu0 0
      %1003 = vmatpush1.bf16.msra.mxu0 0
      %1004 = vmatprep.subr.bf16.mxu0 0
      %1005 = vmatpush1.bf16.msra.mxu0 0
      %1006 = vmatprep.mubr.bf16.mxu0 0
      %1007 = vmatmul.mubr.bf16.gmra.mrb[0].mxu0 %v897
      %v1008 = vpop.f32.mrb[0].mxu0
      %v1009 = vadd.f32 0.0, %v1008
      %v1010 = vpop.f32.mrb[0].mxu0
      %v1011 = vpop.f32.mrb[0].mxu0
      %v1012 = vadd.f32 0.0, %v1011
      %v1013 = vpop.f32.mrb[0].mxu0
      %1014 = vmatprep.mubr.bf16.mxu0 0
      %1015 = vmatmul.mubr.bf16.gmra.mrb[0].mxu0 %v898
      %v1016 = vpop.f32.mrb[0].mxu0
      %v1017 = vadd.f32 0.0, %v1016
      %v1018 = vpop.f32.mrb[0].mxu0
      %v1019 = vpop.f32.mrb[0].mxu0
      %v1020 = vadd.f32 0.0, %v1019
      %v1021 = vpop.f32.mrb[0].mxu0
      %1022 = vmatprep.mubr.bf16.mxu0 0
      %1023 = vmatmul.mubr.bf16.gmra.mrb[0].mxu0 %v899
      %v1024 = vpop.f32.mrb[0].mxu0
      %v1025 = vadd.f32 0.0, %v1024
      %v1026 = vpop.f32.mrb[0].mxu0
      %v1027 = vpop.f32.mrb[0].mxu0
      %v1028 = vadd.f32 0.0, %v1027
      %v1029 = vpop.f32.mrb[0].mxu0
      %1030 = vmatprep.mubr.bf16.mxu0 0
      %1031 = vmatmul.mubr.bf16.gmra.mrb[0].mxu0 %v900
      %v1032 = vpop.f32.mrb[0].mxu0
      %v1033 = vadd.f32 0.0, %v1032
      %v1034 = vpop.f32.mrb[0].mxu0
      %v1035 = vpop.f32.mrb[0].mxu0
      %v1036 = vadd.f32 0.0, %v1035
      %v1037 = vpop.f32.mrb[0].mxu0
      %1038 = vdwg.mxu0
      %v1039 = vadd.f32 %v901, %v1009
      %v1040 = vadd.f32 %v902, %v1012
      %v1041 = vadd.f32 %v903, %v1017
      %v1042 = vadd.f32 %v904, %v1020
      %v1043 = vadd.f32 %v905, %v1025
      %v1044 = vadd.f32 %v906, %v1028
      %v1045 = vadd.f32 %v907, %v1033
      %v1046 = vadd.f32 %v908, %v1036
      %1047 = vst [vmem:[#allocation2] sm:$0xff] %v1039
      %1048 = vst [vmem:[#allocation2 + $0x8] sm:$0xff] %v1040
      %1049 = vst [vmem:[#allocation2 + $0x10] sm:$0xff] %v1041
      %1050 = vst [vmem:[#allocation2 + $0x18] sm:$0xff] %v1042
      %1051 = vst [vmem:[#allocation2 + $0x20] sm:$0xff] %v1043
      %1052 = vst [vmem:[#allocation2 + $0x28] sm:$0xff] %v1044
      %1053 = vst [vmem:[#allocation2 + $0x30] sm:$0xff] %v1045
      %1054 = vst [vmem:[#allocation2 + $0x38] sm:$0xff] %v1046
      %v1055 = vld [vmem:[%s888 + $0x1] sm:$0xff]
      %v1056 = vld [vmem:[%s888 + $0x11] sm:$0xff]
      %v1057 = vld [vmem:[%s888 + $0x21] sm:$0xff]
      %v1058 = vld [vmem:[%s888 + $0x31] sm:$0xff]
      %v1059 = vld [vmem:[%s888 + $0x41] sm:$0xff]
      %v1060 = vld [vmem:[%s888 + $0x51] sm:$0xff]
      %v1061 = vld [vmem:[%s888 + $0x61] sm:$0xff]
      %v1062 = vld [vmem:[%s888 + $0x71] sm:$0xff]
      %v1063 = vpack.c.bf16 %v1056, %v1055
      %v1064 = vpack.c.bf16 %v1058, %v1057
      %v1065 = vpack.c.bf16 %v1060, %v1059
      %v1066 = vpack.c.bf16 %v1062, %v1061
      %v1067 = vld [vmem:[#allocation2] sm:$0xff]
      %v1068 = vld [vmem:[#allocation2 + $0x8] sm:$0xff]
      %v1069 = vld [vmem:[#allocation2 + $0x10] sm:$0xff]
      %v1070 = vld [vmem:[#allocation2 + $0x18] sm:$0xff]
      %v1071 = vld [vmem:[#allocation2 + $0x20] sm:$0xff]
      %v1072 = vld [vmem:[#allocation2 + $0x28] sm:$0xff]
      %v1073 = vld [vmem:[#allocation2 + $0x30] sm:$0xff]
      %v1074 = vld [vmem:[#allocation2 + $0x38] sm:$0xff]
      %s1075 = scalar_lea.vmem %s1, 256
      %v1076 = vld [vmem:[%s1075] sm:$0xf]
      %v1077 = vld [vmem:[%s1075 + $0x4] sm:$0xf]
      %v1078 = vld [vmem:[%s1075 + $0x8] sm:$0xf]
      %v1079 = vld [vmem:[%s1075 + $0xc] sm:$0xf]
      %v1080 = vld [vmem:[%s1075 + $0x10] sm:$0xf]
      %v1081 = vld [vmem:[%s1075 + $0x14] sm:$0xf]
      %v1082 = vld [vmem:[%s1075 + $0x18] sm:$0xf]
      %v1083 = vld [vmem:[%s1075 + $0x1c] sm:$0xf]
      %v1084 = vld [vmem:[%s1075 + $0x20] sm:$0xf]
      %v1085 = vld [vmem:[%s1075 + $0x24] sm:$0xf]
      %v1086 = vld [vmem:[%s1075 + $0x28] sm:$0xf]
      %v1087 = vld [vmem:[%s1075 + $0x2c] sm:$0xf]
      %v1088 = vld [vmem:[%s1075 + $0x30] sm:$0xf]
      %v1089 = vld [vmem:[%s1075 + $0x34] sm:$0xf]
      %v1090 = vld [vmem:[%s1075 + $0x38] sm:$0xf]
      %v1091 = vld [vmem:[%s1075 + $0x3c] sm:$0xf]
      %v1108 = vunpack.c.l.b16 %v1076
      %v1109 = vunpack.c.l.b16 %v1077
      %v1110 = vunpack.c.l.b16 %v1078
      %v1111 = vunpack.c.l.b16 %v1079
      %v1112 = vunpack.c.l.b16 %v1080
      %v1113 = vunpack.c.l.b16 %v1081
      %v1114 = vunpack.c.l.b16 %v1082
      %v1115 = vunpack.c.l.b16 %v1083
      %v1116 = vunpack.c.l.b16 %v1084
      %v1117 = vunpack.c.l.b16 %v1085
      %v1118 = vunpack.c.l.b16 %v1086
      %v1119 = vunpack.c.l.b16 %v1087
      %v1120 = vunpack.c.l.b16 %v1088
      %v1121 = vunpack.c.l.b16 %v1089
      %v1122 = vunpack.c.l.b16 %v1090
      %v1123 = vunpack.c.l.b16 %v1091
      %v1124 = vpack.c.b16 %v1109, %v1108
      %v1125 = vpack.c.b16 %v1111, %v1110
      %v1126 = vpack.c.b16 %v1113, %v1112
      %v1127 = vpack.c.b16 %v1115, %v1114
      %v1128 = vpack.c.b16 %v1117, %v1116
      %v1129 = vpack.c.b16 %v1119, %v1118
      %v1130 = vpack.c.b16 %v1121, %v1120
      %v1131 = vpack.c.b16 %v1123, %v1122
      %1140 = vmatprep.subr.bf16.mxu0 0
      %1141 = vmatpush1.bf16.msra.mxu0 %v1124
      %1142 = vmatprep.subr.bf16.mxu0 0
      %1143 = vmatpush1.bf16.msra.mxu0 %v1125
      %1144 = vmatprep.subr.bf16.mxu0 0
      %1145 = vmatpush1.bf16.msra.mxu0 %v1126
      %1146 = vmatprep.subr.bf16.mxu0 0
      %1147 = vmatpush1.bf16.msra.mxu0 %v1127
      %1148 = vmatprep.subr.bf16.mxu0 0
      %1149 = vmatpush1.bf16.msra.mxu0 %v1128
      %1150 = vmatprep.subr.bf16.mxu0 0
      %1151 = vmatpush1.bf16.msra.mxu0 %v1129
      %1152 = vmatprep.subr.bf16.mxu0 0
      %1153 = vmatpush1.bf16.msra.mxu0 %v1130
      %1154 = vmatprep.subr.bf16.mxu0 0
      %1155 = vmatpush1.bf16.msra.mxu0 %v1131
      %1156 = vmatprep.subr.bf16.mxu0 0
      %1157 = vmatpush1.bf16.msra.mxu0 0
      %1158 = vmatprep.subr.bf16.mxu0 0
      %1159 = vmatpush1.bf16.msra.mxu0 0
      %1160 = vmatprep.subr.bf16.mxu0 0
      %1161 = vmatpush1.bf16.msra.mxu0 0
      %1162 = vmatprep.subr.bf16.mxu0 0
      %1163 = vmatpush1.bf16.msra.mxu0 0
      %1164 = vmatprep.subr.bf16.mxu0 0
      %1165 = vmatpush1.bf16.msra.mxu0 0
      %1166 = vmatprep.subr.bf16.mxu0 0
      %1167 = vmatpush1.bf16.msra.mxu0 0
      %1168 = vmatprep.subr.bf16.mxu0 0
      %1169 = vmatpush1.bf16.msra.mxu0 0
      %1170 = vmatprep.subr.bf16.mxu0 0
      %1171 = vmatpush1.bf16.msra.mxu0 0
      %1172 = vmatprep.mubr.bf16.mxu0 0
      %1173 = vmatmul.mubr.bf16.gmra.mrb[0].mxu0 %v1063
      %v1174 = vpop.f32.mrb[0].mxu0
      %v1175 = vadd.f32 0.0, %v1174
      %v1176 = vpop.f32.mrb[0].mxu0
      %v1177 = vpop.f32.mrb[0].mxu0
      %v1178 = vadd.f32 0.0, %v1177
      %v1179 = vpop.f32.mrb[0].mxu0
      %1180 = vmatprep.mubr.bf16.mxu0 0
      %1181 = vmatmul.mubr.bf16.gmra.mrb[0].mxu0 %v1064
      %v1182 = vpop.f32.mrb[0].mxu0
      %v1183 = vadd.f32 0.0, %v1182
      %v1184 = vpop.f32.mrb[0].mxu0
      %v1185 = vpop.f32.mrb[0].mxu0
      %v1186 = vadd.f32 0.0, %v1185
      %v1187 = vpop.f32.mrb[0].mxu0
      %1188 = vmatprep.mubr.bf16.mxu0 0
      %1189 = vmatmul.mubr.bf16.gmra.mrb[0].mxu0 %v1065
      %v1190 = vpop.f32.mrb[0].mxu0
      %v1191 = vadd.f32 0.0, %v1190
      %v1192 = vpop.f32.mrb[0].mxu0
      %v1193 = vpop.f32.mrb[0].mxu0
      %v1194 = vadd.f32 0.0, %v1193
      %v1195 = vpop.f32.mrb[0].mxu0
      %1196 = vmatprep.mubr.bf16.mxu0 0
      %1197 = vmatmul.mubr.bf16.gmra.mrb[0].mxu0 %v1066
      %v1198 = vpop.f32.mrb[0].mxu0
      %v1199 = vadd.f32 0.0, %v1198
      %v1200 = vpop.f32.mrb[0].mxu0
      %v1201 = vpop.f32.mrb[0].mxu0
      %v1202 = vadd.f32 0.0, %v1201
      %v1203 = vpop.f32.mrb[0].mxu0
      %1204 = vdwg.mxu0
      %v1205 = vadd.f32 %v1067, %v1175
      %v1206 = vadd.f32 %v1068, %v1178
      %v1207 = vadd.f32 %v1069, %v1183
      %v1208 = vadd.f32 %v1070, %v1186
      %v1209 = vadd.f32 %v1071, %v1191
      %v1210 = vadd.f32 %v1072, %v1194
      %v1211 = vadd.f32 %v1073, %v1199
      %v1212 = vadd.f32 %v1074, %v1202
      %1213 = vst [vmem:[#allocation2] sm:$0xff] %v1205
      %1214 = vst [vmem:[#allocation2 + $0x8] sm:$0xff] %v1206
      %1215 = vst [vmem:[#allocation2 + $0x10] sm:$0xff] %v1207
      %1216 = vst [vmem:[#allocation2 + $0x18] sm:$0xff] %v1208
      %1217 = vst [vmem:[#allocation2 + $0x20] sm:$0xff] %v1209
      %1218 = vst [vmem:[#allocation2 + $0x28] sm:$0xff] %v1210
      %1219 = vst [vmem:[#allocation2 + $0x30] sm:$0xff] %v1211
      %1220 = vst [vmem:[#allocation2 + $0x38] sm:$0xff] %v1212
      %v1221 = vld [vmem:[%s888 + $0x2] sm:$0xff]
      %v1222 = vld [vmem:[%s888 + $0x12] sm:$0xff]
      %v1223 = vld [vmem:[%s888 + $0x22] sm:$0xff]
      %v1224 = vld [vmem:[%s888 + $0x32] sm:$0xff]
      %v1225 = vld [vmem:[%s888 + $0x42] sm:$0xff]
      %v1226 = vld [vmem:[%s888 + $0x52] sm:$0xff]
      %v1227 = vld [vmem:[%s888 + $0x62] sm:$0xff]
      %v1228 = vld [vmem:[%s888 + $0x72] sm:$0xff]
      %v1229 = vpack.c.bf16 %v1222, %v1221
      %v1230 = vpack.c.bf16 %v1224, %v1223
      %v1231 = vpack.c.bf16 %v1226, %v1225
      %v1232 = vpack.c.bf16 %v1228, %v1227
      %v1233 = vld [vmem:[#allocation2] sm:$0xff]
      %v1234 = vld [vmem:[#allocation2 + $0x8] sm:$0xff]
      %v1235 = vld [vmem:[#allocation2 + $0x10] sm:$0xff]
      %v1236 = vld [vmem:[#allocation2 + $0x18] sm:$0xff]
      %v1237 = vld [vmem:[#allocation2 + $0x20] sm:$0xff]
      %v1238 = vld [vmem:[#allocation2 + $0x28] sm:$0xff]
      %v1239 = vld [vmem:[#allocation2 + $0x30] sm:$0xff]
      %v1240 = vld [vmem:[#allocation2 + $0x38] sm:$0xff]
      %s1241 = scalar_lea.vmem %s1, 320
      %v1242 = vld [vmem:[%s1241] sm:$0xf]
      %v1243 = vld [vmem:[%s1241 + $0x4] sm:$0xf]
      %v1244 = vld [vmem:[%s1241 + $0x8] sm:$0xf]
      %v1245 = vld [vmem:[%s1241 + $0xc] sm:$0xf]
      %v1246 = vld [vmem:[%s1241 + $0x10] sm:$0xf]
      %v1247 = vld [vmem:[%s1241 + $0x14] sm:$0xf]
      %v1248 = vld [vmem:[%s1241 + $0x18] sm:$0xf]
      %v1249 = vld [vmem:[%s1241 + $0x1c] sm:$0xf]
      %v1250 = vld [vmem:[%s1241 + $0x20] sm:$0xf]
      %v1251 = vld [vmem:[%s1241 + $0x24] sm:$0xf]
      %v1252 = vld [vmem:[%s1241 + $0x28] sm:$0xf]
      %v1253 = vld [vmem:[%s1241 + $0x2c] sm:$0xf]
      %v1254 = vld [vmem:[%s1241 + $0x30] sm:$0xf]
      %v1255 = vld [vmem:[%s1241 + $0x34] sm:$0xf]
      %v1256 = vld [vmem:[%s1241 + $0x38] sm:$0xf]
      %v1257 = vld [vmem:[%s1241 + $0x3c] sm:$0xf]
      %v1274 = vunpack.c.l.b16 %v1242
      %v1275 = vunpack.c.l.b16 %v1243
      %v1276 = vunpack.c.l.b16 %v1244
      %v1277 = vunpack.c.l.b16 %v1245
      %v1278 = vunpack.c.l.b16 %v1246
      %v1279 = vunpack.c.l.b16 %v1247
      %v1280 = vunpack.c.l.b16 %v1248
      %v1281 = vunpack.c.l.b16 %v1249
      %v1282 = vunpack.c.l.b16 %v1250
      %v1283 = vunpack.c.l.b16 %v1251
      %v1284 = vunpack.c.l.b16 %v1252
      %v1285 = vunpack.c.l.b16 %v1253
      %v1286 = vunpack.c.l.b16 %v1254
      %v1287 = vunpack.c.l.b16 %v1255
      %v1288 = vunpack.c.l.b16 %v1256
      %v1289 = vunpack.c.l.b16 %v1257
      %v1290 = vpack.c.b16 %v1275, %v1274
      %v1291 = vpack.c.b16 %v1277, %v1276
      %v1292 = vpack.c.b16 %v1279, %v1278
      %v1293 = vpack.c.b16 %v1281, %v1280
      %v1294 = vpack.c.b16 %v1283, %v1282
      %v1295 = vpack.c.b16 %v1285, %v1284
      %v1296 = vpack.c.b16 %v1287, %v1286
      %v1297 = vpack.c.b16 %v1289, %v1288
      %1306 = vmatprep.subr.bf16.mxu0 0
      %1307 = vmatpush1.bf16.msra.mxu0 %v1290
      %1308 = vmatprep.subr.bf16.mxu0 0
      %1309 = vmatpush1.bf16.msra.mxu0 %v1291
      %1310 = vmatprep.subr.bf16.mxu0 0
      %1311 = vmatpush1.bf16.msra.mxu0 %v1292
      %1312 = vmatprep.subr.bf16.mxu0 0
      %1313 = vmatpush1.bf16.msra.mxu0 %v1293
      %1314 = vmatprep.subr.bf16.mxu0 0
      %1315 = vmatpush1.bf16.msra.mxu0 %v1294
      %1316 = vmatprep.subr.bf16.mxu0 0
      %1317 = vmatpush1.bf16.msra.mxu0 %v1295
      %1318 = vmatprep.subr.bf16.mxu0 0
      %1319 = vmatpush1.bf16.msra.mxu0 %v1296
      %1320 = vmatprep.subr.bf16.mxu0 0
      %1321 = vmatpush1.bf16.msra.mxu0 %v1297
      %1322 = vmatprep.subr.bf16.mxu0 0
      %1323 = vmatpush1.bf16.msra.mxu0 0
      %1324 = vmatprep.subr.bf16.mxu0 0
      %1325 = vmatpush1.bf16.msra.mxu0 0
      %1326 = vmatprep.subr.bf16.mxu0 0
      %1327 = vmatpush1.bf16.msra.mxu0 0
      %1328 = vmatprep.subr.bf16.mxu0 0
      %1329 = vmatpush1.bf16.msra.mxu0 0
      %1330 = vmatprep.subr.bf16.mxu0 0
      %1331 = vmatpush1.bf16.msra.mxu0 0
      %1332 = vmatprep.subr.bf16.mxu0 0
      %1333 = vmatpush1.bf16.msra.mxu0 0
      %1334 = vmatprep.subr.bf16.mxu0 0
      %1335 = vmatpush1.bf16.msra.mxu0 0
      %1336 = vmatprep.subr.bf16.mxu0 0
      %1337 = vmatpush1.bf16.msra.mxu0 0
      %1338 = vmatprep.mubr.bf16.mxu0 0
      %1339 = vmatmul.mubr.bf16.gmra.mrb[0].mxu0 %v1229
      %v1340 = vpop.f32.mrb[0].mxu0
      %v1341 = vadd.f32 0.0, %v1340
      %v1342 = vpop.f32.mrb[0].mxu0
      %v1343 = vpop.f32.mrb[0].mxu0
      %v1344 = vadd.f32 0.0, %v1343
      %v1345 = vpop.f32.mrb[0].mxu0
      %1346 = vmatprep.mubr.bf16.mxu0 0
      %1347 = vmatmul.mubr.bf16.gmra.mrb[0].mxu0 %v1230
      %v1348 = vpop.f32.mrb[0].mxu0
      %v1349 = vadd.f32 0.0, %v1348
      %v1350 = vpop.f32.mrb[0].mxu0
      %v1351 = vpop.f32.mrb[0].mxu0
      %v1352 = vadd.f32 0.0, %v1351
      %v1353 = vpop.f32.mrb[0].mxu0
      %1354 = vmatprep.mubr.bf16.mxu0 0
      %1355 = vmatmul.mubr.bf16.gmra.mrb[0].mxu0 %v1231
      %v1356 = vpop.f32.mrb[0].mxu0
      %v1357 = vadd.f32 0.0, %v1356
      %v1358 = vpop.f32.mrb[0].mxu0
      %v1359 = vpop.f32.mrb[0].mxu0
      %v1360 = vadd.f32 0.0, %v1359
      %v1361 = vpop.f32.mrb[0].mxu0
      %1362 = vmatprep.mubr.bf16.mxu0 0
      %1363 = vmatmul.mubr.bf16.gmra.mrb[0].mxu0 %v1232
      %v1364 = vpop.f32.mrb[0].mxu0
      %v1365 = vadd.f32 0.0, %v1364
      %v1366 = vpop.f32.mrb[0].mxu0
      %v1367 = vpop.f32.mrb[0].mxu0
      %v1368 = vadd.f32 0.0, %v1367
      %v1369 = vpop.f32.mrb[0].mxu0
      %1370 = vdwg.mxu0
      %v1371 = vadd.f32 %v1233, %v1341
      %v1372 = vadd.f32 %v1234, %v1344
      %v1373 = vadd.f32 %v1235, %v1349
      %v1374 = vadd.f32 %v1236, %v1352
      %v1375 = vadd.f32 %v1237, %v1357
      %v1376 = vadd.f32 %v1238, %v1360
      %v1377 = vadd.f32 %v1239, %v1365
      %v1378 = vadd.f32 %v1240, %v1368
      %1379 = vst [vmem:[#allocation2] sm:$0xff] %v1371
      %1380 = vst [vmem:[#allocation2 + $0x8] sm:$0xff] %v1372
      %1381 = vst [vmem:[#allocation2 + $0x10] sm:$0xff] %v1373
      %1382 = vst [vmem:[#allocation2 + $0x18] sm:$0xff] %v1374
      %1383 = vst [vmem:[#allocation2 + $0x20] sm:$0xff] %v1375
      %1384 = vst [vmem:[#allocation2 + $0x28] sm:$0xff] %v1376
      %1385 = vst [vmem:[#allocation2 + $0x30] sm:$0xff] %v1377
      %1386 = vst [vmem:[#allocation2 + $0x38] sm:$0xff] %v1378
      %s1387 = scalar_lea.vmem %s261, 32
      %v1388 = vld [vmem:[%s1387] sm:$0xff]
      %v1389 = vld [vmem:[%s1387 + $0x10] sm:$0xff]
      %v1390 = vld [vmem:[%s1387 + $0x20] sm:$0xff]
      %v1391 = vld [vmem:[%s1387 + $0x30] sm:$0xff]
      %v1392 = vld [vmem:[%s1387 + $0x40] sm:$0xff]
      %v1393 = vld [vmem:[%s1387 + $0x50] sm:$0xff]
      %v1394 = vld [vmem:[%s1387 + $0x60] sm:$0xff]
      %v1395 = vld [vmem:[%s1387 + $0x70] sm:$0xff]
      %v1396 = vpack.c.bf16 %v1389, %v1388
      %v1397 = vpack.c.bf16 %v1391, %v1390
      %v1398 = vpack.c.bf16 %v1393, %v1392
      %v1399 = vpack.c.bf16 %v1395, %v1394
      %v1400 = vld [vmem:[#allocation2] sm:$0xff]
      %v1401 = vld [vmem:[#allocation2 + $0x8] sm:$0xff]
      %v1402 = vld [vmem:[#allocation2 + $0x10] sm:$0xff]
      %v1403 = vld [vmem:[#allocation2 + $0x18] sm:$0xff]
      %v1404 = vld [vmem:[#allocation2 + $0x20] sm:$0xff]
      %v1405 = vld [vmem:[#allocation2 + $0x28] sm:$0xff]
      %v1406 = vld [vmem:[#allocation2 + $0x30] sm:$0xff]
      %v1407 = vld [vmem:[#allocation2 + $0x38] sm:$0xff]
      %s1408 = scalar_lea.vmem %s1, 384
      %v1409 = vld [vmem:[%s1408] sm:$0xf]
      %v1410 = vld [vmem:[%s1408 + $0x4] sm:$0xf]
      %v1411 = vld [vmem:[%s1408 + $0x8] sm:$0xf]
      %v1412 = vld [vmem:[%s1408 + $0xc] sm:$0xf]
      %v1413 = vld [vmem:[%s1408 + $0x10] sm:$0xf]
      %v1414 = vld [vmem:[%s1408 + $0x14] sm:$0xf]
      %v1415 = vld [vmem:[%s1408 + $0x18] sm:$0xf]
      %v1416 = vld [vmem:[%s1408 + $0x1c] sm:$0xf]
      %v1417 = vld [vmem:[%s1408 + $0x20] sm:$0xf]
      %v1418 = vld [vmem:[%s1408 + $0x24] sm:$0xf]
      %v1419 = vld [vmem:[%s1408 + $0x28] sm:$0xf]
      %v1420 = vld [vmem:[%s1408 + $0x2c] sm:$0xf]
      %v1421 = vld [vmem:[%s1408 + $0x30] sm:$0xf]
      %v1422 = vld [vmem:[%s1408 + $0x34] sm:$0xf]
      %v1423 = vld [vmem:[%s1408 + $0x38] sm:$0xf]
      %v1424 = vld [vmem:[%s1408 + $0x3c] sm:$0xf]
      %v1441 = vunpack.c.l.b16 %v1409
      %v1442 = vunpack.c.l.b16 %v1410
      %v1443 = vunpack.c.l.b16 %v1411
      %v1444 = vunpack.c.l.b16 %v1412
      %v1445 = vunpack.c.l.b16 %v1413
      %v1446 = vunpack.c.l.b16 %v1414
      %v1447 = vunpack.c.l.b16 %v1415
      %v1448 = vunpack.c.l.b16 %v1416
      %v1449 = vunpack.c.l.b16 %v1417
      %v1450 = vunpack.c.l.b16 %v1418
      %v1451 = vunpack.c.l.b16 %v1419
      %v1452 = vunpack.c.l.b16 %v1420
      %v1453 = vunpack.c.l.b16 %v1421
      %v1454 = vunpack.c.l.b16 %v1422
      %v1455 = vunpack.c.l.b16 %v1423
      %v1456 = vunpack.c.l.b16 %v1424
      %v1457 = vpack.c.b16 %v1442, %v1441
      %v1458 = vpack.c.b16 %v1444, %v1443
      %v1459 = vpack.c.b16 %v1446, %v1445
      %v1460 = vpack.c.b16 %v1448, %v1447
      %v1461 = vpack.c.b16 %v1450, %v1449
      %v1462 = vpack.c.b16 %v1452, %v1451
      %v1463 = vpack.c.b16 %v1454, %v1453
      %v1464 = vpack.c.b16 %v1456, %v1455
      %1473 = vmatprep.subr.bf16.mxu0 0
      %1474 = vmatpush1.bf16.msra.mxu0 %v1457
      %1475 = vmatprep.subr.bf16.mxu0 0
      %1476 = vmatpush1.bf16.msra.mxu0 %v1458
      %1477 = vmatprep.subr.bf16.mxu0 0
      %1478 = vmatpush1.bf16.msra.mxu0 %v1459
      %1479 = vmatprep.subr.bf16.mxu0 0
      %1480 = vmatpush1.bf16.msra.mxu0 %v1460
      %1481 = vmatprep.subr.bf16.mxu0 0
      %1482 = vmatpush1.bf16.msra.mxu0 %v1461
      %1483 = vmatprep.subr.bf16.mxu0 0
      %1484 = vmatpush1.bf16.msra.mxu0 %v1462
      %1485 = vmatprep.subr.bf16.mxu0 0
      %1486 = vmatpush1.bf16.msra.mxu0 %v1463
      %1487 = vmatprep.subr.bf16.mxu0 0
      %1488 = vmatpush1.bf16.msra.mxu0 %v1464
      %1489 = vmatprep.subr.bf16.mxu0 0
      %1490 = vmatpush1.bf16.msra.mxu0 0
      %1491 = vmatprep.subr.bf16.mxu0 0
      %1492 = vmatpush1.bf16.msra.mxu0 0
      %1493 = vmatprep.subr.bf16.mxu0 0
      %1494 = vmatpush1.bf16.msra.mxu0 0
      %1495 = vmatprep.subr.bf16.mxu0 0
      %1496 = vmatpush1.bf16.msra.mxu0 0
      %1497 = vmatprep.subr.bf16.mxu0 0
      %1498 = vmatpush1.bf16.msra.mxu0 0
      %1499 = vmatprep.subr.bf16.mxu0 0
      %1500 = vmatpush1.bf16.msra.mxu0 0
      %1501 = vmatprep.subr.bf16.mxu0 0
      %1502 = vmatpush1.bf16.msra.mxu0 0
      %1503 = vmatprep.subr.bf16.mxu0 0
      %1504 = vmatpush1.bf16.msra.mxu0 0
      %1505 = vmatprep.mubr.bf16.mxu0 0
      %1506 = vmatmul.mubr.bf16.gmra.mrb[0].mxu0 %v1396
      %v1507 = vpop.f32.mrb[0].mxu0
      %v1508 = vadd.f32 0.0, %v1507
      %v1509 = vpop.f32.mrb[0].mxu0
      %v1510 = vpop.f32.mrb[0].mxu0
      %v1511 = vadd.f32 0.0, %v1510
      %v1512 = vpop.f32.mrb[0].mxu0
      %1513 = vmatprep.mubr.bf16.mxu0 0
      %1514 = vmatmul.mubr.bf16.gmra.mrb[0].mxu0 %v1397
      %v1515 = vpop.f32.mrb[0].mxu0
      %v1516 = vadd.f32 0.0, %v1515
      %v1517 = vpop.f32.mrb[0].mxu0
      %v1518 = vpop.f32.mrb[0].mxu0
      %v1519 = vadd.f32 0.0, %v1518
      %v1520 = vpop.f32.mrb[0].mxu0
      %1521 = vmatprep.mubr.bf16.mxu0 0
      %1522 = vmatmul.mubr.bf16.gmra.mrb[0].mxu0 %v1398
      %v1523 = vpop.f32.mrb[0].mxu0
      %v1524 = vadd.f32 0.0, %v1523
      %v1525 = vpop.f32.mrb[0].mxu0
      %v1526 = vpop.f32.mrb[0].mxu0
      %v1527 = vadd.f32 0.0, %v1526
      %v1528 = vpop.f32.mrb[0].mxu0
      %1529 = vmatprep.mubr.bf16.mxu0 0
      %1530 = vmatmul.mubr.bf16.gmra.mrb[0].mxu0 %v1399
      %v1531 = vpop.f32.mrb[0].mxu0
      %v1532 = vadd.f32 0.0, %v1531
      %v1533 = vpop.f32.mrb[0].mxu0
      %v1534 = vpop.f32.mrb[0].mxu0
      %v1535 = vadd.f32 0.0, %v1534
      %v1536 = vpop.f32.mrb[0].mxu0
      %1537 = vdwg.mxu0
      %v1538 = vadd.f32 %v1400, %v1508
      %v1539 = vadd.f32 %v1401, %v1511
      %v1540 = vadd.f32 %v1402, %v1516
      %v1541 = vadd.f32 %v1403, %v1519
      %v1542 = vadd.f32 %v1404, %v1524
      %v1543 = vadd.f32 %v1405, %v1527
      %v1544 = vadd.f32 %v1406, %v1532
      %v1545 = vadd.f32 %v1407, %v1535
      %1546 = vst [vmem:[#allocation2] sm:$0xff] %v1538
      %1547 = vst [vmem:[#allocation2 + $0x8] sm:$0xff] %v1539
      %1548 = vst [vmem:[#allocation2 + $0x10] sm:$0xff] %v1540
      %1549 = vst [vmem:[#allocation2 + $0x18] sm:$0xff] %v1541
      %1550 = vst [vmem:[#allocation2 + $0x20] sm:$0xff] %v1542
      %1551 = vst [vmem:[#allocation2 + $0x28] sm:$0xff] %v1543
      %1552 = vst [vmem:[#allocation2 + $0x30] sm:$0xff] %v1544
      %1553 = vst [vmem:[#allocation2 + $0x38] sm:$0xff] %v1545
      %v1554 = vld [vmem:[%s1387 + $0x1] sm:$0xff]
      %v1555 = vld [vmem:[%s1387 + $0x11] sm:$0xff]
      %v1556 = vld [vmem:[%s1387 + $0x21] sm:$0xff]
      %v1557 = vld [vmem:[%s1387 + $0x31] sm:$0xff]
      %v1558 = vld [vmem:[%s1387 + $0x41] sm:$0xff]
      %v1559 = vld [vmem:[%s1387 + $0x51] sm:$0xff]
      %v1560 = vld [vmem:[%s1387 + $0x61] sm:$0xff]
      %v1561 = vld [vmem:[%s1387 + $0x71] sm:$0xff]
      %v1562 = vpack.c.bf16 %v1555, %v1554
      %v1563 = vpack.c.bf16 %v1557, %v1556
      %v1564 = vpack.c.bf16 %v1559, %v1558
      %v1565 = vpack.c.bf16 %v1561, %v1560
      %v1566 = vld [vmem:[#allocation2] sm:$0xff]
      %v1567 = vld [vmem:[#allocation2 + $0x8] sm:$0xff]
      %v1568 = vld [vmem:[#allocation2 + $0x10] sm:$0xff]
      %v1569 = vld [vmem:[#allocation2 + $0x18] sm:$0xff]
      %v1570 = vld [vmem:[#allocation2 + $0x20] sm:$0xff]
      %v1571 = vld [vmem:[#allocation2 + $0x28] sm:$0xff]
      %v1572 = vld [vmem:[#allocation2 + $0x30] sm:$0xff]
      %v1573 = vld [vmem:[#allocation2 + $0x38] sm:$0xff]
      %s1574 = scalar_lea.vmem %s1, 448
      %v1575 = vld [vmem:[%s1574] sm:$0xf]
      %v1576 = vld [vmem:[%s1574 + $0x4] sm:$0xf]
      %v1577 = vld [vmem:[%s1574 + $0x8] sm:$0xf]
      %v1578 = vld [vmem:[%s1574 + $0xc] sm:$0xf]
      %v1579 = vld [vmem:[%s1574 + $0x10] sm:$0xf]
      %v1580 = vld [vmem:[%s1574 + $0x14] sm:$0xf]
      %v1581 = vld [vmem:[%s1574 + $0x18] sm:$0xf]
      %v1582 = vld [vmem:[%s1574 + $0x1c] sm:$0xf]
      %v1583 = vld [vmem:[%s1574 + $0x20] sm:$0xf]
      %v1584 = vld [vmem:[%s1574 + $0x24] sm:$0xf]
      %v1585 = vld [vmem:[%s1574 + $0x28] sm:$0xf]
      %v1586 = vld [vmem:[%s1574 + $0x2c] sm:$0xf]
      %v1587 = vld [vmem:[%s1574 + $0x30] sm:$0xf]
      %v1588 = vld [vmem:[%s1574 + $0x34] sm:$0xf]
      %v1589 = vld [vmem:[%s1574 + $0x38] sm:$0xf]
      %v1590 = vld [vmem:[%s1574 + $0x3c] sm:$0xf]
      %v1607 = vunpack.c.l.b16 %v1575
      %v1608 = vunpack.c.l.b16 %v1576
      %v1609 = vunpack.c.l.b16 %v1577
      %v1610 = vunpack.c.l.b16 %v1578
      %v1611 = vunpack.c.l.b16 %v1579
      %v1612 = vunpack.c.l.b16 %v1580
      %v1613 = vunpack.c.l.b16 %v1581
      %v1614 = vunpack.c.l.b16 %v1582
      %v1615 = vunpack.c.l.b16 %v1583
      %v1616 = vunpack.c.l.b16 %v1584
      %v1617 = vunpack.c.l.b16 %v1585
      %v1618 = vunpack.c.l.b16 %v1586
      %v1619 = vunpack.c.l.b16 %v1587
      %v1620 = vunpack.c.l.b16 %v1588
      %v1621 = vunpack.c.l.b16 %v1589
      %v1622 = vunpack.c.l.b16 %v1590
      %v1623 = vpack.c.b16 %v1608, %v1607
      %v1624 = vpack.c.b16 %v1610, %v1609
      %v1625 = vpack.c.b16 %v1612, %v1611
      %v1626 = vpack.c.b16 %v1614, %v1613
      %v1627 = vpack.c.b16 %v1616, %v1615
      %v1628 = vpack.c.b16 %v1618, %v1617
      %v1629 = vpack.c.b16 %v1620, %v1619
      %v1630 = vpack.c.b16 %v1622, %v1621
      %1639 = vmatprep.subr.bf16.mxu0 0
      %1640 = vmatpush1.bf16.msra.mxu0 %v1623
      %1641 = vmatprep.subr.bf16.mxu0 0
      %1642 = vmatpush1.bf16.msra.mxu0 %v1624
      %1643 = vmatprep.subr.bf16.mxu0 0
      %1644 = vmatpush1.bf16.msra.mxu0 %v1625
      %1645 = vmatprep.subr.bf16.mxu0 0
      %1646 = vmatpush1.bf16.msra.mxu0 %v1626
      %1647 = vmatprep.subr.bf16.mxu0 0
      %1648 = vmatpush1.bf16.msra.mxu0 %v1627
      %1649 = vmatprep.subr.bf16.mxu0 0
      %1650 = vmatpush1.bf16.msra.mxu0 %v1628
      %1651 = vmatprep.subr.bf16.mxu0 0
      %1652 = vmatpush1.bf16.msra.mxu0 %v1629
      %1653 = vmatprep.subr.bf16.mxu0 0
      %1654 = vmatpush1.bf16.msra.mxu0 %v1630
      %1655 = vmatprep.subr.bf16.mxu0 0
      %1656 = vmatpush1.bf16.msra.mxu0 0
      %1657 = vmatprep.subr.bf16.mxu0 0
      %1658 = vmatpush1.bf16.msra.mxu0 0
      %1659 = vmatprep.subr.bf16.mxu0 0
      %1660 = vmatpush1.bf16.msra.mxu0 0
      %1661 = vmatprep.subr.bf16.mxu0 0
      %1662 = vmatpush1.bf16.msra.mxu0 0
      %1663 = vmatprep.subr.bf16.mxu0 0
      %1664 = vmatpush1.bf16.msra.mxu0 0
      %1665 = vmatprep.subr.bf16.mxu0 0
      %1666 = vmatpush1.bf16.msra.mxu0 0
      %1667 = vmatprep.subr.bf16.mxu0 0
      %1668 = vmatpush1.bf16.msra.mxu0 0
      %1669 = vmatprep.subr.bf16.mxu0 0
      %1670 = vmatpush1.bf16.msra.mxu0 0
      %1671 = vmatprep.mubr.bf16.mxu0 0
      %1672 = vmatmul.mubr.bf16.gmra.mrb[0].mxu0 %v1562
      %v1673 = vpop.f32.mrb[0].mxu0
      %v1674 = vadd.f32 0.0, %v1673
      %v1675 = vpop.f32.mrb[0].mxu0
      %v1676 = vpop.f32.mrb[0].mxu0
      %v1677 = vadd.f32 0.0, %v1676
      %v1678 = vpop.f32.mrb[0].mxu0
      %1679 = vmatprep.mubr.bf16.mxu0 0
      %1680 = vmatmul.mubr.bf16.gmra.mrb[0].mxu0 %v1563
      %v1681 = vpop.f32.mrb[0].mxu0
      %v1682 = vadd.f32 0.0, %v1681
      %v1683 = vpop.f32.mrb[0].mxu0
      %v1684 = vpop.f32.mrb[0].mxu0
      %v1685 = vadd.f32 0.0, %v1684
      %v1686 = vpop.f32.mrb[0].mxu0
      %1687 = vmatprep.mubr.bf16.mxu0 0
      %1688 = vmatmul.mubr.bf16.gmra.mrb[0].mxu0 %v1564
      %v1689 = vpop.f32.mrb[0].mxu0
      %v1690 = vadd.f32 0.0, %v1689
      %v1691 = vpop.f32.mrb[0].mxu0
      %v1692 = vpop.f32.mrb[0].mxu0
      %v1693 = vadd.f32 0.0, %v1692
      %v1694 = vpop.f32.mrb[0].mxu0
      %1695 = vmatprep.mubr.bf16.mxu0 0
      %1696 = vmatmul.mubr.bf16.gmra.mrb[0].mxu0 %v1565
      %v1697 = vpop.f32.mrb[0].mxu0
      %v1698 = vadd.f32 0.0, %v1697
      %v1699 = vpop.f32.mrb[0].mxu0
      %v1700 = vpop.f32.mrb[0].mxu0
      %v1701 = vadd.f32 0.0, %v1700
      %v1702 = vpop.f32.mrb[0].mxu0
      %1703 = vdwg.mxu0
      %v1704 = vadd.f32 %v1566, %v1674
      %v1705 = vadd.f32 %v1567, %v1677
      %v1706 = vadd.f32 %v1568, %v1682
      %v1707 = vadd.f32 %v1569, %v1685
      %v1708 = vadd.f32 %v1570, %v1690
      %v1709 = vadd.f32 %v1571, %v1693
      %v1710 = vadd.f32 %v1572, %v1698
      %v1711 = vadd.f32 %v1573, %v1701
      %1712 = vst [vmem:[#allocation2] sm:$0xff] %v1704
      %1713 = vst [vmem:[#allocation2 + $0x8] sm:$0xff] %v1705
      %1714 = vst [vmem:[#allocation2 + $0x10] sm:$0xff] %v1706
      %1715 = vst [vmem:[#allocation2 + $0x18] sm:$0xff] %v1707
      %1716 = vst [vmem:[#allocation2 + $0x20] sm:$0xff] %v1708
      %1717 = vst [vmem:[#allocation2 + $0x28] sm:$0xff] %v1709
      %1718 = vst [vmem:[#allocation2 + $0x30] sm:$0xff] %v1710
      %1719 = vst [vmem:[#allocation2 + $0x38] sm:$0xff] %v1711
      %v1720 = vld [vmem:[%s1387 + $0x2] sm:$0xff]
      %v1721 = vld [vmem:[%s1387 + $0x12] sm:$0xff]
      %v1722 = vld [vmem:[%s1387 + $0x22] sm:$0xff]
      %v1723 = vld [vmem:[%s1387 + $0x32] sm:$0xff]
      %v1724 = vld [vmem:[%s1387 + $0x42] sm:$0xff]
      %v1725 = vld [vmem:[%s1387 + $0x52] sm:$0xff]
      %v1726 = vld [vmem:[%s1387 + $0x62] sm:$0xff]
      %v1727 = vld [vmem:[%s1387 + $0x72] sm:$0xff]
      %v1728 = vpack.c.bf16 %v1721, %v1720
      %v1729 = vpack.c.bf16 %v1723, %v1722
      %v1730 = vpack.c.bf16 %v1725, %v1724
      %v1731 = vpack.c.bf16 %v1727, %v1726
      %v1732 = vld [vmem:[#allocation2] sm:$0xff]
      %v1733 = vld [vmem:[#allocation2 + $0x8] sm:$0xff]
      %v1734 = vld [vmem:[#allocation2 + $0x10] sm:$0xff]
      %v1735 = vld [vmem:[#allocation2 + $0x18] sm:$0xff]
      %v1736 = vld [vmem:[#allocation2 + $0x20] sm:$0xff]
      %v1737 = vld [vmem:[#allocation2 + $0x28] sm:$0xff]
      %v1738 = vld [vmem:[#allocation2 + $0x30] sm:$0xff]
      %v1739 = vld [vmem:[#allocation2 + $0x38] sm:$0xff]
      %s1740 = scalar_lea.vmem %s1, 512
      %v1741 = vld [vmem:[%s1740] sm:$0xf]
      %v1742 = vld [vmem:[%s1740 + $0x4] sm:$0xf]
      %v1743 = vld [vmem:[%s1740 + $0x8] sm:$0xf]
      %v1744 = vld [vmem:[%s1740 + $0xc] sm:$0xf]
      %v1745 = vld [vmem:[%s1740 + $0x10] sm:$0xf]
      %v1746 = vld [vmem:[%s1740 + $0x14] sm:$0xf]
      %v1747 = vld [vmem:[%s1740 + $0x18] sm:$0xf]
      %v1748 = vld [vmem:[%s1740 + $0x1c] sm:$0xf]
      %v1749 = vld [vmem:[%s1740 + $0x20] sm:$0xf]
      %v1750 = vld [vmem:[%s1740 + $0x24] sm:$0xf]
      %v1751 = vld [vmem:[%s1740 + $0x28] sm:$0xf]
      %v1752 = vld [vmem:[%s1740 + $0x2c] sm:$0xf]
      %v1753 = vld [vmem:[%s1740 + $0x30] sm:$0xf]
      %v1754 = vld [vmem:[%s1740 + $0x34] sm:$0xf]
      %v1755 = vld [vmem:[%s1740 + $0x38] sm:$0xf]
      %v1756 = vld [vmem:[%s1740 + $0x3c] sm:$0xf]
      %v1773 = vunpack.c.l.b16 %v1741
      %v1774 = vunpack.c.l.b16 %v1742
      %v1775 = vunpack.c.l.b16 %v1743
      %v1776 = vunpack.c.l.b16 %v1744
      %v1777 = vunpack.c.l.b16 %v1745
      %v1778 = vunpack.c.l.b16 %v1746
      %v1779 = vunpack.c.l.b16 %v1747
      %v1780 = vunpack.c.l.b16 %v1748
      %v1781 = vunpack.c.l.b16 %v1749
      %v1782 = vunpack.c.l.b16 %v1750
      %v1783 = vunpack.c.l.b16 %v1751
      %v1784 = vunpack.c.l.b16 %v1752
      %v1785 = vunpack.c.l.b16 %v1753
      %v1786 = vunpack.c.l.b16 %v1754
      %v1787 = vunpack.c.l.b16 %v1755
      %v1788 = vunpack.c.l.b16 %v1756
      %v1789 = vpack.c.b16 %v1774, %v1773
      %v1790 = vpack.c.b16 %v1776, %v1775
      %v1791 = vpack.c.b16 %v1778, %v1777
      %v1792 = vpack.c.b16 %v1780, %v1779
      %v1793 = vpack.c.b16 %v1782, %v1781
      %v1794 = vpack.c.b16 %v1784, %v1783
      %v1795 = vpack.c.b16 %v1786, %v1785
      %v1796 = vpack.c.b16 %v1788, %v1787
      %1805 = vmatprep.subr.bf16.mxu0 0
      %1806 = vmatpush1.bf16.msra.mxu0 %v1789
      %1807 = vmatprep.subr.bf16.mxu0 0
      %1808 = vmatpush1.bf16.msra.mxu0 %v1790
      %1809 = vmatprep.subr.bf16.mxu0 0
      %1810 = vmatpush1.bf16.msra.mxu0 %v1791
      %1811 = vmatprep.subr.bf16.mxu0 0
      %1812 = vmatpush1.bf16.msra.mxu0 %v1792
      %1813 = vmatprep.subr.bf16.mxu0 0
      %1814 = vmatpush1.bf16.msra.mxu0 %v1793
      %1815 = vmatprep.subr.bf16.mxu0 0
      %1816 = vmatpush1.bf16.msra.mxu0 %v1794
      %1817 = vmatprep.subr.bf16.mxu0 0
      %1818 = vmatpush1.bf16.msra.mxu0 %v1795
      %1819 = vmatprep.subr.bf16.mxu0 0
      %1820 = vmatpush1.bf16.msra.mxu0 %v1796
      %1821 = vmatprep.subr.bf16.mxu0 0
      %1822 = vmatpush1.bf16.msra.mxu0 0
      %1823 = vmatprep.subr.bf16.mxu0 0
      %1824 = vmatpush1.bf16.msra.mxu0 0
      %1825 = vmatprep.subr.bf16.mxu0 0
      %1826 = vmatpush1.bf16.msra.mxu0 0
      %1827 = vmatprep.subr.bf16.mxu0 0
      %1828 = vmatpush1.bf16.msra.mxu0 0
      %1829 = vmatprep.subr.bf16.mxu0 0
      %1830 = vmatpush1.bf16.msra.mxu0 0
      %1831 = vmatprep.subr.bf16.mxu0 0
      %1832 = vmatpush1.bf16.msra.mxu0 0
      %1833 = vmatprep.subr.bf16.mxu0 0
      %1834 = vmatpush1.bf16.msra.mxu0 0
      %1835 = vmatprep.subr.bf16.mxu0 0
      %1836 = vmatpush1.bf16.msra.mxu0 0
      %1837 = vmatprep.mubr.bf16.mxu0 0
      %1838 = vmatmul.mubr.bf16.gmra.mrb[0].mxu0 %v1728
      %v1839 = vpop.f32.mrb[0].mxu0
      %v1840 = vadd.f32 0.0, %v1839
      %v1841 = vpop.f32.mrb[0].mxu0
      %v1842 = vpop.f32.mrb[0].mxu0
      %v1843 = vadd.f32 0.0, %v1842
      %v1844 = vpop.f32.mrb[0].mxu0
      %1845 = vmatprep.mubr.bf16.mxu0 0
      %1846 = vmatmul.mubr.bf16.gmra.mrb[0].mxu0 %v1729
      %v1847 = vpop.f32.mrb[0].mxu0
      %v1848 = vadd.f32 0.0, %v1847
      %v1849 = vpop.f32.mrb[0].mxu0
      %v1850 = vpop.f32.mrb[0].mxu0
      %v1851 = vadd.f32 0.0, %v1850
      %v1852 = vpop.f32.mrb[0].mxu0
      %1853 = vmatprep.mubr.bf16.mxu0 0
      %1854 = vmatmul.mubr.bf16.gmra.mrb[0].mxu0 %v1730
      %v1855 = vpop.f32.mrb[0].mxu0
      %v1856 = vadd.f32 0.0, %v1855
      %v1857 = vpop.f32.mrb[0].mxu0
      %v1858 = vpop.f32.mrb[0].mxu0
      %v1859 = vadd.f32 0.0, %v1858
      %v1860 = vpop.f32.mrb[0].mxu0
      %1861 = vmatprep.mubr.bf16.mxu0 0
      %1862 = vmatmul.mubr.bf16.gmra.mrb[0].mxu0 %v1731
      %v1863 = vpop.f32.mrb[0].mxu0
      %v1864 = vadd.f32 0.0, %v1863
      %v1865 = vpop.f32.mrb[0].mxu0
      %v1866 = vpop.f32.mrb[0].mxu0
      %v1867 = vadd.f32 0.0, %v1866
      %v1868 = vpop.f32.mrb[0].mxu0
      %1869 = vdwg.mxu0
      %v1870 = vadd.f32 %v1732, %v1840
      %v1871 = vadd.f32 %v1733, %v1843
      %v1872 = vadd.f32 %v1734, %v1848
      %v1873 = vadd.f32 %v1735, %v1851
      %v1874 = vadd.f32 %v1736, %v1856
      %v1875 = vadd.f32 %v1737, %v1859
      %v1876 = vadd.f32 %v1738, %v1864
      %v1877 = vadd.f32 %v1739, %v1867
      %1878 = vst [vmem:[#allocation2] sm:$0xff] %v1870
      %1879 = vst [vmem:[#allocation2 + $0x8] sm:$0xff] %v1871
      %1880 = vst [vmem:[#allocation2 + $0x10] sm:$0xff] %v1872
      %1881 = vst [vmem:[#allocation2 + $0x18] sm:$0xff] %v1873
      %1882 = vst [vmem:[#allocation2 + $0x20] sm:$0xff] %v1874
      %1883 = vst [vmem:[#allocation2 + $0x28] sm:$0xff] %v1875
      %1884 = vst [vmem:[#allocation2 + $0x30] sm:$0xff] %v1876
      %1885 = vst [vmem:[#allocation2 + $0x38] sm:$0xff] %v1877
      %v1886 = vld [vmem:[#allocation2] sm:$0xff]
      %v1887 = vld [vmem:[#allocation2 + $0x8] sm:$0xff]
      %v1888 = vld [vmem:[#allocation2 + $0x10] sm:$0xff]
      %v1889 = vld [vmem:[#allocation2 + $0x18] sm:$0xff]
      %v1890 = vld [vmem:[#allocation2 + $0x20] sm:$0xff]
      %v1891 = vld [vmem:[#allocation2 + $0x28] sm:$0xff]
      %v1892 = vld [vmem:[#allocation2 + $0x30] sm:$0xff]
      %v1893 = vld [vmem:[#allocation2 + $0x38] sm:$0xff]
      %v1894 = vld [vmem:[%s2] sm:$0x1]
      %v1896 = vlaneseq
      %v1897 = vshrl.u32 %v1896, 7
      %v1898 = vsub.s32 0, %v1897
      %v1899 = vrot.slane %v1894, %v1898
      %v1901 = vadd.f32 %v1886, %v1899
      %v1902 = vadd.f32 %v1887, %v1899
      %v1903 = vadd.f32 %v1888, %v1899
      %v1904 = vadd.f32 %v1889, %v1899
      %v1905 = vadd.f32 %v1890, %v1899
      %v1906 = vadd.f32 %v1891, %v1899
      %v1907 = vadd.f32 %v1892, %v1899
      %v1908 = vadd.f32 %v1893, %v1899
      %v1909 = vmax.f32 %v1901, 0.0
      %v1910 = vmax.f32 %v1902, 0.0
      %v1911 = vmax.f32 %v1903, 0.0
      %v1912 = vmax.f32 %v1904, 0.0
      %v1913 = vmax.f32 %v1905, 0.0
      %v1914 = vmax.f32 %v1906, 0.0
      %v1915 = vmax.f32 %v1907, 0.0
      %v1916 = vmax.f32 %v1908, 0.0
      %1917 = vst [vmem:[%s271] sm:$0xff] %v1909
      %1918 = vst [vmem:[%s271 + $0x8] sm:$0xff] %v1910
      %1919 = vst [vmem:[%s271 + $0x10] sm:$0xff] %v1911
      %1920 = vst [vmem:[%s271 + $0x18] sm:$0xff] %v1912
      %1921 = vst [vmem:[%s271 + $0x20] sm:$0xff] %v1913
      %1922 = vst [vmem:[%s271 + $0x28] sm:$0xff] %v1914
      %1923 = vst [vmem:[%s271 + $0x30] sm:$0xff] %v1915
      %1924 = vst [vmem:[%s271 + $0x38] sm:$0xff] %v1916
      %p1925 = scmp.lt.s32.totalorder %s17, 1
      %s1926 = scalar_select %p1925, %s17, 1
      %s1927 = smul.addr %s1926, 8
      %s1928 = smul.addr %s1927, 8
      %s1929 = scalar_lea.vmem %s6, %s1928
      // Predicated region
      $region45: #{basic_block_forward.3} parent=43 // pred_check
        %p1930 = pneg %p171
      $region46: #{basic_block_forward.3} parent=43 // pred_check_branch
        %1932 = sbr.rel (%p1930) target = $region48
      $region47: #{basic_block_forward.3} parent=43 // pred_region
        _
      $region48: #{basic_block_forward.3} parent=43 // pred_fallthru
        _
    $region44: #{basic_block_forward.3} parent=5 // pred_fallthru
      _
    %p1933 = scmp.le.s32.totalorder 2, %s12
    // Predicated region
    $region49: #{basic_block_forward.3} parent=5 // pred_check
      %p1934 = pneg %p1933
    $region50: #{basic_block_forward.3} parent=5 // pred_check_branch
      %1936 = sbr.rel (%p1934) target = $region52
    $region51: #{basic_block_forward.3} parent=5 // pred_region
      %s1937 = ssub.s32 %s12, 2
      // Predicated region
      $region53: #{basic_block_forward.3} parent=51 // pred_check
        %p1938 = pneg %p177
      $region54: #{basic_block_forward.3} parent=51 // pred_check_branch
        %1940 = sbr.rel (%p1938) target = $region56
      $region55: #{basic_block_forward.3} parent=51 // pred_region
        %p1941 = scmp.lt.s32.totalorder %s18, 1
        %s1942 = scalar_select %p1941, %s18, 1
        %s1943 = smul.addr %s1942, 8
        %s1944 = smul.addr %s1943, 8
        %s1945 = scalar_lea.vmem %s6, %s1944
      $region56: #{basic_block_forward.3} parent=51 // pred_fallthru
        _
    $region52: #{basic_block_forward.3} parent=5 // pred_fallthru
      _
  $region6: #{basic_block_forward.3} parent=0 // loop_footer
    %s16 = sadd.s32 1, %s12
  $region7: #{basic_block_forward.3} parent=0 // loop_footer_branch
    %11 = sbr.rel target = $region3
  $region8: #{basic_block_forward.3} parent=0 // loop_exit
    _

</llo_original>
